<compile_context>
chip_gen: v5e
topology: v5e:2x2
jax: 0.10.0
libtpu: 0.0.40
codegen_flags: <defaults>
</compile_context>

<pallas_src>
import functools

import jax
import jax.numpy as jnp
from jax.experimental import pallas as pl
from jax.experimental.pallas import tpu as pltpu

_BN_EPS = 1e-5
_LANE = 128


def _round_up(v, m):
    return (v + m - 1) // m * m


def _batch_norm(x, gamma, beta):
    # nn.BatchNorm2d training mode: batch statistics over rows == N*H*W,
    # biased variance.  Centered (mean-subtracted) variance for stability.
    inv_rows = 1.0 / x.shape[0]
    mean = jnp.sum(x, axis=0, keepdims=True) * inv_rows
    d = x - mean
    var = jnp.sum(d * d, axis=0, keepdims=True) * inv_rows
    return d * jax.lax.rsqrt(var + _BN_EPS) * gamma + beta


# ----------------------------------------------------------------- kernel ----

def _bottleneck_fused_kernel(x_ref, w1_ref, w2_ref, w3_ref,
                             g1_ref, b1_ref, g2_ref, b2_ref, g3_ref, b3_ref,
                             o_ref, h1p_ref, *, n, h, w, pack_taps):
    rows = n * h * w
    c0p = h1p_ref.shape[-1]

    # ---- stage 1: conv1 (1x1) + (ternary gate folded into gamma1) bn1 + relu
    h1 = jnp.dot(x_ref[...].astype(jnp.bfloat16), w1_ref[...],
                 preferred_element_type=jnp.float32)            # (rows, c0p)
    h1 = jnp.maximum(_batch_norm(h1, g1_ref[...], b1_ref[...]), 0.0)

    # Zero-padded NHWC scratch for the 3x3 conv: zero only the 1-wide halo
    # ring (two row strips + two column strips), then store the interior.
    h1p_ref[:, 0:1, :, :] = jnp.zeros((n, 1, w + 2, c0p), jnp.float32)
    h1p_ref[:, h + 1:h + 2, :, :] = jnp.zeros((n, 1, w + 2, c0p), jnp.float32)
    h1p_ref[:, :, 0:1, :] = jnp.zeros((n, h + 2, 1, c0p), jnp.float32)
    h1p_ref[:, :, w + 1:w + 2, :] = jnp.zeros((n, h + 2, 1, c0p), jnp.float32)
    h1p_ref[:, 1:h + 1, 1:w + 1, :] = h1.reshape(n, h, w, c0p)

    h1p = h1p_ref[...]                                          # (n,h+2,w+2,c0p)

    def tap(kh, kw):
        return (h1p[:, kh:kh + h, kw:kw + w, :]
                .reshape(rows, c0p).astype(jnp.bfloat16))

    # ---- stage 2: conv2 (3x3, stride 1, pad 1) + bn2 + relu ----------------
    if pack_taps:
        # K=256 tap pairing for the 256-deep MXU on v6e/v7x.
        pairs = (((0, 0), (0, 1)), ((0, 2), (1, 0)),
                 ((1, 1), (1, 2)), ((2, 0), (2, 1)))
        acc = None
        for (kh0, kw0), (kh1, kw1) in pairs:
            xs = jnp.concatenate([tap(kh0, kw0), tap(kh1, kw1)], axis=-1)
            wp = jnp.concatenate(
                [w2_ref[kh0 * 3 + kw0], w2_ref[kh1 * 3 + kw1]], axis=0)
            part = jnp.dot(xs, wp, preferred_element_type=jnp.float32)
            acc = part if acc is None else acc + part
        acc = acc + jnp.dot(tap(2, 2), w2_ref[8],
                            preferred_element_type=jnp.float32)
    else:
        # v5e: MXU is 128x128, K=128 taps already map perfectly.
        acc = None
        for kh in range(3):
            for kw in range(3):
                part = jnp.dot(tap(kh, kw), w2_ref[kh * 3 + kw],
                               preferred_element_type=jnp.float32)
                acc = part if acc is None else acc + part

    h2 = jnp.maximum(_batch_norm(acc, g2_ref[...], b2_ref[...]), 0.0)

    # ---- stage 3: conv3 (1x1) + bn3 + identity residual + relu -------------
    h3 = jnp.dot(h2.astype(jnp.bfloat16), w3_ref[...],
                 preferred_element_type=jnp.float32)
    h3 = _batch_norm(h3, g3_ref[...], b3_ref[...])
    o_ref[...] = jnp.maximum(h3 + x_ref[...], 0.0).astype(o_ref.dtype)


# -------------------------------------------------------------- parameters ---

def init_bottleneck_params(key, inplanes, planes, cfg):
    c0, c1 = cfg
    c_out = planes * 4
    ks = jax.random.split(key, 11)

    def conv_init(k, fan_in, shape):
        bound = 1.0 / (fan_in ** 0.5)
        return jax.random.uniform(k, shape, jnp.float32, -bound, bound)

    return dict(
        # conv weights stored pre-transposed for the channels-last matmuls.
        w1=conv_init(ks[0], inplanes, (inplanes, c0)),      # torch: (c0, Cin, 1, 1)
        w2=conv_init(ks[1], 9 * c0, (3, 3, c0, c1)),        # torch: (c1, c0, 3, 3)
        w3=conv_init(ks[2], c1, (c1, c_out)),               # torch: (c_out, c1, 1, 1)
        alpha1=jax.random.normal(ks[3], (1, c0), jnp.float32),
        alpha2=jax.random.normal(ks[4], (1, c1), jnp.float32),
        gamma1=1.0 + 0.1 * jax.random.normal(ks[5], (1, c0), jnp.float32),
        beta1=0.1 * jax.random.normal(ks[6], (1, c0), jnp.float32),
        gamma2=1.0 + 0.1 * jax.random.normal(ks[7], (1, c1), jnp.float32),
        beta2=0.1 * jax.random.normal(ks[8], (1, c1), jnp.float32),
        gamma3=1.0 + 0.1 * jax.random.normal(ks[9], (1, c_out), jnp.float32),
        beta3=0.1 * jax.random.normal(ks[10], (1, c_out), jnp.float32),
    )


# ----------------------------------------------------------------- forward ---

def _pad_last(a, size):
    pad = size - a.shape[-1]
    if pad == 0:
        return a
    return jnp.pad(a, [(0, 0)] * (a.ndim - 1) + [(0, pad)])


def _mxu_k256():
    # K=256 tap packing only pays on the 256-deep MXUs (v6e / v7x); keep the
    # native K=128 taps on v5e (and if detection fails).
    try:
        kind = jax.devices()[0].device_kind.lower()
    except Exception:
        return False
    return ("v6" in kind) or ("v7" in kind)


def bottleneck_forward_nhwc(x_nhwc, params, stride=1):
    n, h, w, c_in = x_nhwc.shape
    c0 = params["w1"].shape[1]
    c1 = params["w2"].shape[3]
    c_out = params["w3"].shape[1]

    # downsample=None in this instantiation -> residual is x itself.
    assert stride == 1 and c_in == c_out, \
        "identity residual requires stride=1 and inplanes == planes*4"

    cinp = _round_up(c_in, _LANE)
    c0p = _round_up(c0, _LANE)
    c1p = _round_up(c1, _LANE)
    coutp = _round_up(c_out, _LANE)
    rows = n * h * w

    # Activations flattened to (rows, C); channel axis zero-padded lane-dense.
    x2d = _pad_last(x_nhwc.reshape(rows, c_in), cinp).astype(jnp.float32)

    # Conv weights: zero-pad both channel axes, bf16 for the MXU.
    w1 = _pad_last(jnp.pad(params["w1"], ((0, cinp - c_in), (0, 0))),
                   c0p).astype(jnp.bfloat16)
    w2 = _pad_last(jnp.pad(params["w2"],
                           ((0, 0), (0, 0), (0, c0p - c0), (0, 0))),
                   c1p).reshape(9, c0p, c1p).astype(jnp.bfloat16)
    w3 = _pad_last(jnp.pad(params["w3"], ((0, c1p - c1), (0, 0))),
                   coutp).astype(jnp.bfloat16)

    # Fold the BinarizeAttention hard-ternary gate t = sign(alpha) into BN
    # gamma: BN(t*h)*gamma + beta == BN(h)*(gamma*t) + beta exactly for
    # t in {-1, 0, +1} (for t=0 both forms collapse to beta).
    g1 = _pad_last(params["gamma1"] * jnp.sign(params["alpha1"]), c0p)
    b1 = _pad_last(params["beta1"], c0p)
    g2 = _pad_last(params["gamma2"] * jnp.sign(params["alpha2"]), c1p)
    b2 = _pad_last(params["beta2"], c1p)
    g3 = _pad_last(params["gamma3"], coutp)
    b3 = _pad_last(params["beta3"], coutp)

    kernel = functools.partial(_bottleneck_fused_kernel, n=n, h=h, w=w,
                               pack_taps=_mxu_k256())
    args = (x2d, w1, w2, w3, g1, b1, g2, b2, g3, b3)

    flops = 2 * rows * (cinp * c0p + 9 * c0p * c1p + c1p * coutp)
    bytes_accessed = (rows * (cinp + coutp) * 4
                      + (w1.size + w2.size + w3.size) * 2
                      + (g1.size + b1.size + g2.size
                         + b2.size + g3.size + b3.size) * 4)

    out2d = pl.pallas_call(
        kernel,
        out_shape=jax.ShapeDtypeStruct((rows, coutp), jnp.float32),
        in_specs=[pl.BlockSpec(memory_space=pltpu.MemorySpace.VMEM)
                  for _ in args],
        out_specs=pl.BlockSpec(memory_space=pltpu.MemorySpace.VMEM),
        scratch_shapes=[pltpu.VMEM((n, h + 2, w + 2, c0p), jnp.float32)],
        compiler_params=pltpu.CompilerParams(
            vmem_limit_bytes=32 * 1024 * 1024),
        cost_estimate=pl.CostEstimate(
            flops=int(flops), transcendentals=3 * _LANE,
            bytes_accessed=int(bytes_accessed)),
    )(*args)

    return out2d[:, :c_out].reshape(n, h, w, c_out)


def bottleneck_forward(x_nchw, params, stride=1):
    # Public API matches the PyTorch module's NCHW layout.
    out = bottleneck_forward_nhwc(jnp.transpose(x_nchw, (0, 2, 3, 1)),
                                  params, stride=stride)
    return jnp.transpose(out, (0, 3, 1, 2))          # NHWC -> NCHW


if __name__ == "__main__":
    key = jax.random.PRNGKey(0)
    kp, kx = jax.random.split(key)

    inplanes, planes, cfg, stride = 16, 4, (8, 8), 1      # planes*4 == inplanes
    params = init_bottleneck_params(kp, inplanes, planes, cfg)

    x = jax.random.normal(kx, (2, inplanes, 16, 16), jnp.float32)   # NCHW

    out = jax.jit(lambda xx: bottleneck_forward(xx, params, stride=stride))(x)
    jax.block_until_ready(out)

    assert out.shape == (2, planes * 4, 16, 16), out.shape
    assert bool(jnp.all(out >= 0.0))      # final ReLU
    print("KERNEL_OK")
</pallas_src>

<mosaic_0001>
module attributes {stable_mosaic.version = 11 : i64} {
  func.func @_bottleneck_fused_kernel(%arg0: memref<512x128xf32, #tpu.memory_space<vmem>>, %arg1: memref<128x128xbf16, #tpu.memory_space<vmem>>, %arg2: memref<9x128x128xbf16, #tpu.memory_space<vmem>>, %arg3: memref<128x128xbf16, #tpu.memory_space<vmem>>, %arg4: memref<1x128xf32, #tpu.memory_space<vmem>>, %arg5: memref<1x128xf32, #tpu.memory_space<vmem>>, %arg6: memref<1x128xf32, #tpu.memory_space<vmem>>, %arg7: memref<1x128xf32, #tpu.memory_space<vmem>>, %arg8: memref<1x128xf32, #tpu.memory_space<vmem>>, %arg9: memref<1x128xf32, #tpu.memory_space<vmem>>, %arg10: memref<512x128xf32, #tpu.memory_space<vmem>>, %arg11: memref<2x18x18x128xf32, #tpu.memory_space<vmem>>) attributes {dimension_semantics = [], scalar_prefetch = 0 : i64, scratch_operands = 1 : i64, tpu.core_type = #tpu.core_type<tc>} {
    %c0 = arith.constant 0 : index
    %c0_0 = arith.constant 0 : index
    %0 = vector.load %arg0[%c0, %c0_0] : memref<512x128xf32, #tpu.memory_space<vmem>>, vector<512x128xf32>
    %1 = arith.truncf %0 : vector<512x128xf32> to vector<512x128xbf16>
    %c0_1 = arith.constant 0 : index
    %c0_2 = arith.constant 0 : index
    %2 = vector.load %arg1[%c0_1, %c0_2] : memref<128x128xbf16, #tpu.memory_space<vmem>>, vector<128x128xbf16>
    %cst = arith.constant dense<0.000000e+00> : vector<512x128xf32>
    %3 = tpu.matmul %1, %2, %cst {dimension_numbers = #tpu.dot_dimension_numbers<[1], [0], [0], [1], [0, 0, 1, 1], [], []>} : vector<512x128xbf16>, vector<128x128xbf16>, vector<512x128xf32> -> vector<512x128xf32>
    %c0_3 = arith.constant 0 : index
    %c0_4 = arith.constant 0 : index
    %4 = vector.load %arg4[%c0_3, %c0_4] : memref<1x128xf32, #tpu.memory_space<vmem>>, vector<1x128xf32>
    %c0_5 = arith.constant 0 : index
    %c0_6 = arith.constant 0 : index
    %5 = vector.load %arg5[%c0_5, %c0_6] : memref<1x128xf32, #tpu.memory_space<vmem>>, vector<1x128xf32>
    %cst_7 = arith.constant dense<0.000000e+00> : vector<128xf32>
    %6 = vector.multi_reduction <add>, %3, %cst_7 [0] : vector<512x128xf32> to vector<128xf32>
    %7 = vector.shape_cast %6 : vector<128xf32> to vector<1x128xf32>
    %cst_8 = arith.constant 0.001953125 : f32
    %8 = vector.broadcast %cst_8 : f32 to vector<1x128xf32>
    %9 = arith.mulf %7, %8 : vector<1x128xf32>
    %10 = vector.broadcast %9 : vector<1x128xf32> to vector<512x128xf32>
    %11 = arith.subf %3, %10 : vector<512x128xf32>
    %12 = arith.mulf %11, %11 : vector<512x128xf32>
    %cst_9 = arith.constant dense<0.000000e+00> : vector<128xf32>
    %13 = vector.multi_reduction <add>, %12, %cst_9 [0] : vector<512x128xf32> to vector<128xf32>
    %14 = vector.shape_cast %13 : vector<128xf32> to vector<1x128xf32>
    %cst_10 = arith.constant 0.001953125 : f32
    %15 = vector.broadcast %cst_10 : f32 to vector<1x128xf32>
    %16 = arith.mulf %14, %15 : vector<1x128xf32>
    %cst_11 = arith.constant 9.99999974E-6 : f32
    %17 = vector.broadcast %cst_11 : f32 to vector<1x128xf32>
    %18 = arith.addf %16, %17 : vector<1x128xf32>
    %19 = math.rsqrt %18 : vector<1x128xf32>
    %20 = vector.broadcast %19 : vector<1x128xf32> to vector<512x128xf32>
    %21 = arith.mulf %11, %20 : vector<512x128xf32>
    %22 = vector.broadcast %4 : vector<1x128xf32> to vector<512x128xf32>
    %23 = arith.mulf %21, %22 : vector<512x128xf32>
    %24 = vector.broadcast %5 : vector<1x128xf32> to vector<512x128xf32>
    %25 = arith.addf %23, %24 : vector<512x128xf32>
    %cst_12 = arith.constant 0.000000e+00 : f32
    %26 = vector.broadcast %cst_12 : f32 to vector<512x128xf32>
    %27 = arith.maximumf %25, %26 : vector<512x128xf32>
    %cst_13 = arith.constant 0.000000e+00 : f32
    %28 = vector.broadcast %cst_13 : f32 to vector<2x1x18x128xf32>
    %c0_14 = arith.constant 0 : index
    %c0_15 = arith.constant 0 : index
    %c0_16 = arith.constant 0 : index
    %c0_17 = arith.constant 0 : index
    %29 = vector.load %arg11[%c0_14, %c0_15, %c0_16, %c0_17] : memref<2x18x18x128xf32, #tpu.memory_space<vmem>>, vector<2x1x18x128xf32>
    tpu.vector_store %arg11[%c0_14, %c0_15, %c0_16, %c0_17], %28 {strides = array<i32>} : memref<2x18x18x128xf32, #tpu.memory_space<vmem>>, vector<2x1x18x128xf32>,
    %cst_18 = arith.constant 0.000000e+00 : f32
    %30 = vector.broadcast %cst_18 : f32 to vector<2x1x18x128xf32>
    %c0_19 = arith.constant 0 : index
    %c17 = arith.constant 17 : index
    %c0_20 = arith.constant 0 : index
    %c0_21 = arith.constant 0 : index
    %31 = vector.load %arg11[%c0_19, %c17, %c0_20, %c0_21] : memref<2x18x18x128xf32, #tpu.memory_space<vmem>>, vector<2x1x18x128xf32>
    tpu.vector_store %arg11[%c0_19, %c17, %c0_20, %c0_21], %30 {strides = array<i32>} : memref<2x18x18x128xf32, #tpu.memory_space<vmem>>, vector<2x1x18x128xf32>,
    %cst_22 = arith.constant 0.000000e+00 : f32
    %32 = vector.broadcast %cst_22 : f32 to vector<2x18x1x128xf32>
    %c0_23 = arith.constant 0 : index
    %c0_24 = arith.constant 0 : index
    %c0_25 = arith.constant 0 : index
    %c0_26 = arith.constant 0 : index
    %33 = vector.load %arg11[%c0_23, %c0_24, %c0_25, %c0_26] : memref<2x18x18x128xf32, #tpu.memory_space<vmem>>, vector<2x18x1x128xf32>
    tpu.vector_store %arg11[%c0_23, %c0_24, %c0_25, %c0_26], %32 {strides = array<i32>} : memref<2x18x18x128xf32, #tpu.memory_space<vmem>>, vector<2x18x1x128xf32>,
    %cst_27 = arith.constant 0.000000e+00 : f32
    %34 = vector.broadcast %cst_27 : f32 to vector<2x18x1x128xf32>
    %c0_28 = arith.constant 0 : index
    %c0_29 = arith.constant 0 : index
    %c17_30 = arith.constant 17 : index
    %c0_31 = arith.constant 0 : index
    %35 = vector.load %arg11[%c0_28, %c0_29, %c17_30, %c0_31] : memref<2x18x18x128xf32, #tpu.memory_space<vmem>>, vector<2x18x1x128xf32>
    tpu.vector_store %arg11[%c0_28, %c0_29, %c17_30, %c0_31], %34 {strides = array<i32>} : memref<2x18x18x128xf32, #tpu.memory_space<vmem>>, vector<2x18x1x128xf32>,
    %36 = vector.shape_cast %27 : vector<512x128xf32> to vector<2x16x16x128xf32>
    %c0_32 = arith.constant 0 : index
    %c1 = arith.constant 1 : index
    %c1_33 = arith.constant 1 : index
    %c0_34 = arith.constant 0 : index
    %37 = vector.load %arg11[%c0_32, %c1, %c1_33, %c0_34] : memref<2x18x18x128xf32, #tpu.memory_space<vmem>>, vector<2x16x16x128xf32>
    tpu.vector_store %arg11[%c0_32, %c1, %c1_33, %c0_34], %36 {strides = array<i32>} : memref<2x18x18x128xf32, #tpu.memory_space<vmem>>, vector<2x16x16x128xf32>,
    %c0_35 = arith.constant 0 : index
    %c0_36 = arith.constant 0 : index
    %c0_37 = arith.constant 0 : index
    %c0_38 = arith.constant 0 : index
    %38 = vector.load %arg11[%c0_35, %c0_36, %c0_37, %c0_38] : memref<2x18x18x128xf32, #tpu.memory_space<vmem>>, vector<2x18x18x128xf32>
    %39 = vector.extract_strided_slice %38 {offsets = [0, 0, 0, 0], sizes = [2, 16, 16, 128], strides = [1, 1, 1, 1]} : vector<2x18x18x128xf32> to vector<2x16x16x128xf32>
    %40 = vector.shape_cast %39 : vector<2x16x16x128xf32> to vector<512x128xf32>
    %41 = arith.truncf %40 : vector<512x128xf32> to vector<512x128xbf16>
    %c0_39 = arith.constant 0 : index
    %c0_40 = arith.constant 0 : index
    %c0_41 = arith.constant 0 : index
    %42 = vector.load %arg2[%c0_39, %c0_40, %c0_41] : memref<9x128x128xbf16, #tpu.memory_space<vmem>>, vector<1x128x128xbf16>
    %43 = vector.shape_cast %42 : vector<1x128x128xbf16> to vector<128x128xbf16>
    %cst_42 = arith.constant dense<0.000000e+00> : vector<512x128xf32>
    %44 = tpu.matmul %41, %43, %cst_42 {dimension_numbers = #tpu.dot_dimension_numbers<[1], [0], [0], [1], [0, 0, 1, 1], [], []>} : vector<512x128xbf16>, vector<128x128xbf16>, vector<512x128xf32> -> vector<512x128xf32>
    %45 = vector.extract_strided_slice %38 {offsets = [0, 0, 1, 0], sizes = [2, 16, 16, 128], strides = [1, 1, 1, 1]} : vector<2x18x18x128xf32> to vector<2x16x16x128xf32>
    %46 = vector.shape_cast %45 : vector<2x16x16x128xf32> to vector<512x128xf32>
    %47 = arith.truncf %46 : vector<512x128xf32> to vector<512x128xbf16>
    %c1_43 = arith.constant 1 : index
    %c0_44 = arith.constant 0 : index
    %c0_45 = arith.constant 0 : index
    %48 = vector.load %arg2[%c1_43, %c0_44, %c0_45] : memref<9x128x128xbf16, #tpu.memory_space<vmem>>, vector<1x128x128xbf16>
    %49 = vector.shape_cast %48 : vector<1x128x128xbf16> to vector<128x128xbf16>
    %cst_46 = arith.constant dense<0.000000e+00> : vector<512x128xf32>
    %50 = tpu.matmul %47, %49, %cst_46 {dimension_numbers = #tpu.dot_dimension_numbers<[1], [0], [0], [1], [0, 0, 1, 1], [], []>} : vector<512x128xbf16>, vector<128x128xbf16>, vector<512x128xf32> -> vector<512x128xf32>
    %51 = arith.addf %44, %50 : vector<512x128xf32>
    %52 = vector.extract_strided_slice %38 {offsets = [0, 0, 2, 0], sizes = [2, 16, 16, 128], strides = [1, 1, 1, 1]} : vector<2x18x18x128xf32> to vector<2x16x16x128xf32>
    %53 = vector.shape_cast %52 : vector<2x16x16x128xf32> to vector<512x128xf32>
    %54 = arith.truncf %53 : vector<512x128xf32> to vector<512x128xbf16>
    %c2 = arith.constant 2 : index
    %c0_47 = arith.constant 0 : index
    %c0_48 = arith.constant 0 : index
    %55 = vector.load %arg2[%c2, %c0_47, %c0_48] : memref<9x128x128xbf16, #tpu.memory_space<vmem>>, vector<1x128x128xbf16>
    %56 = vector.shape_cast %55 : vector<1x128x128xbf16> to vector<128x128xbf16>
    %cst_49 = arith.constant dense<0.000000e+00> : vector<512x128xf32>
    %57 = tpu.matmul %54, %56, %cst_49 {dimension_numbers = #tpu.dot_dimension_numbers<[1], [0], [0], [1], [0, 0, 1, 1], [], []>} : vector<512x128xbf16>, vector<128x128xbf16>, vector<512x128xf32> -> vector<512x128xf32>
    %58 = arith.addf %51, %57 : vector<512x128xf32>
    %59 = vector.extract_strided_slice %38 {offsets = [0, 1, 0, 0], sizes = [2, 16, 16, 128], strides = [1, 1, 1, 1]} : vector<2x18x18x128xf32> to vector<2x16x16x128xf32>
    %60 = vector.shape_cast %59 : vector<2x16x16x128xf32> to vector<512x128xf32>
    %61 = arith.truncf %60 : vector<512x128xf32> to vector<512x128xbf16>
    %c3 = arith.constant 3 : index
    %c0_50 = arith.constant 0 : index
    %c0_51 = arith.constant 0 : index
    %62 = vector.load %arg2[%c3, %c0_50, %c0_51] : memref<9x128x128xbf16, #tpu.memory_space<vmem>>, vector<1x128x128xbf16>
    %63 = vector.shape_cast %62 : vector<1x128x128xbf16> to vector<128x128xbf16>
    %cst_52 = arith.constant dense<0.000000e+00> : vector<512x128xf32>
    %64 = tpu.matmul %61, %63, %cst_52 {dimension_numbers = #tpu.dot_dimension_numbers<[1], [0], [0], [1], [0, 0, 1, 1], [], []>} : vector<512x128xbf16>, vector<128x128xbf16>, vector<512x128xf32> -> vector<512x128xf32>
    %65 = arith.addf %58, %64 : vector<512x128xf32>
    %66 = vector.extract_strided_slice %38 {offsets = [0, 1, 1, 0], sizes = [2, 16, 16, 128], strides = [1, 1, 1, 1]} : vector<2x18x18x128xf32> to vector<2x16x16x128xf32>
    %67 = vector.shape_cast %66 : vector<2x16x16x128xf32> to vector<512x128xf32>
    %68 = arith.truncf %67 : vector<512x128xf32> to vector<512x128xbf16>
    %c4 = arith.constant 4 : index
    %c0_53 = arith.constant 0 : index
    %c0_54 = arith.constant 0 : index
    %69 = vector.load %arg2[%c4, %c0_53, %c0_54] : memref<9x128x128xbf16, #tpu.memory_space<vmem>>, vector<1x128x128xbf16>
    %70 = vector.shape_cast %69 : vector<1x128x128xbf16> to vector<128x128xbf16>
    %cst_55 = arith.constant dense<0.000000e+00> : vector<512x128xf32>
    %71 = tpu.matmul %68, %70, %cst_55 {dimension_numbers = #tpu.dot_dimension_numbers<[1], [0], [0], [1], [0, 0, 1, 1], [], []>} : vector<512x128xbf16>, vector<128x128xbf16>, vector<512x128xf32> -> vector<512x128xf32>
    %72 = arith.addf %65, %71 : vector<512x128xf32>
    %73 = vector.extract_strided_slice %38 {offsets = [0, 1, 2, 0], sizes = [2, 16, 16, 128], strides = [1, 1, 1, 1]} : vector<2x18x18x128xf32> to vector<2x16x16x128xf32>
    %74 = vector.shape_cast %73 : vector<2x16x16x128xf32> to vector<512x128xf32>
    %75 = arith.truncf %74 : vector<512x128xf32> to vector<512x128xbf16>
    %c5 = arith.constant 5 : index
    %c0_56 = arith.constant 0 : index
    %c0_57 = arith.constant 0 : index
    %76 = vector.load %arg2[%c5, %c0_56, %c0_57] : memref<9x128x128xbf16, #tpu.memory_space<vmem>>, vector<1x128x128xbf16>
    %77 = vector.shape_cast %76 : vector<1x128x128xbf16> to vector<128x128xbf16>
    %cst_58 = arith.constant dense<0.000000e+00> : vector<512x128xf32>
    %78 = tpu.matmul %75, %77, %cst_58 {dimension_numbers = #tpu.dot_dimension_numbers<[1], [0], [0], [1], [0, 0, 1, 1], [], []>} : vector<512x128xbf16>, vector<128x128xbf16>, vector<512x128xf32> -> vector<512x128xf32>
    %79 = arith.addf %72, %78 : vector<512x128xf32>
    %80 = vector.extract_strided_slice %38 {offsets = [0, 2, 0, 0], sizes = [2, 16, 16, 128], strides = [1, 1, 1, 1]} : vector<2x18x18x128xf32> to vector<2x16x16x128xf32>
    %81 = vector.shape_cast %80 : vector<2x16x16x128xf32> to vector<512x128xf32>
    %82 = arith.truncf %81 : vector<512x128xf32> to vector<512x128xbf16>
    %c6 = arith.constant 6 : index
    %c0_59 = arith.constant 0 : index
    %c0_60 = arith.constant 0 : index
    %83 = vector.load %arg2[%c6, %c0_59, %c0_60] : memref<9x128x128xbf16, #tpu.memory_space<vmem>>, vector<1x128x128xbf16>
    %84 = vector.shape_cast %83 : vector<1x128x128xbf16> to vector<128x128xbf16>
    %cst_61 = arith.constant dense<0.000000e+00> : vector<512x128xf32>
    %85 = tpu.matmul %82, %84, %cst_61 {dimension_numbers = #tpu.dot_dimension_numbers<[1], [0], [0], [1], [0, 0, 1, 1], [], []>} : vector<512x128xbf16>, vector<128x128xbf16>, vector<512x128xf32> -> vector<512x128xf32>
    %86 = arith.addf %79, %85 : vector<512x128xf32>
    %87 = vector.extract_strided_slice %38 {offsets = [0, 2, 1, 0], sizes = [2, 16, 16, 128], strides = [1, 1, 1, 1]} : vector<2x18x18x128xf32> to vector<2x16x16x128xf32>
    %88 = vector.shape_cast %87 : vector<2x16x16x128xf32> to vector<512x128xf32>
    %89 = arith.truncf %88 : vector<512x128xf32> to vector<512x128xbf16>
    %c7 = arith.constant 7 : index
    %c0_62 = arith.constant 0 : index
    %c0_63 = arith.constant 0 : index
    %90 = vector.load %arg2[%c7, %c0_62, %c0_63] : memref<9x128x128xbf16, #tpu.memory_space<vmem>>, vector<1x128x128xbf16>
    %91 = vector.shape_cast %90 : vector<1x128x128xbf16> to vector<128x128xbf16>
    %cst_64 = arith.constant dense<0.000000e+00> : vector<512x128xf32>
    %92 = tpu.matmul %89, %91, %cst_64 {dimension_numbers = #tpu.dot_dimension_numbers<[1], [0], [0], [1], [0, 0, 1, 1], [], []>} : vector<512x128xbf16>, vector<128x128xbf16>, vector<512x128xf32> -> vector<512x128xf32>
    %93 = arith.addf %86, %92 : vector<512x128xf32>
    %94 = vector.extract_strided_slice %38 {offsets = [0, 2, 2, 0], sizes = [2, 16, 16, 128], strides = [1, 1, 1, 1]} : vector<2x18x18x128xf32> to vector<2x16x16x128xf32>
    %95 = vector.shape_cast %94 : vector<2x16x16x128xf32> to vector<512x128xf32>
    %96 = arith.truncf %95 : vector<512x128xf32> to vector<512x128xbf16>
    %c8 = arith.constant 8 : index
    %c0_65 = arith.constant 0 : index
    %c0_66 = arith.constant 0 : index
    %97 = vector.load %arg2[%c8, %c0_65, %c0_66] : memref<9x128x128xbf16, #tpu.memory_space<vmem>>, vector<1x128x128xbf16>
    %98 = vector.shape_cast %97 : vector<1x128x128xbf16> to vector<128x128xbf16>
    %cst_67 = arith.constant dense<0.000000e+00> : vector<512x128xf32>
    %99 = tpu.matmul %96, %98, %cst_67 {dimension_numbers = #tpu.dot_dimension_numbers<[1], [0], [0], [1], [0, 0, 1, 1], [], []>} : vector<512x128xbf16>, vector<128x128xbf16>, vector<512x128xf32> -> vector<512x128xf32>
    %100 = arith.addf %93, %99 : vector<512x128xf32>
    %c0_68 = arith.constant 0 : index
    %c0_69 = arith.constant 0 : index
    %101 = vector.load %arg6[%c0_68, %c0_69] : memref<1x128xf32, #tpu.memory_space<vmem>>, vector<1x128xf32>
    %c0_70 = arith.constant 0 : index
    %c0_71 = arith.constant 0 : index
    %102 = vector.load %arg7[%c0_70, %c0_71] : memref<1x128xf32, #tpu.memory_space<vmem>>, vector<1x128xf32>
    %cst_72 = arith.constant dense<0.000000e+00> : vector<128xf32>
    %103 = vector.multi_reduction <add>, %100, %cst_72 [0] : vector<512x128xf32> to vector<128xf32>
    %104 = vector.shape_cast %103 : vector<128xf32> to vector<1x128xf32>
    %cst_73 = arith.constant 0.001953125 : f32
    %105 = vector.broadcast %cst_73 : f32 to vector<1x128xf32>
    %106 = arith.mulf %104, %105 : vector<1x128xf32>
    %107 = vector.broadcast %106 : vector<1x128xf32> to vector<512x128xf32>
    %108 = arith.subf %100, %107 : vector<512x128xf32>
    %109 = arith.mulf %108, %108 : vector<512x128xf32>
    %cst_74 = arith.constant dense<0.000000e+00> : vector<128xf32>
    %110 = vector.multi_reduction <add>, %109, %cst_74 [0] : vector<512x128xf32> to vector<128xf32>
    %111 = vector.shape_cast %110 : vector<128xf32> to vector<1x128xf32>
    %cst_75 = arith.constant 0.001953125 : f32
    %112 = vector.broadcast %cst_75 : f32 to vector<1x128xf32>
    %113 = arith.mulf %111, %112 : vector<1x128xf32>
    %cst_76 = arith.constant 9.99999974E-6 : f32
    %114 = vector.broadcast %cst_76 : f32 to vector<1x128xf32>
    %115 = arith.addf %113, %114 : vector<1x128xf32>
    %116 = math.rsqrt %115 : vector<1x128xf32>
    %117 = vector.broadcast %116 : vector<1x128xf32> to vector<512x128xf32>
    %118 = arith.mulf %108, %117 : vector<512x128xf32>
    %119 = vector.broadcast %101 : vector<1x128xf32> to vector<512x128xf32>
    %120 = arith.mulf %118, %119 : vector<512x128xf32>
    %121 = vector.broadcast %102 : vector<1x128xf32> to vector<512x128xf32>
    %122 = arith.addf %120, %121 : vector<512x128xf32>
    %cst_77 = arith.constant 0.000000e+00 : f32
    %123 = vector.broadcast %cst_77 : f32 to vector<512x128xf32>
    %124 = arith.maximumf %122, %123 : vector<512x128xf32>
    %125 = arith.truncf %124 : vector<512x128xf32> to vector<512x128xbf16>
    %c0_78 = arith.constant 0 : index
    %c0_79 = arith.constant 0 : index
    %126 = vector.load %arg3[%c0_78, %c0_79] : memref<128x128xbf16, #tpu.memory_space<vmem>>, vector<128x128xbf16>
    %cst_80 = arith.constant dense<0.000000e+00> : vector<512x128xf32>
    %127 = tpu.matmul %125, %126, %cst_80 {dimension_numbers = #tpu.dot_dimension_numbers<[1], [0], [0], [1], [0, 0, 1, 1], [], []>} : vector<512x128xbf16>, vector<128x128xbf16>, vector<512x128xf32> -> vector<512x128xf32>
    %c0_81 = arith.constant 0 : index
    %c0_82 = arith.constant 0 : index
    %128 = vector.load %arg8[%c0_81, %c0_82] : memref<1x128xf32, #tpu.memory_space<vmem>>, vector<1x128xf32>
    %c0_83 = arith.constant 0 : index
    %c0_84 = arith.constant 0 : index
    %129 = vector.load %arg9[%c0_83, %c0_84] : memref<1x128xf32, #tpu.memory_space<vmem>>, vector<1x128xf32>
    %cst_85 = arith.constant dense<0.000000e+00> : vector<128xf32>
    %130 = vector.multi_reduction <add>, %127, %cst_85 [0] : vector<512x128xf32> to vector<128xf32>
    %131 = vector.shape_cast %130 : vector<128xf32> to vector<1x128xf32>
    %cst_86 = arith.constant 0.001953125 : f32
    %132 = vector.broadcast %cst_86 : f32 to vector<1x128xf32>
    %133 = arith.mulf %131, %132 : vector<1x128xf32>
    %134 = vector.broadcast %133 : vector<1x128xf32> to vector<512x128xf32>
    %135 = arith.subf %127, %134 : vector<512x128xf32>
    %136 = arith.mulf %135, %135 : vector<512x128xf32>
    %cst_87 = arith.constant dense<0.000000e+00> : vector<128xf32>
    %137 = vector.multi_reduction <add>, %136, %cst_87 [0] : vector<512x128xf32> to vector<128xf32>
    %138 = vector.shape_cast %137 : vector<128xf32> to vector<1x128xf32>
    %cst_88 = arith.constant 0.001953125 : f32
    %139 = vector.broadcast %cst_88 : f32 to vector<1x128xf32>
    %140 = arith.mulf %138, %139 : vector<1x128xf32>
    %cst_89 = arith.constant 9.99999974E-6 : f32
    %141 = vector.broadcast %cst_89 : f32 to vector<1x128xf32>
    %142 = arith.addf %140, %141 : vector<1x128xf32>
    %143 = math.rsqrt %142 : vector<1x128xf32>
    %144 = vector.broadcast %143 : vector<1x128xf32> to vector<512x128xf32>
    %145 = arith.mulf %135, %144 : vector<512x128xf32>
    %146 = vector.broadcast %128 : vector<1x128xf32> to vector<512x128xf32>
    %147 = arith.mulf %145, %146 : vector<512x128xf32>
    %148 = vector.broadcast %129 : vector<1x128xf32> to vector<512x128xf32>
    %149 = arith.addf %147, %148 : vector<512x128xf32>
    %c0_90 = arith.constant 0 : index
    %c0_91 = arith.constant 0 : index
    %150 = vector.load %arg0[%c0_90, %c0_91] : memref<512x128xf32, #tpu.memory_space<vmem>>, vector<512x128xf32>
    %151 = arith.addf %149, %150 : vector<512x128xf32>
    %cst_92 = arith.constant 0.000000e+00 : f32
    %152 = vector.broadcast %cst_92 : f32 to vector<512x128xf32>
    %153 = arith.maximumf %151, %152 : vector<512x128xf32>
    %c0_93 = arith.constant 0 : index
    %c0_94 = arith.constant 0 : index
    %154 = vector.load %arg10[%c0_93, %c0_94] : memref<512x128xf32, #tpu.memory_space<vmem>>, vector<512x128xf32>
    tpu.vector_store %arg10[%c0_93, %c0_94], %153 {strides = array<i32>} : memref<512x128xf32, #tpu.memory_space<vmem>>, vector<512x128xf32>,
    return
  }
}

</mosaic_0001>

<llo_original>
// kernel: _lambda_.1
$region0: #{_lambda_.1}
  #allocation0 [shape = 'u32[]', space=smem, size = 0x4, offset = 0x4, fixed_abs, tag = 'smem constant byte address 0x4 - core index']
  #allocation1 [shape = 'u32[72,128]{1,0:T(1,128)}', space=vmem, size = 0x9000, scoped, tag = 'internal scratch']
  #allocation2 [shape = 'f32[2,18,18,128]{3,2,1,0:T(8,128)}', space=vmem, size = 0x6c000, scoped, tag = 'scratch operand']
  %s0 = inlined_call_operand.vmem [shape: f32[512,128], index: 0, kind: input, shape index: {}]
  %s1 = inlined_call_operand.vmem [shape: bf16[128,128], index: 1, kind: input, shape index: {}]
  %s2 = inlined_call_operand.vmem [shape: bf16[9,128,128], index: 2, kind: input, shape index: {}]
  %s3 = inlined_call_operand.vmem [shape: bf16[128,128], index: 3, kind: input, shape index: {}]
  %s4 = inlined_call_operand.vmem [shape: f32[1,128], index: 4, kind: input, shape index: {}]
  %s5 = inlined_call_operand.vmem [shape: f32[1,128], index: 5, kind: input, shape index: {}]
  %s6 = inlined_call_operand.vmem [shape: f32[1,128], index: 6, kind: input, shape index: {}]
  %s7 = inlined_call_operand.vmem [shape: f32[1,128], index: 7, kind: input, shape index: {}]
  %s8 = inlined_call_operand.vmem [shape: f32[1,128], index: 8, kind: input, shape index: {}]
  %s9 = inlined_call_operand.vmem [shape: f32[1,128], index: 9, kind: input, shape index: {}]
  %s10 = inlined_call_operand.vmem [shape: f32[512,128], index: 10, kind: output, shape index: {}]
  %s11 = sld [smem:[#allocation0]]
  $region50: #{_lambda_.1} parent=0
    _
  %s13 = ssub.s32 1, %s11
  %s14 = scalar_select 0, %s13, %s11
  // Predicated region
  $region2: #{_lambda_.1} parent=0 // pred_check
    _
  $region3: #{_lambda_.1} parent=0 // pred_check_branch
    %16 = sbr.rel (0) target = $region5
  $region4: #{_lambda_.1} parent=0 // pred_region
    _
  $region5: #{_lambda_.1} parent=0 // pred_fallthru
    _
  // Predicated region
  $region6: #{_lambda_.1} parent=0 // pred_check
    _
  $region7: #{_lambda_.1} parent=0 // pred_check_branch
    %18 = sbr.rel (0) target = $region9
  $region8: #{_lambda_.1} parent=0 // pred_region
    _
  $region9: #{_lambda_.1} parent=0 // pred_fallthru
    _
  // Predicated region
  $region10: #{_lambda_.1} parent=0 // pred_check
    _
  $region11: #{_lambda_.1} parent=0 // pred_check_branch
    %20 = sbr.rel (0) target = $region13
  $region12: #{_lambda_.1} parent=0 // pred_region
    _
  $region13: #{_lambda_.1} parent=0 // pred_fallthru
    _
  // Predicated region
  $region14: #{_lambda_.1} parent=0 // pred_check
    _
  $region15: #{_lambda_.1} parent=0 // pred_check_branch
    %22 = sbr.rel (0) target = $region17
  $region16: #{_lambda_.1} parent=0 // pred_region
    _
  $region17: #{_lambda_.1} parent=0 // pred_fallthru
    _
  // Predicated region
  $region18: #{_lambda_.1} parent=0 // pred_check
    _
  $region19: #{_lambda_.1} parent=0 // pred_check_branch
    %24 = sbr.rel (0) target = $region21
  $region20: #{_lambda_.1} parent=0 // pred_region
    _
  $region21: #{_lambda_.1} parent=0 // pred_fallthru
    _
  // Predicated region
  $region22: #{_lambda_.1} parent=0 // pred_check
    _
  $region23: #{_lambda_.1} parent=0 // pred_check_branch
    %26 = sbr.rel (0) target = $region25
  $region24: #{_lambda_.1} parent=0 // pred_region
    _
  $region25: #{_lambda_.1} parent=0 // pred_fallthru
    _
  // Predicated region
  $region26: #{_lambda_.1} parent=0 // pred_check
    _
  $region27: #{_lambda_.1} parent=0 // pred_check_branch
    %28 = sbr.rel (0) target = $region29
  $region28: #{_lambda_.1} parent=0 // pred_region
    _
  $region29: #{_lambda_.1} parent=0 // pred_fallthru
    _
  // Predicated region
  $region30: #{_lambda_.1} parent=0 // pred_check
    _
  $region31: #{_lambda_.1} parent=0 // pred_check_branch
    %30 = sbr.rel (0) target = $region33
  $region32: #{_lambda_.1} parent=0 // pred_region
    _
  $region33: #{_lambda_.1} parent=0 // pred_fallthru
    _
  // Predicated region
  $region34: #{_lambda_.1} parent=0 // pred_check
    _
  $region35: #{_lambda_.1} parent=0 // pred_check_branch
    %32 = sbr.rel (0) target = $region37
  $region36: #{_lambda_.1} parent=0 // pred_region
    _
  $region37: #{_lambda_.1} parent=0 // pred_fallthru
    _
  // Predicated region
  $region38: #{_lambda_.1} parent=0 // pred_check
    _
  $region39: #{_lambda_.1} parent=0 // pred_check_branch
    %34 = sbr.rel (0) target = $region41
  $region40: #{_lambda_.1} parent=0 // pred_region
    _
  $region41: #{_lambda_.1} parent=0 // pred_fallthru
    _
  %v35 = vld [vmem:[%s0] sm:$0xff]
  %v36 = vld [vmem:[%s0 + $0x8] sm:$0xff]
  %v37 = vld [vmem:[%s0 + $0x10] sm:$0xff]
  %v38 = vld [vmem:[%s0 + $0x18] sm:$0xff]
  %v39 = vld [vmem:[%s0 + $0x20] sm:$0xff]
  %v40 = vld [vmem:[%s0 + $0x28] sm:$0xff]
  %v41 = vld [vmem:[%s0 + $0x30] sm:$0xff]
  %v42 = vld [vmem:[%s0 + $0x38] sm:$0xff]
  %v43 = vld [vmem:[%s0 + $0x40] sm:$0xff]
  %v44 = vld [vmem:[%s0 + $0x48] sm:$0xff]
  %v45 = vld [vmem:[%s0 + $0x50] sm:$0xff]
  %v46 = vld [vmem:[%s0 + $0x58] sm:$0xff]
  %v47 = vld [vmem:[%s0 + $0x60] sm:$0xff]
  %v48 = vld [vmem:[%s0 + $0x68] sm:$0xff]
  %v49 = vld [vmem:[%s0 + $0x70] sm:$0xff]
  %v50 = vld [vmem:[%s0 + $0x78] sm:$0xff]
  %v51 = vld [vmem:[%s0 + $0x80] sm:$0xff]
  %v52 = vld [vmem:[%s0 + $0x88] sm:$0xff]
  %v53 = vld [vmem:[%s0 + $0x90] sm:$0xff]
  %v54 = vld [vmem:[%s0 + $0x98] sm:$0xff]
  %v55 = vld [vmem:[%s0 + $0xa0] sm:$0xff]
  %v56 = vld [vmem:[%s0 + $0xa8] sm:$0xff]
  %v57 = vld [vmem:[%s0 + $0xb0] sm:$0xff]
  %v58 = vld [vmem:[%s0 + $0xb8] sm:$0xff]
  %v59 = vld [vmem:[%s0 + $0xc0] sm:$0xff]
  %v60 = vld [vmem:[%s0 + $0xc8] sm:$0xff]
  %v61 = vld [vmem:[%s0 + $0xd0] sm:$0xff]
  %v62 = vld [vmem:[%s0 + $0xd8] sm:$0xff]
  %v63 = vld [vmem:[%s0 + $0xe0] sm:$0xff]
  %v64 = vld [vmem:[%s0 + $0xe8] sm:$0xff]
  %v65 = vld [vmem:[%s0 + $0xf0] sm:$0xff]
  %v66 = vld [vmem:[%s0 + $0xf8] sm:$0xff]
  %v67 = vld [vmem:[%s0 + $0x100] sm:$0xff]
  %v68 = vld [vmem:[%s0 + $0x108] sm:$0xff]
  %v69 = vld [vmem:[%s0 + $0x110] sm:$0xff]
  %v70 = vld [vmem:[%s0 + $0x118] sm:$0xff]
  %v71 = vld [vmem:[%s0 + $0x120] sm:$0xff]
  %v72 = vld [vmem:[%s0 + $0x128] sm:$0xff]
  %v73 = vld [vmem:[%s0 + $0x130] sm:$0xff]
  %v74 = vld [vmem:[%s0 + $0x138] sm:$0xff]
  %v75 = vld [vmem:[%s0 + $0x140] sm:$0xff]
  %v76 = vld [vmem:[%s0 + $0x148] sm:$0xff]
  %v77 = vld [vmem:[%s0 + $0x150] sm:$0xff]
  %v78 = vld [vmem:[%s0 + $0x158] sm:$0xff]
  %v79 = vld [vmem:[%s0 + $0x160] sm:$0xff]
  %v80 = vld [vmem:[%s0 + $0x168] sm:$0xff]
  %v81 = vld [vmem:[%s0 + $0x170] sm:$0xff]
  %v82 = vld [vmem:[%s0 + $0x178] sm:$0xff]
  %v83 = vld [vmem:[%s0 + $0x180] sm:$0xff]
  %v84 = vld [vmem:[%s0 + $0x188] sm:$0xff]
  %v85 = vld [vmem:[%s0 + $0x190] sm:$0xff]
  %v86 = vld [vmem:[%s0 + $0x198] sm:$0xff]
  %v87 = vld [vmem:[%s0 + $0x1a0] sm:$0xff]
  %v88 = vld [vmem:[%s0 + $0x1a8] sm:$0xff]
  %v89 = vld [vmem:[%s0 + $0x1b0] sm:$0xff]
  %v90 = vld [vmem:[%s0 + $0x1b8] sm:$0xff]
  %v91 = vld [vmem:[%s0 + $0x1c0] sm:$0xff]
  %v92 = vld [vmem:[%s0 + $0x1c8] sm:$0xff]
  %v93 = vld [vmem:[%s0 + $0x1d0] sm:$0xff]
  %v94 = vld [vmem:[%s0 + $0x1d8] sm:$0xff]
  %v95 = vld [vmem:[%s0 + $0x1e0] sm:$0xff]
  %v96 = vld [vmem:[%s0 + $0x1e8] sm:$0xff]
  %v97 = vld [vmem:[%s0 + $0x1f0] sm:$0xff]
  %v98 = vld [vmem:[%s0 + $0x1f8] sm:$0xff]
  %v99 = vpack.c.bf16 %v36, %v35
  %v100 = vpack.c.bf16 %v38, %v37
  %v101 = vpack.c.bf16 %v40, %v39
  %v102 = vpack.c.bf16 %v42, %v41
  %v103 = vpack.c.bf16 %v44, %v43
  %v104 = vpack.c.bf16 %v46, %v45
  %v105 = vpack.c.bf16 %v48, %v47
  %v106 = vpack.c.bf16 %v50, %v49
  %v107 = vpack.c.bf16 %v52, %v51
  %v108 = vpack.c.bf16 %v54, %v53
  %v109 = vpack.c.bf16 %v56, %v55
  %v110 = vpack.c.bf16 %v58, %v57
  %v111 = vpack.c.bf16 %v60, %v59
  %v112 = vpack.c.bf16 %v62, %v61
  %v113 = vpack.c.bf16 %v64, %v63
  %v114 = vpack.c.bf16 %v66, %v65
  %v115 = vpack.c.bf16 %v68, %v67
  %v116 = vpack.c.bf16 %v70, %v69
  %v117 = vpack.c.bf16 %v72, %v71
  %v118 = vpack.c.bf16 %v74, %v73
  %v119 = vpack.c.bf16 %v76, %v75
  %v120 = vpack.c.bf16 %v78, %v77
  %v121 = vpack.c.bf16 %v80, %v79
  %v122 = vpack.c.bf16 %v82, %v81
  %v123 = vpack.c.bf16 %v84, %v83
  %v124 = vpack.c.bf16 %v86, %v85
  %v125 = vpack.c.bf16 %v88, %v87
  %v126 = vpack.c.bf16 %v90, %v89
  %v127 = vpack.c.bf16 %v92, %v91
  %v128 = vpack.c.bf16 %v94, %v93
  %v129 = vpack.c.bf16 %v96, %v95
  %v130 = vpack.c.bf16 %v98, %v97
  %v131 = vld [vmem:[%s1] sm:$0xf]
  %v132 = vld [vmem:[%s1 + $0x4] sm:$0xf]
  %v133 = vld [vmem:[%s1 + $0x8] sm:$0xf]
  %v134 = vld [vmem:[%s1 + $0xc] sm:$0xf]
  %v135 = vld [vmem:[%s1 + $0x10] sm:$0xf]
  %v136 = vld [vmem:[%s1 + $0x14] sm:$0xf]
  %v137 = vld [vmem:[%s1 + $0x18] sm:$0xf]
  %v138 = vld [vmem:[%s1 + $0x1c] sm:$0xf]
  %v139 = vld [vmem:[%s1 + $0x20] sm:$0xf]
  %v140 = vld [vmem:[%s1 + $0x24] sm:$0xf]
  %v141 = vld [vmem:[%s1 + $0x28] sm:$0xf]
  %v142 = vld [vmem:[%s1 + $0x2c] sm:$0xf]
  %v143 = vld [vmem:[%s1 + $0x30] sm:$0xf]
  %v144 = vld [vmem:[%s1 + $0x34] sm:$0xf]
  %v145 = vld [vmem:[%s1 + $0x38] sm:$0xf]
  %v146 = vld [vmem:[%s1 + $0x3c] sm:$0xf]
  %v163 = vunpack.c.l.b16 %v131
  %v164 = vunpack.c.l.b16 %v132
  %v165 = vunpack.c.l.b16 %v133
  %v166 = vunpack.c.l.b16 %v134
  %v167 = vunpack.c.l.b16 %v135
  %v168 = vunpack.c.l.b16 %v136
  %v169 = vunpack.c.l.b16 %v137
  %v170 = vunpack.c.l.b16 %v138
  %v171 = vunpack.c.l.b16 %v139
  %v172 = vunpack.c.l.b16 %v140
  %v173 = vunpack.c.l.b16 %v141
  %v174 = vunpack.c.l.b16 %v142
  %v175 = vunpack.c.l.b16 %v143
  %v176 = vunpack.c.l.b16 %v144
  %v177 = vunpack.c.l.b16 %v145
  %v178 = vunpack.c.l.b16 %v146
  %v179 = vpack.c.b16 %v164, %v163
  %v180 = vpack.c.b16 %v166, %v165
  %v181 = vpack.c.b16 %v168, %v167
  %v182 = vpack.c.b16 %v170, %v169
  %v183 = vpack.c.b16 %v172, %v171
  %v184 = vpack.c.b16 %v174, %v173
  %v185 = vpack.c.b16 %v176, %v175
  %v186 = vpack.c.b16 %v178, %v177
  %195 = vmatpush.bf16.msra.mxu0 %v186
  %196 = vmatpush.bf16.msra.mxu0 %v185
  %197 = vmatpush.bf16.msra.mxu0 %v184
  %198 = vmatpush.bf16.msra.mxu0 %v183
  %199 = vmatpush.bf16.msra.mxu0 %v182
  %200 = vmatpush.bf16.msra.mxu0 %v181
  %201 = vmatpush.bf16.msra.mxu0 %v180
  %202 = vmatpush.bf16.msra.mxu0 %v179
  %203 = vmatmul.bf16.gmra.mxu0 %v99
  %v204 = vpop.f32.mrf.mxu0
  %v205 = vadd.f32 0.0, %v204
  %v206 = vpop.f32.mrf.mxu0
  %v207 = vadd.f32 0.0, %v206
  %208 = vmatmul.bf16.gmra.mxu0 %v100
  %v209 = vpop.f32.mrf.mxu0
  %v210 = vadd.f32 0.0, %v209
  %v211 = vpop.f32.mrf.mxu0
  %v212 = vadd.f32 0.0, %v211
  %213 = vmatmul.bf16.gmra.mxu0 %v101
  %v214 = vpop.f32.mrf.mxu0
  %v215 = vadd.f32 0.0, %v214
  %v216 = vpop.f32.mrf.mxu0
  %v217 = vadd.f32 0.0, %v216
  %218 = vmatmul.bf16.gmra.mxu0 %v102
  %v219 = vpop.f32.mrf.mxu0
  %v220 = vadd.f32 0.0, %v219
  %v221 = vpop.f32.mrf.mxu0
  %v222 = vadd.f32 0.0, %v221
  %223 = vmatmul.bf16.gmra.mxu0 %v103
  %v224 = vpop.f32.mrf.mxu0
  %v225 = vadd.f32 0.0, %v224
  %v226 = vpop.f32.mrf.mxu0
  %v227 = vadd.f32 0.0, %v226
  %228 = vmatmul.bf16.gmra.mxu0 %v104
  %v229 = vpop.f32.mrf.mxu0
  %v230 = vadd.f32 0.0, %v229
  %v231 = vpop.f32.mrf.mxu0
  %v232 = vadd.f32 0.0, %v231
  %233 = vmatmul.bf16.gmra.mxu0 %v105
  %v234 = vpop.f32.mrf.mxu0
  %v235 = vadd.f32 0.0, %v234
  %v236 = vpop.f32.mrf.mxu0
  %v237 = vadd.f32 0.0, %v236
  %238 = vmatmul.bf16.gmra.mxu0 %v106
  %v239 = vpop.f32.mrf.mxu0
  %v240 = vadd.f32 0.0, %v239
  %v241 = vpop.f32.mrf.mxu0
  %v242 = vadd.f32 0.0, %v241
  %243 = vmatmul.bf16.gmra.mxu0 %v107
  %v244 = vpop.f32.mrf.mxu0
  %v245 = vadd.f32 0.0, %v244
  %v246 = vpop.f32.mrf.mxu0
  %v247 = vadd.f32 0.0, %v246
  %248 = vmatmul.bf16.gmra.mxu0 %v108
  %v249 = vpop.f32.mrf.mxu0
  %v250 = vadd.f32 0.0, %v249
  %v251 = vpop.f32.mrf.mxu0
  %v252 = vadd.f32 0.0, %v251
  %253 = vmatmul.bf16.gmra.mxu0 %v109
  %v254 = vpop.f32.mrf.mxu0
  %v255 = vadd.f32 0.0, %v254
  %v256 = vpop.f32.mrf.mxu0
  %v257 = vadd.f32 0.0, %v256
  %258 = vmatmul.bf16.gmra.mxu0 %v110
  %v259 = vpop.f32.mrf.mxu0
  %v260 = vadd.f32 0.0, %v259
  %v261 = vpop.f32.mrf.mxu0
  %v262 = vadd.f32 0.0, %v261
  %263 = vmatmul.bf16.gmra.mxu0 %v111
  %v264 = vpop.f32.mrf.mxu0
  %v265 = vadd.f32 0.0, %v264
  %v266 = vpop.f32.mrf.mxu0
  %v267 = vadd.f32 0.0, %v266
  %268 = vmatmul.bf16.gmra.mxu0 %v112
  %v269 = vpop.f32.mrf.mxu0
  %v270 = vadd.f32 0.0, %v269
  %v271 = vpop.f32.mrf.mxu0
  %v272 = vadd.f32 0.0, %v271
  %273 = vmatmul.bf16.gmra.mxu0 %v113
  %v274 = vpop.f32.mrf.mxu0
  %v275 = vadd.f32 0.0, %v274
  %v276 = vpop.f32.mrf.mxu0
  %v277 = vadd.f32 0.0, %v276
  %278 = vmatmul.bf16.gmra.mxu0 %v114
  %v279 = vpop.f32.mrf.mxu0
  %v280 = vadd.f32 0.0, %v279
  %v281 = vpop.f32.mrf.mxu0
  %v282 = vadd.f32 0.0, %v281
  %283 = vmatmul.bf16.gmra.mxu0 %v115
  %v284 = vpop.f32.mrf.mxu0
  %v285 = vadd.f32 0.0, %v284
  %v286 = vpop.f32.mrf.mxu0
  %v287 = vadd.f32 0.0, %v286
  %288 = vmatmul.bf16.gmra.mxu0 %v116
  %v289 = vpop.f32.mrf.mxu0
  %v290 = vadd.f32 0.0, %v289
  %v291 = vpop.f32.mrf.mxu0
  %v292 = vadd.f32 0.0, %v291
  %293 = vmatmul.bf16.gmra.mxu0 %v117
  %v294 = vpop.f32.mrf.mxu0
  %v295 = vadd.f32 0.0, %v294
  %v296 = vpop.f32.mrf.mxu0
  %v297 = vadd.f32 0.0, %v296
  %298 = vmatmul.bf16.gmra.mxu0 %v118
  %v299 = vpop.f32.mrf.mxu0
  %v300 = vadd.f32 0.0, %v299
  %v301 = vpop.f32.mrf.mxu0
  %v302 = vadd.f32 0.0, %v301
  %303 = vmatmul.bf16.gmra.mxu0 %v119
  %v304 = vpop.f32.mrf.mxu0
  %v305 = vadd.f32 0.0, %v304
  %v306 = vpop.f32.mrf.mxu0
  %v307 = vadd.f32 0.0, %v306
  %308 = vmatmul.bf16.gmra.mxu0 %v120
  %v309 = vpop.f32.mrf.mxu0
  %v310 = vadd.f32 0.0, %v309
  %v311 = vpop.f32.mrf.mxu0
  %v312 = vadd.f32 0.0, %v311
  %313 = vmatmul.bf16.gmra.mxu0 %v121
  %v314 = vpop.f32.mrf.mxu0
  %v315 = vadd.f32 0.0, %v314
  %v316 = vpop.f32.mrf.mxu0
  %v317 = vadd.f32 0.0, %v316
  %318 = vmatmul.bf16.gmra.mxu0 %v122
  %v319 = vpop.f32.mrf.mxu0
  %v320 = vadd.f32 0.0, %v319
  %v321 = vpop.f32.mrf.mxu0
  %v322 = vadd.f32 0.0, %v321
  %323 = vmatmul.bf16.gmra.mxu0 %v123
  %v324 = vpop.f32.mrf.mxu0
  %v325 = vadd.f32 0.0, %v324
  %v326 = vpop.f32.mrf.mxu0
  %v327 = vadd.f32 0.0, %v326
  %328 = vmatmul.bf16.gmra.mxu0 %v124
  %v329 = vpop.f32.mrf.mxu0
  %v330 = vadd.f32 0.0, %v329
  %v331 = vpop.f32.mrf.mxu0
  %v332 = vadd.f32 0.0, %v331
  %333 = vmatmul.bf16.gmra.mxu0 %v125
  %v334 = vpop.f32.mrf.mxu0
  %v335 = vadd.f32 0.0, %v334
  %v336 = vpop.f32.mrf.mxu0
  %v337 = vadd.f32 0.0, %v336
  %338 = vmatmul.bf16.gmra.mxu0 %v126
  %v339 = vpop.f32.mrf.mxu0
  %v340 = vadd.f32 0.0, %v339
  %v341 = vpop.f32.mrf.mxu0
  %v342 = vadd.f32 0.0, %v341
  %343 = vmatmul.bf16.gmra.mxu0 %v127
  %v344 = vpop.f32.mrf.mxu0
  %v345 = vadd.f32 0.0, %v344
  %v346 = vpop.f32.mrf.mxu0
  %v347 = vadd.f32 0.0, %v346
  %348 = vmatmul.bf16.gmra.mxu0 %v128
  %v349 = vpop.f32.mrf.mxu0
  %v350 = vadd.f32 0.0, %v349
  %v351 = vpop.f32.mrf.mxu0
  %v352 = vadd.f32 0.0, %v351
  %353 = vmatmul.bf16.gmra.mxu0 %v129
  %v354 = vpop.f32.mrf.mxu0
  %v355 = vadd.f32 0.0, %v354
  %v356 = vpop.f32.mrf.mxu0
  %v357 = vadd.f32 0.0, %v356
  %358 = vmatmul.bf16.gmra.mxu0 %v130
  %v359 = vpop.f32.mrf.mxu0
  %v360 = vadd.f32 0.0, %v359
  %v361 = vpop.f32.mrf.mxu0
  %v362 = vadd.f32 0.0, %v361
  %363 = vdwg.mxu0
  %v364 = vld [vmem:[%s4] sm:$0x1]
  %v365 = vld [vmem:[%s5] sm:$0x1]
  %v366 = vadd.f32 %v205, %v207
  %v367 = vadd.f32 %v366, %v210
  %v368 = vadd.f32 %v367, %v212
  %v369 = vadd.f32 %v368, %v215
  %v370 = vadd.f32 %v369, %v217
  %v371 = vadd.f32 %v370, %v220
  %v372 = vadd.f32 %v371, %v222
  %v373 = vadd.f32 %v372, %v225
  %v374 = vadd.f32 %v373, %v227
  %v375 = vadd.f32 %v374, %v230
  %v376 = vadd.f32 %v375, %v232
  %v377 = vadd.f32 %v376, %v235
  %v378 = vadd.f32 %v377, %v237
  %v379 = vadd.f32 %v378, %v240
  %v380 = vadd.f32 %v379, %v242
  %v381 = vadd.f32 %v380, %v245
  %v382 = vadd.f32 %v381, %v247
  %v383 = vadd.f32 %v382, %v250
  %v384 = vadd.f32 %v383, %v252
  %v385 = vadd.f32 %v384, %v255
  %v386 = vadd.f32 %v385, %v257
  %v387 = vadd.f32 %v386, %v260
  %v388 = vadd.f32 %v387, %v262
  %v389 = vadd.f32 %v388, %v265
  %v390 = vadd.f32 %v389, %v267
  %v391 = vadd.f32 %v390, %v270
  %v392 = vadd.f32 %v391, %v272
  %v393 = vadd.f32 %v392, %v275
  %v394 = vadd.f32 %v393, %v277
  %v395 = vadd.f32 %v394, %v280
  %v396 = vadd.f32 %v395, %v282
  %v397 = vadd.f32 %v396, %v285
  %v398 = vadd.f32 %v397, %v287
  %v399 = vadd.f32 %v398, %v290
  %v400 = vadd.f32 %v399, %v292
  %v401 = vadd.f32 %v400, %v295
  %v402 = vadd.f32 %v401, %v297
  %v403 = vadd.f32 %v402, %v300
  %v404 = vadd.f32 %v403, %v302
  %v405 = vadd.f32 %v404, %v305
  %v406 = vadd.f32 %v405, %v307
  %v407 = vadd.f32 %v406, %v310
  %v408 = vadd.f32 %v407, %v312
  %v409 = vadd.f32 %v408, %v315
  %v410 = vadd.f32 %v409, %v317
  %v411 = vadd.f32 %v410, %v320
  %v412 = vadd.f32 %v411, %v322
  %v413 = vadd.f32 %v412, %v325
  %v414 = vadd.f32 %v413, %v327
  %v415 = vadd.f32 %v414, %v330
  %v416 = vadd.f32 %v415, %v332
  %v417 = vadd.f32 %v416, %v335
  %v418 = vadd.f32 %v417, %v337
  %v419 = vadd.f32 %v418, %v340
  %v420 = vadd.f32 %v419, %v342
  %v421 = vadd.f32 %v420, %v345
  %v422 = vadd.f32 %v421, %v347
  %v423 = vadd.f32 %v422, %v350
  %v424 = vadd.f32 %v423, %v352
  %v425 = vadd.f32 %v424, %v355
  %v426 = vadd.f32 %v425, %v357
  %v427 = vadd.f32 %v426, %v360
  %v428 = vadd.f32 %v427, %v362
  %v429 = vrot.slane %v428, 4
  %v430 = vadd.f32 %v428, %v429
  %v431 = vrot.slane %v430, 2
  %v432 = vadd.f32 %v430, %v431
  %v433 = vrot.slane %v432, 1
  %v434 = vadd.f32 %v432, %v433
  %v435 = vmul.f32 %v434, 0.001953125
  %v436 = vsub.f32 %v205, %v435
  %v437 = vsub.f32 %v207, %v435
  %v438 = vsub.f32 %v210, %v435
  %v439 = vsub.f32 %v212, %v435
  %v440 = vsub.f32 %v215, %v435
  %v441 = vsub.f32 %v217, %v435
  %v442 = vsub.f32 %v220, %v435
  %v443 = vsub.f32 %v222, %v435
  %v444 = vsub.f32 %v225, %v435
  %v445 = vsub.f32 %v227, %v435
  %v446 = vsub.f32 %v230, %v435
  %v447 = vsub.f32 %v232, %v435
  %v448 = vsub.f32 %v235, %v435
  %v449 = vsub.f32 %v237, %v435
  %v450 = vsub.f32 %v240, %v435
  %v451 = vsub.f32 %v242, %v435
  %v452 = vsub.f32 %v245, %v435
  %v453 = vsub.f32 %v247, %v435
  %v454 = vsub.f32 %v250, %v435
  %v455 = vsub.f32 %v252, %v435
  %v456 = vsub.f32 %v255, %v435
  %v457 = vsub.f32 %v257, %v435
  %v458 = vsub.f32 %v260, %v435
  %v459 = vsub.f32 %v262, %v435
  %v460 = vsub.f32 %v265, %v435
  %v461 = vsub.f32 %v267, %v435
  %v462 = vsub.f32 %v270, %v435
  %v463 = vsub.f32 %v272, %v435
  %v464 = vsub.f32 %v275, %v435
  %v465 = vsub.f32 %v277, %v435
  %v466 = vsub.f32 %v280, %v435
  %v467 = vsub.f32 %v282, %v435
  %v468 = vsub.f32 %v285, %v435
  %v469 = vsub.f32 %v287, %v435
  %v470 = vsub.f32 %v290, %v435
  %v471 = vsub.f32 %v292, %v435
  %v472 = vsub.f32 %v295, %v435
  %v473 = vsub.f32 %v297, %v435
  %v474 = vsub.f32 %v300, %v435
  %v475 = vsub.f32 %v302, %v435
  %v476 = vsub.f32 %v305, %v435
  %v477 = vsub.f32 %v307, %v435
  %v478 = vsub.f32 %v310, %v435
  %v479 = vsub.f32 %v312, %v435
  %v480 = vsub.f32 %v315, %v435
  %v481 = vsub.f32 %v317, %v435
  %v482 = vsub.f32 %v320, %v435
  %v483 = vsub.f32 %v322, %v435
  %v484 = vsub.f32 %v325, %v435
  %v485 = vsub.f32 %v327, %v435
  %v486 = vsub.f32 %v330, %v435
  %v487 = vsub.f32 %v332, %v435
  %v488 = vsub.f32 %v335, %v435
  %v489 = vsub.f32 %v337, %v435
  %v490 = vsub.f32 %v340, %v435
  %v491 = vsub.f32 %v342, %v435
  %v492 = vsub.f32 %v345, %v435
  %v493 = vsub.f32 %v347, %v435
  %v494 = vsub.f32 %v350, %v435
  %v495 = vsub.f32 %v352, %v435
  %v496 = vsub.f32 %v355, %v435
  %v497 = vsub.f32 %v357, %v435
  %v498 = vsub.f32 %v360, %v435
  %v499 = vsub.f32 %v362, %v435
  %v500 = vmul.f32 %v436, %v436
  %v501 = vmul.f32 %v437, %v437
  %v502 = vmul.f32 %v438, %v438
  %v503 = vmul.f32 %v439, %v439
  %v504 = vmul.f32 %v440, %v440
  %v505 = vmul.f32 %v441, %v441
  %v506 = vmul.f32 %v442, %v442
  %v507 = vmul.f32 %v443, %v443
  %v508 = vmul.f32 %v444, %v444
  %v509 = vmul.f32 %v445, %v445
  %v510 = vmul.f32 %v446, %v446
  %v511 = vmul.f32 %v447, %v447
  %v512 = vmul.f32 %v448, %v448
  %v513 = vmul.f32 %v449, %v449
  %v514 = vmul.f32 %v450, %v450
  %v515 = vmul.f32 %v451, %v451
  %v516 = vmul.f32 %v452, %v452
  %v517 = vmul.f32 %v453, %v453
  %v518 = vmul.f32 %v454, %v454
  %v519 = vmul.f32 %v455, %v455
  %v520 = vmul.f32 %v456, %v456
  %v521 = vmul.f32 %v457, %v457
  %v522 = vmul.f32 %v458, %v458
  %v523 = vmul.f32 %v459, %v459
  %v524 = vmul.f32 %v460, %v460
  %v525 = vmul.f32 %v461, %v461
  %v526 = vmul.f32 %v462, %v462
  %v527 = vmul.f32 %v463, %v463
  %v528 = vmul.f32 %v464, %v464
  %v529 = vmul.f32 %v465, %v465
  %v530 = vmul.f32 %v466, %v466
  %v531 = vmul.f32 %v467, %v467
  %v532 = vmul.f32 %v468, %v468
  %v533 = vmul.f32 %v469, %v469
  %v534 = vmul.f32 %v470, %v470
  %v535 = vmul.f32 %v471, %v471
  %v536 = vmul.f32 %v472, %v472
  %v537 = vmul.f32 %v473, %v473
  %v538 = vmul.f32 %v474, %v474
  %v539 = vmul.f32 %v475, %v475
  %v540 = vmul.f32 %v476, %v476
  %v541 = vmul.f32 %v477, %v477
  %v542 = vmul.f32 %v478, %v478
  %v543 = vmul.f32 %v479, %v479
  %v544 = vmul.f32 %v480, %v480
  %v545 = vmul.f32 %v481, %v481
  %v546 = vmul.f32 %v482, %v482
  %v547 = vmul.f32 %v483, %v483
  %v548 = vmul.f32 %v484, %v484
  %v549 = vmul.f32 %v485, %v485
  %v550 = vmul.f32 %v486, %v486
  %v551 = vmul.f32 %v487, %v487
  %v552 = vmul.f32 %v488, %v488
  %v553 = vmul.f32 %v489, %v489
  %v554 = vmul.f32 %v490, %v490
  %v555 = vmul.f32 %v491, %v491
  %v556 = vmul.f32 %v492, %v492
  %v557 = vmul.f32 %v493, %v493
  %v558 = vmul.f32 %v494, %v494
  %v559 = vmul.f32 %v495, %v495
  %v560 = vmul.f32 %v496, %v496
  %v561 = vmul.f32 %v497, %v497
  %v562 = vmul.f32 %v498, %v498
  %v563 = vmul.f32 %v499, %v499
  %v564 = vadd.f32 %v500, %v501
  %v565 = vadd.f32 %v564, %v502
  %v566 = vadd.f32 %v565, %v503
  %v567 = vadd.f32 %v566, %v504
  %v568 = vadd.f32 %v567, %v505
  %v569 = vadd.f32 %v568, %v506
  %v570 = vadd.f32 %v569, %v507
  %v571 = vadd.f32 %v570, %v508
  %v572 = vadd.f32 %v571, %v509
  %v573 = vadd.f32 %v572, %v510
  %v574 = vadd.f32 %v573, %v511
  %v575 = vadd.f32 %v574, %v512
  %v576 = vadd.f32 %v575, %v513
  %v577 = vadd.f32 %v576, %v514
  %v578 = vadd.f32 %v577, %v515
  %v579 = vadd.f32 %v578, %v516
  %v580 = vadd.f32 %v579, %v517
  %v581 = vadd.f32 %v580, %v518
  %v582 = vadd.f32 %v581, %v519
  %v583 = vadd.f32 %v582, %v520
  %v584 = vadd.f32 %v583, %v521
  %v585 = vadd.f32 %v584, %v522
  %v586 = vadd.f32 %v585, %v523
  %v587 = vadd.f32 %v586, %v524
  %v588 = vadd.f32 %v587, %v525
  %v589 = vadd.f32 %v588, %v526
  %v590 = vadd.f32 %v589, %v527
  %v591 = vadd.f32 %v590, %v528
  %v592 = vadd.f32 %v591, %v529
  %v593 = vadd.f32 %v592, %v530
  %v594 = vadd.f32 %v593, %v531
  %v595 = vadd.f32 %v594, %v532
  %v596 = vadd.f32 %v595, %v533
  %v597 = vadd.f32 %v596, %v534
  %v598 = vadd.f32 %v597, %v535
  %v599 = vadd.f32 %v598, %v536
  %v600 = vadd.f32 %v599, %v537
  %v601 = vadd.f32 %v600, %v538
  %v602 = vadd.f32 %v601, %v539
  %v603 = vadd.f32 %v602, %v540
  %v604 = vadd.f32 %v603, %v541
  %v605 = vadd.f32 %v604, %v542
  %v606 = vadd.f32 %v605, %v543
  %v607 = vadd.f32 %v606, %v544
  %v608 = vadd.f32 %v607, %v545
  %v609 = vadd.f32 %v608, %v546
  %v610 = vadd.f32 %v609, %v547
  %v611 = vadd.f32 %v610, %v548
  %v612 = vadd.f32 %v611, %v549
  %v613 = vadd.f32 %v612, %v550
  %v614 = vadd.f32 %v613, %v551
  %v615 = vadd.f32 %v614, %v552
  %v616 = vadd.f32 %v615, %v553
  %v617 = vadd.f32 %v616, %v554
  %v618 = vadd.f32 %v617, %v555
  %v619 = vadd.f32 %v618, %v556
  %v620 = vadd.f32 %v619, %v557
  %v621 = vadd.f32 %v620, %v558
  %v622 = vadd.f32 %v621, %v559
  %v623 = vadd.f32 %v622, %v560
  %v624 = vadd.f32 %v623, %v561
  %v625 = vadd.f32 %v624, %v562
  %v626 = vadd.f32 %v625, %v563
  %v627 = vrot.slane %v626, 4
  %v628 = vadd.f32 %v626, %v627
  %v629 = vrot.slane %v628, 2
  %v630 = vadd.f32 %v628, %v629
  %v631 = vrot.slane %v630, 1
  %v632 = vadd.f32 %v630, %v631
  %v633 = vmul.f32 %v632, 0.001953125
  %v634 = vadd.f32 %v633, 1e-05
  %v635 = vrsqrt.pop %v634
  %v636 = vmul.f32 %v635, %v634
  %v637 = vmul.f32 %v636, %v635
  %v638 = vmul.f32 0.5, %v637
  %v639 = vsub.f32 1.5, %v638
  %v640 = vmul.f32 %v635, %v639
  %vm641 = vweird.f32 %v634
  %vm642 = vweird.f32 %v635
  %vm643 = vmor %vm641, %vm642
  %v644 = vsel %vm643, %v635, %v640
  %v645 = vmul.f32 %v436, %v644
  %v646 = vmul.f32 %v437, %v644
  %v647 = vmul.f32 %v438, %v644
  %v648 = vmul.f32 %v439, %v644
  %v649 = vmul.f32 %v440, %v644
  %v650 = vmul.f32 %v441, %v644
  %v651 = vmul.f32 %v442, %v644
  %v652 = vmul.f32 %v443, %v644
  %v653 = vmul.f32 %v444, %v644
  %v654 = vmul.f32 %v445, %v644
  %v655 = vmul.f32 %v446, %v644
  %v656 = vmul.f32 %v447, %v644
  %v657 = vmul.f32 %v448, %v644
  %v658 = vmul.f32 %v449, %v644
  %v659 = vmul.f32 %v450, %v644
  %v660 = vmul.f32 %v451, %v644
  %v661 = vmul.f32 %v452, %v644
  %v662 = vmul.f32 %v453, %v644
  %v663 = vmul.f32 %v454, %v644
  %v664 = vmul.f32 %v455, %v644
  %v665 = vmul.f32 %v456, %v644
  %v666 = vmul.f32 %v457, %v644
  %v667 = vmul.f32 %v458, %v644
  %v668 = vmul.f32 %v459, %v644
  %v669 = vmul.f32 %v460, %v644
  %v670 = vmul.f32 %v461, %v644
  %v671 = vmul.f32 %v462, %v644
  %v672 = vmul.f32 %v463, %v644
  %v673 = vmul.f32 %v464, %v644
  %v674 = vmul.f32 %v465, %v644
  %v675 = vmul.f32 %v466, %v644
  %v676 = vmul.f32 %v467, %v644
  %v677 = vmul.f32 %v468, %v644
  %v678 = vmul.f32 %v469, %v644
  %v679 = vmul.f32 %v470, %v644
  %v680 = vmul.f32 %v471, %v644
  %v681 = vmul.f32 %v472, %v644
  %v682 = vmul.f32 %v473, %v644
  %v683 = vmul.f32 %v474, %v644
  %v684 = vmul.f32 %v475, %v644
  %v685 = vmul.f32 %v476, %v644
  %v686 = vmul.f32 %v477, %v644
  %v687 = vmul.f32 %v478, %v644
  %v688 = vmul.f32 %v479, %v644
  %v689 = vmul.f32 %v480, %v644
  %v690 = vmul.f32 %v481, %v644
  %v691 = vmul.f32 %v482, %v644
  %v692 = vmul.f32 %v483, %v644
  %v693 = vmul.f32 %v484, %v644
  %v694 = vmul.f32 %v485, %v644
  %v695 = vmul.f32 %v486, %v644
  %v696 = vmul.f32 %v487, %v644
  %v697 = vmul.f32 %v488, %v644
  %v698 = vmul.f32 %v489, %v644
  %v699 = vmul.f32 %v490, %v644
  %v700 = vmul.f32 %v491, %v644
  %v701 = vmul.f32 %v492, %v644
  %v702 = vmul.f32 %v493, %v644
  %v703 = vmul.f32 %v494, %v644
  %v704 = vmul.f32 %v495, %v644
  %v705 = vmul.f32 %v496, %v644
  %v706 = vmul.f32 %v497, %v644
  %v707 = vmul.f32 %v498, %v644
  %v708 = vmul.f32 %v499, %v644
  %v710 = vperm.slane %v364, 0
  %v712 = vmul.f32 %v645, %v710
  %v713 = vmul.f32 %v646, %v710
  %v714 = vmul.f32 %v647, %v710
  %v715 = vmul.f32 %v648, %v710
  %v716 = vmul.f32 %v649, %v710
  %v717 = vmul.f32 %v650, %v710
  %v718 = vmul.f32 %v651, %v710
  %v719 = vmul.f32 %v652, %v710
  %v720 = vmul.f32 %v653, %v710
  %v721 = vmul.f32 %v654, %v710
  %v722 = vmul.f32 %v655, %v710
  %v723 = vmul.f32 %v656, %v710
  %v724 = vmul.f32 %v657, %v710
  %v725 = vmul.f32 %v658, %v710
  %v726 = vmul.f32 %v659, %v710
  %v727 = vmul.f32 %v660, %v710
  %v728 = vmul.f32 %v661, %v710
  %v729 = vmul.f32 %v662, %v710
  %v730 = vmul.f32 %v663, %v710
  %v731 = vmul.f32 %v664, %v710
  %v732 = vmul.f32 %v665, %v710
  %v733 = vmul.f32 %v666, %v710
  %v734 = vmul.f32 %v667, %v710
  %v735 = vmul.f32 %v668, %v710
  %v736 = vmul.f32 %v669, %v710
  %v737 = vmul.f32 %v670, %v710
  %v738 = vmul.f32 %v671, %v710
  %v739 = vmul.f32 %v672, %v710
  %v740 = vmul.f32 %v673, %v710
  %v741 = vmul.f32 %v674, %v710
  %v742 = vmul.f32 %v675, %v710
  %v743 = vmul.f32 %v676, %v710
  %v744 = vmul.f32 %v677, %v710
  %v745 = vmul.f32 %v678, %v710
  %v746 = vmul.f32 %v679, %v710
  %v747 = vmul.f32 %v680, %v710
  %v748 = vmul.f32 %v681, %v710
  %v749 = vmul.f32 %v682, %v710
  %v750 = vmul.f32 %v683, %v710
  %v751 = vmul.f32 %v684, %v710
  %v752 = vmul.f32 %v685, %v710
  %v753 = vmul.f32 %v686, %v710
  %v754 = vmul.f32 %v687, %v710
  %v755 = vmul.f32 %v688, %v710
  %v756 = vmul.f32 %v689, %v710
  %v757 = vmul.f32 %v690, %v710
  %v758 = vmul.f32 %v691, %v710
  %v759 = vmul.f32 %v692, %v710
  %v760 = vmul.f32 %v693, %v710
  %v761 = vmul.f32 %v694, %v710
  %v762 = vmul.f32 %v695, %v710
  %v763 = vmul.f32 %v696, %v710
  %v764 = vmul.f32 %v697, %v710
  %v765 = vmul.f32 %v698, %v710
  %v766 = vmul.f32 %v699, %v710
  %v767 = vmul.f32 %v700, %v710
  %v768 = vmul.f32 %v701, %v710
  %v769 = vmul.f32 %v702, %v710
  %v770 = vmul.f32 %v703, %v710
  %v771 = vmul.f32 %v704, %v710
  %v772 = vmul.f32 %v705, %v710
  %v773 = vmul.f32 %v706, %v710
  %v774 = vmul.f32 %v707, %v710
  %v775 = vmul.f32 %v708, %v710
  %v777 = vperm.slane %v365, 0
  %v779 = vadd.f32 %v712, %v777
  %v780 = vadd.f32 %v713, %v777
  %v781 = vadd.f32 %v714, %v777
  %v782 = vadd.f32 %v715, %v777
  %v783 = vadd.f32 %v716, %v777
  %v784 = vadd.f32 %v717, %v777
  %v785 = vadd.f32 %v718, %v777
  %v786 = vadd.f32 %v719, %v777
  %v787 = vadd.f32 %v720, %v777
  %v788 = vadd.f32 %v721, %v777
  %v789 = vadd.f32 %v722, %v777
  %v790 = vadd.f32 %v723, %v777
  %v791 = vadd.f32 %v724, %v777
  %v792 = vadd.f32 %v725, %v777
  %v793 = vadd.f32 %v726, %v777
  %v794 = vadd.f32 %v727, %v777
  %v795 = vadd.f32 %v728, %v777
  %v796 = vadd.f32 %v729, %v777
  %v797 = vadd.f32 %v730, %v777
  %v798 = vadd.f32 %v731, %v777
  %v799 = vadd.f32 %v732, %v777
  %v800 = vadd.f32 %v733, %v777
  %v801 = vadd.f32 %v734, %v777
  %v802 = vadd.f32 %v735, %v777
  %v803 = vadd.f32 %v736, %v777
  %v804 = vadd.f32 %v737, %v777
  %v805 = vadd.f32 %v738, %v777
  %v806 = vadd.f32 %v739, %v777
  %v807 = vadd.f32 %v740, %v777
  %v808 = vadd.f32 %v741, %v777
  %v809 = vadd.f32 %v742, %v777
  %v810 = vadd.f32 %v743, %v777
  %v811 = vadd.f32 %v744, %v777
  %v812 = vadd.f32 %v745, %v777
  %v813 = vadd.f32 %v746, %v777
  %v814 = vadd.f32 %v747, %v777
  %v815 = vadd.f32 %v748, %v777
  %v816 = vadd.f32 %v749, %v777
  %v817 = vadd.f32 %v750, %v777
  %v818 = vadd.f32 %v751, %v777
  %v819 = vadd.f32 %v752, %v777
  %v820 = vadd.f32 %v753, %v777
  %v821 = vadd.f32 %v754, %v777
  %v822 = vadd.f32 %v755, %v777
  %v823 = vadd.f32 %v756, %v777
  %v824 = vadd.f32 %v757, %v777
  %v825 = vadd.f32 %v758, %v777
  %v826 = vadd.f32 %v759, %v777
  %v827 = vadd.f32 %v760, %v777
  %v828 = vadd.f32 %v761, %v777
  %v829 = vadd.f32 %v762, %v777
  %v830 = vadd.f32 %v763, %v777
  %v831 = vadd.f32 %v764, %v777
  %v832 = vadd.f32 %v765, %v777
  %v833 = vadd.f32 %v766, %v777
  %v834 = vadd.f32 %v767, %v777
  %v835 = vadd.f32 %v768, %v777
  %v836 = vadd.f32 %v769, %v777
  %v837 = vadd.f32 %v770, %v777
  %v838 = vadd.f32 %v771, %v777
  %v839 = vadd.f32 %v772, %v777
  %v840 = vadd.f32 %v773, %v777
  %v841 = vadd.f32 %v774, %v777
  %v842 = vadd.f32 %v775, %v777
  %v843 = vmax.f32 %v779, 0.0
  %v844 = vmax.f32 %v780, 0.0
  %v845 = vmax.f32 %v781, 0.0
  %v846 = vmax.f32 %v782, 0.0
  %v847 = vmax.f32 %v783, 0.0
  %v848 = vmax.f32 %v784, 0.0
  %v849 = vmax.f32 %v785, 0.0
  %v850 = vmax.f32 %v786, 0.0
  %v851 = vmax.f32 %v787, 0.0
  %v852 = vmax.f32 %v788, 0.0
  %v853 = vmax.f32 %v789, 0.0
  %v854 = vmax.f32 %v790, 0.0
  %v855 = vmax.f32 %v791, 0.0
  %v856 = vmax.f32 %v792, 0.0
  %v857 = vmax.f32 %v793, 0.0
  %v858 = vmax.f32 %v794, 0.0
  %v859 = vmax.f32 %v795, 0.0
  %v860 = vmax.f32 %v796, 0.0
  %v861 = vmax.f32 %v797, 0.0
  %v862 = vmax.f32 %v798, 0.0
  %v863 = vmax.f32 %v799, 0.0
  %v864 = vmax.f32 %v800, 0.0
  %v865 = vmax.f32 %v801, 0.0
  %v866 = vmax.f32 %v802, 0.0
  %v867 = vmax.f32 %v803, 0.0
  %v868 = vmax.f32 %v804, 0.0
  %v869 = vmax.f32 %v805, 0.0
  %v870 = vmax.f32 %v806, 0.0
  %v871 = vmax.f32 %v807, 0.0
  %v872 = vmax.f32 %v808, 0.0
  %v873 = vmax.f32 %v809, 0.0
  %v874 = vmax.f32 %v810, 0.0
  %v875 = vmax.f32 %v811, 0.0
  %v876 = vmax.f32 %v812, 0.0
  %v877 = vmax.f32 %v813, 0.0
  %v878 = vmax.f32 %v814, 0.0
  %v879 = vmax.f32 %v815, 0.0
  %v880 = vmax.f32 %v816, 0.0
  %v881 = vmax.f32 %v817, 0.0
  %v882 = vmax.f32 %v818, 0.0
  %v883 = vmax.f32 %v819, 0.0
  %v884 = vmax.f32 %v820, 0.0
  %v885 = vmax.f32 %v821, 0.0
  %v886 = vmax.f32 %v822, 0.0
  %v887 = vmax.f32 %v823, 0.0
  %v888 = vmax.f32 %v824, 0.0
  %v889 = vmax.f32 %v825, 0.0
  %v890 = vmax.f32 %v826, 0.0
  %v891 = vmax.f32 %v827, 0.0
  %v892 = vmax.f32 %v828, 0.0
  %v893 = vmax.f32 %v829, 0.0
  %v894 = vmax.f32 %v830, 0.0
  %v895 = vmax.f32 %v831, 0.0
  %v896 = vmax.f32 %v832, 0.0
  %v897 = vmax.f32 %v833, 0.0
  %v898 = vmax.f32 %v834, 0.0
  %v899 = vmax.f32 %v835, 0.0
  %v900 = vmax.f32 %v836, 0.0
  %v901 = vmax.f32 %v837, 0.0
  %v902 = vmax.f32 %v838, 0.0
  %v903 = vmax.f32 %v839, 0.0
  %v904 = vmax.f32 %v840, 0.0
  %v905 = vmax.f32 %v841, 0.0
  %v906 = vmax.f32 %v842, 0.0
  %907 = vst [vmem:[#allocation2] sm:$0xff] 0.0
  %908 = vst [vmem:[#allocation2 + $0x8] sm:$0xff] 0.0
  %909 = vst [vmem:[#allocation2 + $0x10] sm:$0x3] 0.0
  %910 = vst [vmem:[#allocation2 + $0x1b0] sm:$0xff] 0.0
  %911 = vst [vmem:[#allocation2 + $0x1b8] sm:$0xff] 0.0
  %912 = vst [vmem:[#allocation2 + $0x1c0] sm:$0x3] 0.0
  %s913 = scalar_lea.vmem [#allocation2], 408
  %914 = vst [vmem:[%s913] sm:$0xff] 0.0
  %915 = vst [vmem:[%s913 + $0x8] sm:$0xff] 0.0
  %916 = vst [vmem:[%s913 + $0x10] sm:$0x3] 0.0
  %917 = vst [vmem:[%s913 + $0x1b0] sm:$0xff] 0.0
  %918 = vst [vmem:[%s913 + $0x1b8] sm:$0xff] 0.0
  %919 = vst [vmem:[%s913 + $0x1c0] sm:$0x3] 0.0
  %920 = vst [vmem:[#allocation2] sm:$0x1] 0.0
  %921 = vst [vmem:[#allocation2 + $0x18] sm:$0x1] 0.0
  %922 = vst [vmem:[#allocation2 + $0x30] sm:$0x1] 0.0
  %923 = vst [vmem:[#allocation2 + $0x48] sm:$0x1] 0.0
  %924 = vst [vmem:[#allocation2 + $0x60] sm:$0x1] 0.0
  %925 = vst [vmem:[#allocation2 + $0x78] sm:$0x1] 0.0
  %926 = vst [vmem:[#allocation2 + $0x90] sm:$0x1] 0.0
  %927 = vst [vmem:[#allocation2 + $0xa8] sm:$0x1] 0.0
  %928 = vst [vmem:[#allocation2 + $0xc0] sm:$0x1] 0.0
  %929 = vst [vmem:[#allocation2 + $0xd8] sm:$0x1] 0.0
  %930 = vst [vmem:[#allocation2 + $0xf0] sm:$0x1] 0.0
  %931 = vst [vmem:[#allocation2 + $0x108] sm:$0x1] 0.0
  %932 = vst [vmem:[#allocation2 + $0x120] sm:$0x1] 0.0
  %933 = vst [vmem:[#allocation2 + $0x138] sm:$0x1] 0.0
  %934 = vst [vmem:[#allocation2 + $0x150] sm:$0x1] 0.0
  %935 = vst [vmem:[#allocation2 + $0x168] sm:$0x1] 0.0
  %936 = vst [vmem:[#allocation2 + $0x180] sm:$0x1] 0.0
  %937 = vst [vmem:[#allocation2 + $0x198] sm:$0x1] 0.0
  %938 = vst [vmem:[#allocation2 + $0x1b0] sm:$0x1] 0.0
  %939 = vst [vmem:[#allocation2 + $0x1c8] sm:$0x1] 0.0
  %940 = vst [vmem:[#allocation2 + $0x1e0] sm:$0x1] 0.0
  %941 = vst [vmem:[#allocation2 + $0x1f8] sm:$0x1] 0.0
  %942 = vst [vmem:[#allocation2 + $0x210] sm:$0x1] 0.0
  %943 = vst [vmem:[#allocation2 + $0x228] sm:$0x1] 0.0
  %944 = vst [vmem:[#allocation2 + $0x240] sm:$0x1] 0.0
  %945 = vst [vmem:[#allocation2 + $0x258] sm:$0x1] 0.0
  %946 = vst [vmem:[#allocation2 + $0x270] sm:$0x1] 0.0
  %947 = vst [vmem:[#allocation2 + $0x288] sm:$0x1] 0.0
  %948 = vst [vmem:[#allocation2 + $0x2a0] sm:$0x1] 0.0
  %949 = vst [vmem:[#allocation2 + $0x2b8] sm:$0x1] 0.0
  %950 = vst [vmem:[#allocation2 + $0x2d0] sm:$0x1] 0.0
  %951 = vst [vmem:[#allocation2 + $0x2e8] sm:$0x1] 0.0
  %952 = vst [vmem:[#allocation2 + $0x300] sm:$0x1] 0.0
  %953 = vst [vmem:[#allocation2 + $0x318] sm:$0x1] 0.0
  %954 = vst [vmem:[#allocation2 + $0x330] sm:$0x1] 0.0
  %955 = vst [vmem:[#allocation2 + $0x348] sm:$0x1] 0.0
  %956 = vst [vmem:[#allocation2 + $0x11] sm:$0x1] 0.0
  %957 = vst [vmem:[#allocation2 + $0x29] sm:$0x1] 0.0
  %958 = vst [vmem:[#allocation2 + $0x41] sm:$0x1] 0.0
  %959 = vst [vmem:[#allocation2 + $0x59] sm:$0x1] 0.0
  %960 = vst [vmem:[#allocation2 + $0x71] sm:$0x1] 0.0
  %961 = vst [vmem:[#allocation2 + $0x89] sm:$0x1] 0.0
  %962 = vst [vmem:[#allocation2 + $0xa1] sm:$0x1] 0.0
  %963 = vst [vmem:[#allocation2 + $0xb9] sm:$0x1] 0.0
  %964 = vst [vmem:[#allocation2 + $0xd1] sm:$0x1] 0.0
  %965 = vst [vmem:[#allocation2 + $0xe9] sm:$0x1] 0.0
  %966 = vst [vmem:[#allocation2 + $0x101] sm:$0x1] 0.0
  %967 = vst [vmem:[#allocation2 + $0x119] sm:$0x1] 0.0
  %968 = vst [vmem:[#allocation2 + $0x131] sm:$0x1] 0.0
  %969 = vst [vmem:[#allocation2 + $0x149] sm:$0x1] 0.0
  %970 = vst [vmem:[#allocation2 + $0x161] sm:$0x1] 0.0
  %971 = vst [vmem:[#allocation2 + $0x179] sm:$0x1] 0.0
  %972 = vst [vmem:[#allocation2 + $0x191] sm:$0x1] 0.0
  %973 = vst [vmem:[#allocation2 + $0x1a9] sm:$0x1] 0.0
  %974 = vst [vmem:[#allocation2 + $0x1c1] sm:$0x1] 0.0
  %975 = vst [vmem:[#allocation2 + $0x1d9] sm:$0x1] 0.0
  %976 = vst [vmem:[#allocation2 + $0x1f1] sm:$0x1] 0.0
  %977 = vst [vmem:[#allocation2 + $0x209] sm:$0x1] 0.0
  %978 = vst [vmem:[#allocation2 + $0x221] sm:$0x1] 0.0
  %979 = vst [vmem:[#allocation2 + $0x239] sm:$0x1] 0.0
  %980 = vst [vmem:[#allocation2 + $0x251] sm:$0x1] 0.0
  %981 = vst [vmem:[#allocation2 + $0x269] sm:$0x1] 0.0
  %982 = vst [vmem:[#allocation2 + $0x281] sm:$0x1] 0.0
  %983 = vst [vmem:[#allocation2 + $0x299] sm:$0x1] 0.0
  %984 = vst [vmem:[#allocation2 + $0x2b1] sm:$0x1] 0.0
  %985 = vst [vmem:[#allocation2 + $0x2c9] sm:$0x1] 0.0
  %986 = vst [vmem:[#allocation2 + $0x2e1] sm:$0x1] 0.0
  %987 = vst [vmem:[#allocation2 + $0x2f9] sm:$0x1] 0.0
  %988 = vst [vmem:[#allocation2 + $0x311] sm:$0x1] 0.0
  %989 = vst [vmem:[#allocation2 + $0x329] sm:$0x1] 0.0
  %990 = vst [vmem:[#allocation2 + $0x341] sm:$0x1] 0.0
  %991 = vst [vmem:[#allocation2 + $0x359] sm:$0x1] 0.0
  %s992 = scalar_lea.vmem [#allocation2], 24
  %993 = vst [vmem:[%s992 + $0x1] sm:$0xff] %v843
  %994 = vst [vmem:[%s992 + $0x9] sm:$0xff] %v844
  %995 = vst [vmem:[%s992 + $0x19] sm:$0xff] %v845
  %996 = vst [vmem:[%s992 + $0x21] sm:$0xff] %v846
  %997 = vst [vmem:[%s992 + $0x31] sm:$0xff] %v847
  %998 = vst [vmem:[%s992 + $0x39] sm:$0xff] %v848
  %999 = vst [vmem:[%s992 + $0x49] sm:$0xff] %v849
  %1000 = vst [vmem:[%s992 + $0x51] sm:$0xff] %v850
  %1001 = vst [vmem:[%s992 + $0x61] sm:$0xff] %v851
  %1002 = vst [vmem:[%s992 + $0x69] sm:$0xff] %v852
  %1003 = vst [vmem:[%s992 + $0x79] sm:$0xff] %v853
  %1004 = vst [vmem:[%s992 + $0x81] sm:$0xff] %v854
  %1005 = vst [vmem:[%s992 + $0x91] sm:$0xff] %v855
  %1006 = vst [vmem:[%s992 + $0x99] sm:$0xff] %v856
  %1007 = vst [vmem:[%s992 + $0xa9] sm:$0xff] %v857
  %1008 = vst [vmem:[%s992 + $0xb1] sm:$0xff] %v858
  %1009 = vst [vmem:[%s992 + $0xc1] sm:$0xff] %v859
  %1010 = vst [vmem:[%s992 + $0xc9] sm:$0xff] %v860
  %1011 = vst [vmem:[%s992 + $0xd9] sm:$0xff] %v861
  %1012 = vst [vmem:[%s992 + $0xe1] sm:$0xff] %v862
  %1013 = vst [vmem:[%s992 + $0xf1] sm:$0xff] %v863
  %1014 = vst [vmem:[%s992 + $0xf9] sm:$0xff] %v864
  %1015 = vst [vmem:[%s992 + $0x109] sm:$0xff] %v865
  %1016 = vst [vmem:[%s992 + $0x111] sm:$0xff] %v866
  %1017 = vst [vmem:[%s992 + $0x121] sm:$0xff] %v867
  %1018 = vst [vmem:[%s992 + $0x129] sm:$0xff] %v868
  %1019 = vst [vmem:[%s992 + $0x139] sm:$0xff] %v869
  %1020 = vst [vmem:[%s992 + $0x141] sm:$0xff] %v870
  %1021 = vst [vmem:[%s992 + $0x151] sm:$0xff] %v871
  %1022 = vst [vmem:[%s992 + $0x159] sm:$0xff] %v872
  %1023 = vst [vmem:[%s992 + $0x169] sm:$0xff] %v873
  %1024 = vst [vmem:[%s992 + $0x171] sm:$0xff] %v874
  %1025 = vst [vmem:[%s992 + $0x1b1] sm:$0xff] %v875
  %1026 = vst [vmem:[%s992 + $0x1b9] sm:$0xff] %v876
  %1027 = vst [vmem:[%s992 + $0x1c9] sm:$0xff] %v877
  %1028 = vst [vmem:[%s992 + $0x1d1] sm:$0xff] %v878
  %1029 = vst [vmem:[%s992 + $0x1e1] sm:$0xff] %v879
  %1030 = vst [vmem:[%s992 + $0x1e9] sm:$0xff] %v880
  %1031 = vst [vmem:[%s992 + $0x1f9] sm:$0xff] %v881
  %1032 = vst [vmem:[%s992 + $0x201] sm:$0xff] %v882
  %1033 = vst [vmem:[%s992 + $0x211] sm:$0xff] %v883
  %1034 = vst [vmem:[%s992 + $0x219] sm:$0xff] %v884
  %1035 = vst [vmem:[%s992 + $0x229] sm:$0xff] %v885
  %1036 = vst [vmem:[%s992 + $0x231] sm:$0xff] %v886
  %1037 = vst [vmem:[%s992 + $0x241] sm:$0xff] %v887
  %1038 = vst [vmem:[%s992 + $0x249] sm:$0xff] %v888
  %1039 = vst [vmem:[%s992 + $0x259] sm:$0xff] %v889
  %1040 = vst [vmem:[%s992 + $0x261] sm:$0xff] %v890
  %1041 = vst [vmem:[%s992 + $0x271] sm:$0xff] %v891
  %1042 = vst [vmem:[%s992 + $0x279] sm:$0xff] %v892
  %1043 = vst [vmem:[%s992 + $0x289] sm:$0xff] %v893
  %1044 = vst [vmem:[%s992 + $0x291] sm:$0xff] %v894
  %1045 = vst [vmem:[%s992 + $0x2a1] sm:$0xff] %v895
  %1046 = vst [vmem:[%s992 + $0x2a9] sm:$0xff] %v896
  %1047 = vst [vmem:[%s992 + $0x2b9] sm:$0xff] %v897
  %1048 = vst [vmem:[%s992 + $0x2c1] sm:$0xff] %v898
  %1049 = vst [vmem:[%s992 + $0x2d1] sm:$0xff] %v899
  %1050 = vst [vmem:[%s992 + $0x2d9] sm:$0xff] %v900
  %1051 = vst [vmem:[%s992 + $0x2e9] sm:$0xff] %v901
  %1052 = vst [vmem:[%s992 + $0x2f1] sm:$0xff] %v902
  %1053 = vst [vmem:[%s992 + $0x301] sm:$0xff] %v903
  %1054 = vst [vmem:[%s992 + $0x309] sm:$0xff] %v904
  %1055 = vst [vmem:[%s992 + $0x319] sm:$0xff] %v905
  %1056 = vst [vmem:[%s992 + $0x321] sm:$0xff] %v906
  %v1057 = vld [vmem:[#allocation2] sm:$0xff]
  %v1058 = vld [vmem:[#allocation2 + $0x8] sm:$0xff]
  %v1059 = vld [vmem:[#allocation2 + $0x10] sm:$0x3]
  %v1060 = vld [vmem:[#allocation2 + $0x18] sm:$0xff]
  %v1061 = vld [vmem:[#allocation2 + $0x20] sm:$0xff]
  %v1062 = vld [vmem:[#allocation2 + $0x28] sm:$0x3]
  %v1063 = vld [vmem:[#allocation2 + $0x30] sm:$0xff]
  %v1064 = vld [vmem:[#allocation2 + $0x38] sm:$0xff]
  %v1065 = vld [vmem:[#allocation2 + $0x40] sm:$0x3]
  %v1066 = vld [vmem:[#allocation2 + $0x48] sm:$0xff]
  %v1067 = vld [vmem:[#allocation2 + $0x50] sm:$0xff]
  %v1068 = vld [vmem:[#allocation2 + $0x58] sm:$0x3]
  %v1069 = vld [vmem:[#allocation2 + $0x60] sm:$0xff]
  %v1070 = vld [vmem:[#allocation2 + $0x68] sm:$0xff]
  %v1071 = vld [vmem:[#allocation2 + $0x70] sm:$0x3]
  %v1072 = vld [vmem:[#allocation2 + $0x78] sm:$0xff]
  %v1073 = vld [vmem:[#allocation2 + $0x80] sm:$0xff]
  %v1074 = vld [vmem:[#allocation2 + $0x88] sm:$0x3]
  %v1075 = vld [vmem:[#allocation2 + $0x90] sm:$0xff]
  %v1076 = vld [vmem:[#allocation2 + $0x98] sm:$0xff]
  %v1077 = vld [vmem:[#allocation2 + $0xa0] sm:$0x3]
  %v1078 = vld [vmem:[#allocation2 + $0xa8] sm:$0xff]
  %v1079 = vld [vmem:[#allocation2 + $0xb0] sm:$0xff]
  %v1080 = vld [vmem:[#allocation2 + $0xb8] sm:$0x3]
  %v1081 = vld [vmem:[#allocation2 + $0xc0] sm:$0xff]
  %v1082 = vld [vmem:[#allocation2 + $0xc8] sm:$0xff]
  %v1083 = vld [vmem:[#allocation2 + $0xd0] sm:$0x3]
  %v1084 = vld [vmem:[#allocation2 + $0xd8] sm:$0xff]
  %v1085 = vld [vmem:[#allocation2 + $0xe0] sm:$0xff]
  %v1086 = vld [vmem:[#allocation2 + $0xe8] sm:$0x3]
  %v1087 = vld [vmem:[#allocation2 + $0xf0] sm:$0xff]
  %v1088 = vld [vmem:[#allocation2 + $0xf8] sm:$0xff]
  %v1089 = vld [vmem:[#allocation2 + $0x100] sm:$0x3]
  %v1090 = vld [vmem:[#allocation2 + $0x108] sm:$0xff]
  %v1091 = vld [vmem:[#allocation2 + $0x110] sm:$0xff]
  %v1092 = vld [vmem:[#allocation2 + $0x118] sm:$0x3]
  %v1093 = vld [vmem:[#allocation2 + $0x120] sm:$0xff]
  %v1094 = vld [vmem:[#allocation2 + $0x128] sm:$0xff]
  %v1095 = vld [vmem:[#allocation2 + $0x130] sm:$0x3]
  %v1096 = vld [vmem:[#allocation2 + $0x138] sm:$0xff]
  %v1097 = vld [vmem:[#allocation2 + $0x140] sm:$0xff]
  %v1098 = vld [vmem:[#allocation2 + $0x148] sm:$0x3]
  %v1099 = vld [vmem:[#allocation2 + $0x150] sm:$0xff]
  %v1100 = vld [vmem:[#allocation2 + $0x158] sm:$0xff]
  %v1101 = vld [vmem:[#allocation2 + $0x160] sm:$0x3]
  %v1102 = vld [vmem:[#allocation2 + $0x168] sm:$0xff]
  %v1103 = vld [vmem:[#allocation2 + $0x170] sm:$0xff]
  %v1104 = vld [vmem:[#allocation2 + $0x178] sm:$0x3]
  %v1105 = vld [vmem:[#allocation2 + $0x180] sm:$0xff]
  %v1106 = vld [vmem:[#allocation2 + $0x188] sm:$0xff]
  %v1107 = vld [vmem:[#allocation2 + $0x190] sm:$0x3]
  %v1108 = vld [vmem:[#allocation2 + $0x198] sm:$0xff]
  %v1109 = vld [vmem:[#allocation2 + $0x1a0] sm:$0xff]
  %v1110 = vld [vmem:[#allocation2 + $0x1a8] sm:$0x3]
  %v1111 = vld [vmem:[#allocation2 + $0x1b0] sm:$0xff]
  %v1112 = vld [vmem:[#allocation2 + $0x1b8] sm:$0xff]
  %v1113 = vld [vmem:[#allocation2 + $0x1c0] sm:$0x3]
  %v1114 = vld [vmem:[#allocation2 + $0x1c8] sm:$0xff]
  %v1115 = vld [vmem:[#allocation2 + $0x1d0] sm:$0xff]
  %v1116 = vld [vmem:[#allocation2 + $0x1d8] sm:$0x3]
  %v1117 = vld [vmem:[#allocation2 + $0x1e0] sm:$0xff]
  %v1118 = vld [vmem:[#allocation2 + $0x1e8] sm:$0xff]
  %v1119 = vld [vmem:[#allocation2 + $0x1f0] sm:$0x3]
  %v1120 = vld [vmem:[#allocation2 + $0x1f8] sm:$0xff]
  %v1121 = vld [vmem:[#allocation2 + $0x200] sm:$0xff]
  %v1122 = vld [vmem:[#allocation2 + $0x208] sm:$0x3]
  %v1123 = vld [vmem:[#allocation2 + $0x210] sm:$0xff]
  %v1124 = vld [vmem:[#allocation2 + $0x218] sm:$0xff]
  %v1125 = vld [vmem:[#allocation2 + $0x220] sm:$0x3]
  %v1126 = vld [vmem:[#allocation2 + $0x228] sm:$0xff]
  %v1127 = vld [vmem:[#allocation2 + $0x230] sm:$0xff]
  %v1128 = vld [vmem:[#allocation2 + $0x238] sm:$0x3]
  %v1129 = vld [vmem:[#allocation2 + $0x240] sm:$0xff]
  %v1130 = vld [vmem:[#allocation2 + $0x248] sm:$0xff]
  %v1131 = vld [vmem:[#allocation2 + $0x250] sm:$0x3]
  %v1132 = vld [vmem:[#allocation2 + $0x258] sm:$0xff]
  %v1133 = vld [vmem:[#allocation2 + $0x260] sm:$0xff]
  %v1134 = vld [vmem:[#allocation2 + $0x268] sm:$0x3]
  %v1135 = vld [vmem:[#allocation2 + $0x270] sm:$0xff]
  %v1136 = vld [vmem:[#allocation2 + $0x278] sm:$0xff]
  %v1137 = vld [vmem:[#allocation2 + $0x280] sm:$0x3]
  %v1138 = vld [vmem:[#allocation2 + $0x288] sm:$0xff]
  %v1139 = vld [vmem:[#allocation2 + $0x290] sm:$0xff]
  %v1140 = vld [vmem:[#allocation2 + $0x298] sm:$0x3]
  %v1141 = vld [vmem:[#allocation2 + $0x2a0] sm:$0xff]
  %v1142 = vld [vmem:[#allocation2 + $0x2a8] sm:$0xff]
  %v1143 = vld [vmem:[#allocation2 + $0x2b0] sm:$0x3]
  %v1144 = vld [vmem:[#allocation2 + $0x2b8] sm:$0xff]
  %v1145 = vld [vmem:[#allocation2 + $0x2c0] sm:$0xff]
  %v1146 = vld [vmem:[#allocation2 + $0x2c8] sm:$0x3]
  %v1147 = vld [vmem:[#allocation2 + $0x2d0] sm:$0xff]
  %v1148 = vld [vmem:[#allocation2 + $0x2d8] sm:$0xff]
  %v1149 = vld [vmem:[#allocation2 + $0x2e0] sm:$0x3]
  %v1150 = vld [vmem:[#allocation2 + $0x2e8] sm:$0xff]
  %v1151 = vld [vmem:[#allocation2 + $0x2f0] sm:$0xff]
  %v1152 = vld [vmem:[#allocation2 + $0x2f8] sm:$0x3]
  %v1153 = vld [vmem:[#allocation2 + $0x300] sm:$0xff]
  %v1154 = vld [vmem:[#allocation2 + $0x308] sm:$0xff]
  %v1155 = vld [vmem:[#allocation2 + $0x310] sm:$0x3]
  %v1156 = vld [vmem:[#allocation2 + $0x318] sm:$0xff]
  %v1157 = vld [vmem:[#allocation2 + $0x320] sm:$0xff]
  %v1158 = vld [vmem:[#allocation2 + $0x328] sm:$0x3]
  %v1159 = vld [vmem:[#allocation2 + $0x330] sm:$0xff]
  %v1160 = vld [vmem:[#allocation2 + $0x338] sm:$0xff]
  %v1161 = vld [vmem:[#allocation2 + $0x340] sm:$0x3]
  %v1162 = vld [vmem:[#allocation2 + $0x348] sm:$0xff]
  %v1163 = vld [vmem:[#allocation2 + $0x350] sm:$0xff]
  %v1164 = vld [vmem:[#allocation2 + $0x358] sm:$0x3]
  %v1165 = vpack.c.bf16 %v1058, %v1057
  %v1166 = vpack.c.bf16 %v1061, %v1060
  %v1167 = vpack.c.bf16 %v1064, %v1063
  %v1168 = vpack.c.bf16 %v1067, %v1066
  %v1169 = vpack.c.bf16 %v1070, %v1069
  %v1170 = vpack.c.bf16 %v1073, %v1072
  %v1171 = vpack.c.bf16 %v1076, %v1075
  %v1172 = vpack.c.bf16 %v1079, %v1078
  %v1173 = vpack.c.bf16 %v1082, %v1081
  %v1174 = vpack.c.bf16 %v1085, %v1084
  %v1175 = vpack.c.bf16 %v1088, %v1087
  %v1176 = vpack.c.bf16 %v1091, %v1090
  %v1177 = vpack.c.bf16 %v1094, %v1093
  %v1178 = vpack.c.bf16 %v1097, %v1096
  %v1179 = vpack.c.bf16 %v1100, %v1099
  %v1180 = vpack.c.bf16 %v1103, %v1102
  %v1181 = vpack.c.bf16 %v1112, %v1111
  %v1182 = vpack.c.bf16 %v1115, %v1114
  %v1183 = vpack.c.bf16 %v1118, %v1117
  %v1184 = vpack.c.bf16 %v1121, %v1120
  %v1185 = vpack.c.bf16 %v1124, %v1123
  %v1186 = vpack.c.bf16 %v1127, %v1126
  %v1187 = vpack.c.bf16 %v1130, %v1129
  %v1188 = vpack.c.bf16 %v1133, %v1132
  %v1189 = vpack.c.bf16 %v1136, %v1135
  %v1190 = vpack.c.bf16 %v1139, %v1138
  %v1191 = vpack.c.bf16 %v1142, %v1141
  %v1192 = vpack.c.bf16 %v1145, %v1144
  %v1193 = vpack.c.bf16 %v1148, %v1147
  %v1194 = vpack.c.bf16 %v1151, %v1150
  %v1195 = vpack.c.bf16 %v1154, %v1153
  %v1196 = vpack.c.bf16 %v1157, %v1156
  %v1197 = vld [vmem:[%s2] sm:$0xf]
  %v1198 = vld [vmem:[%s2 + $0x4] sm:$0xf]
  %v1199 = vld [vmem:[%s2 + $0x8] sm:$0xf]
  %v1200 = vld [vmem:[%s2 + $0xc] sm:$0xf]
  %v1201 = vld [vmem:[%s2 + $0x10] sm:$0xf]
  %v1202 = vld [vmem:[%s2 + $0x14] sm:$0xf]
  %v1203 = vld [vmem:[%s2 + $0x18] sm:$0xf]
  %v1204 = vld [vmem:[%s2 + $0x1c] sm:$0xf]
  %v1205 = vld [vmem:[%s2 + $0x20] sm:$0xf]
  %v1206 = vld [vmem:[%s2 + $0x24] sm:$0xf]
  %v1207 = vld [vmem:[%s2 + $0x28] sm:$0xf]
  %v1208 = vld [vmem:[%s2 + $0x2c] sm:$0xf]
  %v1209 = vld [vmem:[%s2 + $0x30] sm:$0xf]
  %v1210 = vld [vmem:[%s2 + $0x34] sm:$0xf]
  %v1211 = vld [vmem:[%s2 + $0x38] sm:$0xf]
  %v1212 = vld [vmem:[%s2 + $0x3c] sm:$0xf]
  %vm1309 = vcmask 1046528
  %v1310 = vrot.slane %v1057, 1
  %v1311 = vrot.slane %v1058, 1
  %v1312 = vsel %vm1309, %v1310, %v1311
  %v1313 = vrot.slane %v1059, 1
  %v1314 = vsel %vm1309, %v1311, %v1313
  %v1315 = vrot.slane %v1060, 1
  %v1316 = vrot.slane %v1061, 1
  %v1317 = vsel %vm1309, %v1315, %v1316
  %v1318 = vrot.slane %v1062, 1
  %v1319 = vsel %vm1309, %v1316, %v1318
  %v1320 = vrot.slane %v1063, 1
  %v1321 = vrot.slane %v1064, 1
  %v1322 = vsel %vm1309, %v1320, %v1321
  %v1323 = vrot.slane %v1065, 1
  %v1324 = vsel %vm1309, %v1321, %v1323
  %v1325 = vrot.slane %v1066, 1
  %v1326 = vrot.slane %v1067, 1
  %v1327 = vsel %vm1309, %v1325, %v1326
  %v1328 = vrot.slane %v1068, 1
  %v1329 = vsel %vm1309, %v1326, %v1328
  %v1330 = vrot.slane %v1069, 1
  %v1331 = vrot.slane %v1070, 1
  %v1332 = vsel %vm1309, %v1330, %v1331
  %v1333 = vrot.slane %v1071, 1
  %v1334 = vsel %vm1309, %v1331, %v1333
  %v1335 = vrot.slane %v1072, 1
  %v1336 = vrot.slane %v1073, 1
  %v1337 = vsel %vm1309, %v1335, %v1336
  %v1338 = vrot.slane %v1074, 1
  %v1339 = vsel %vm1309, %v1336, %v1338
  %v1340 = vrot.slane %v1075, 1
  %v1341 = vrot.slane %v1076, 1
  %v1342 = vsel %vm1309, %v1340, %v1341
  %v1343 = vrot.slane %v1077, 1
  %v1344 = vsel %vm1309, %v1341, %v1343
  %v1345 = vrot.slane %v1078, 1
  %v1346 = vrot.slane %v1079, 1
  %v1347 = vsel %vm1309, %v1345, %v1346
  %v1348 = vrot.slane %v1080, 1
  %v1349 = vsel %vm1309, %v1346, %v1348
  %v1350 = vrot.slane %v1081, 1
  %v1351 = vrot.slane %v1082, 1
  %v1352 = vsel %vm1309, %v1350, %v1351
  %v1353 = vrot.slane %v1083, 1
  %v1354 = vsel %vm1309, %v1351, %v1353
  %v1355 = vrot.slane %v1084, 1
  %v1356 = vrot.slane %v1085, 1
  %v1357 = vsel %vm1309, %v1355, %v1356
  %v1358 = vrot.slane %v1086, 1
  %v1359 = vsel %vm1309, %v1356, %v1358
  %v1360 = vrot.slane %v1087, 1
  %v1361 = vrot.slane %v1088, 1
  %v1362 = vsel %vm1309, %v1360, %v1361
  %v1363 = vrot.slane %v1089, 1
  %v1364 = vsel %vm1309, %v1361, %v1363
  %v1365 = vrot.slane %v1090, 1
  %v1366 = vrot.slane %v1091, 1
  %v1367 = vsel %vm1309, %v1365, %v1366
  %v1368 = vrot.slane %v1092, 1
  %v1369 = vsel %vm1309, %v1366, %v1368
  %v1370 = vrot.slane %v1093, 1
  %v1371 = vrot.slane %v1094, 1
  %v1372 = vsel %vm1309, %v1370, %v1371
  %v1373 = vrot.slane %v1095, 1
  %v1374 = vsel %vm1309, %v1371, %v1373
  %v1375 = vrot.slane %v1096, 1
  %v1376 = vrot.slane %v1097, 1
  %v1377 = vsel %vm1309, %v1375, %v1376
  %v1378 = vrot.slane %v1098, 1
  %v1379 = vsel %vm1309, %v1376, %v1378
  %v1380 = vrot.slane %v1099, 1
  %v1381 = vrot.slane %v1100, 1
  %v1382 = vsel %vm1309, %v1380, %v1381
  %v1383 = vrot.slane %v1101, 1
  %v1384 = vsel %vm1309, %v1381, %v1383
  %v1385 = vrot.slane %v1102, 1
  %v1386 = vrot.slane %v1103, 1
  %v1387 = vsel %vm1309, %v1385, %v1386
  %v1388 = vrot.slane %v1104, 1
  %v1389 = vsel %vm1309, %v1386, %v1388
  %v1390 = vrot.slane %v1111, 1
  %v1391 = vrot.slane %v1112, 1
  %v1392 = vsel %vm1309, %v1390, %v1391
  %v1393 = vrot.slane %v1113, 1
  %v1394 = vsel %vm1309, %v1391, %v1393
  %v1395 = vrot.slane %v1114, 1
  %v1396 = vrot.slane %v1115, 1
  %v1397 = vsel %vm1309, %v1395, %v1396
  %v1398 = vrot.slane %v1116, 1
  %v1399 = vsel %vm1309, %v1396, %v1398
  %v1400 = vrot.slane %v1117, 1
  %v1401 = vrot.slane %v1118, 1
  %v1402 = vsel %vm1309, %v1400, %v1401
  %v1403 = vrot.slane %v1119, 1
  %v1404 = vsel %vm1309, %v1401, %v1403
  %v1405 = vrot.slane %v1120, 1
  %v1406 = vrot.slane %v1121, 1
  %v1407 = vsel %vm1309, %v1405, %v1406
  %v1408 = vrot.slane %v1122, 1
  %v1409 = vsel %vm1309, %v1406, %v1408
  %v1410 = vrot.slane %v1123, 1
  %v1411 = vrot.slane %v1124, 1
  %v1412 = vsel %vm1309, %v1410, %v1411
  %v1413 = vrot.slane %v1125, 1
  %v1414 = vsel %vm1309, %v1411, %v1413
  %v1415 = vrot.slane %v1126, 1
  %v1416 = vrot.slane %v1127, 1
  %v1417 = vsel %vm1309, %v1415, %v1416
  %v1418 = vrot.slane %v1128, 1
  %v1419 = vsel %vm1309, %v1416, %v1418
  %v1420 = vrot.slane %v1129, 1
  %v1421 = vrot.slane %v1130, 1
  %v1422 = vsel %vm1309, %v1420, %v1421
  %v1423 = vrot.slane %v1131, 1
  %v1424 = vsel %vm1309, %v1421, %v1423
  %v1425 = vrot.slane %v1132, 1
  %v1426 = vrot.slane %v1133, 1
  %v1427 = vsel %vm1309, %v1425, %v1426
  %v1428 = vrot.slane %v1134, 1
  %v1429 = vsel %vm1309, %v1426, %v1428
  %v1430 = vrot.slane %v1135, 1
  %v1431 = vrot.slane %v1136, 1
  %v1432 = vsel %vm1309, %v1430, %v1431
  %v1433 = vrot.slane %v1137, 1
  %v1434 = vsel %vm1309, %v1431, %v1433
  %v1435 = vrot.slane %v1138, 1
  %v1436 = vrot.slane %v1139, 1
  %v1437 = vsel %vm1309, %v1435, %v1436
  %v1438 = vrot.slane %v1140, 1
  %v1439 = vsel %vm1309, %v1436, %v1438
  %v1440 = vrot.slane %v1141, 1
  %v1441 = vrot.slane %v1142, 1
  %v1442 = vsel %vm1309, %v1440, %v1441
  %v1443 = vrot.slane %v1143, 1
  %v1444 = vsel %vm1309, %v1441, %v1443
  %v1445 = vrot.slane %v1144, 1
  %v1446 = vrot.slane %v1145, 1
  %v1447 = vsel %vm1309, %v1445, %v1446
  %v1448 = vrot.slane %v1146, 1
  %v1449 = vsel %vm1309, %v1446, %v1448
  %v1450 = vrot.slane %v1147, 1
  %v1451 = vrot.slane %v1148, 1
  %v1452 = vsel %vm1309, %v1450, %v1451
  %v1453 = vrot.slane %v1149, 1
  %v1454 = vsel %vm1309, %v1451, %v1453
  %v1455 = vrot.slane %v1150, 1
  %v1456 = vrot.slane %v1151, 1
  %v1457 = vsel %vm1309, %v1455, %v1456
  %v1458 = vrot.slane %v1152, 1
  %v1459 = vsel %vm1309, %v1456, %v1458
  %v1460 = vrot.slane %v1153, 1
  %v1461 = vrot.slane %v1154, 1
  %v1462 = vsel %vm1309, %v1460, %v1461
  %v1463 = vrot.slane %v1155, 1
  %v1464 = vsel %vm1309, %v1461, %v1463
  %v1465 = vrot.slane %v1156, 1
  %v1466 = vrot.slane %v1157, 1
  %v1467 = vsel %vm1309, %v1465, %v1466
  %v1468 = vrot.slane %v1158, 1
  %v1469 = vsel %vm1309, %v1466, %v1468
  %v1534 = vpack.c.bf16 %v1314, %v1312
  %v1535 = vpack.c.bf16 %v1319, %v1317
  %v1536 = vpack.c.bf16 %v1324, %v1322
  %v1537 = vpack.c.bf16 %v1329, %v1327
  %v1538 = vpack.c.bf16 %v1334, %v1332
  %v1539 = vpack.c.bf16 %v1339, %v1337
  %v1540 = vpack.c.bf16 %v1344, %v1342
  %v1541 = vpack.c.bf16 %v1349, %v1347
  %v1542 = vpack.c.bf16 %v1354, %v1352
  %v1543 = vpack.c.bf16 %v1359, %v1357
  %v1544 = vpack.c.bf16 %v1364, %v1362
  %v1545 = vpack.c.bf16 %v1369, %v1367
  %v1546 = vpack.c.bf16 %v1374, %v1372
  %v1547 = vpack.c.bf16 %v1379, %v1377
  %v1548 = vpack.c.bf16 %v1384, %v1382
  %v1549 = vpack.c.bf16 %v1389, %v1387
  %v1550 = vpack.c.bf16 %v1394, %v1392
  %v1551 = vpack.c.bf16 %v1399, %v1397
  %v1552 = vpack.c.bf16 %v1404, %v1402
  %v1553 = vpack.c.bf16 %v1409, %v1407
  %v1554 = vpack.c.bf16 %v1414, %v1412
  %v1555 = vpack.c.bf16 %v1419, %v1417
  %v1556 = vpack.c.bf16 %v1424, %v1422
  %v1557 = vpack.c.bf16 %v1429, %v1427
  %v1558 = vpack.c.bf16 %v1434, %v1432
  %v1559 = vpack.c.bf16 %v1439, %v1437
  %v1560 = vpack.c.bf16 %v1444, %v1442
  %v1561 = vpack.c.bf16 %v1449, %v1447
  %v1562 = vpack.c.bf16 %v1454, %v1452
  %v1563 = vpack.c.bf16 %v1459, %v1457
  %v1564 = vpack.c.bf16 %v1464, %v1462
  %v1565 = vpack.c.bf16 %v1469, %v1467
  %s1566 = scalar_lea.vmem %s2, 64
  %v1567 = vld [vmem:[%s1566] sm:$0xf]
  %v1568 = vld [vmem:[%s1566 + $0x4] sm:$0xf]
  %v1569 = vld [vmem:[%s1566 + $0x8] sm:$0xf]
  %v1570 = vld [vmem:[%s1566 + $0xc] sm:$0xf]
  %v1571 = vld [vmem:[%s1566 + $0x10] sm:$0xf]
  %v1572 = vld [vmem:[%s1566 + $0x14] sm:$0xf]
  %v1573 = vld [vmem:[%s1566 + $0x18] sm:$0xf]
  %v1574 = vld [vmem:[%s1566 + $0x1c] sm:$0xf]
  %v1575 = vld [vmem:[%s1566 + $0x20] sm:$0xf]
  %v1576 = vld [vmem:[%s1566 + $0x24] sm:$0xf]
  %v1577 = vld [vmem:[%s1566 + $0x28] sm:$0xf]
  %v1578 = vld [vmem:[%s1566 + $0x2c] sm:$0xf]
  %v1579 = vld [vmem:[%s1566 + $0x30] sm:$0xf]
  %v1580 = vld [vmem:[%s1566 + $0x34] sm:$0xf]
  %v1581 = vld [vmem:[%s1566 + $0x38] sm:$0xf]
  %v1582 = vld [vmem:[%s1566 + $0x3c] sm:$0xf]
  %v1599 = vunpack.c.l.b16 %v1567
  %v1600 = vunpack.c.l.b16 %v1568
  %v1601 = vunpack.c.l.b16 %v1569
  %v1602 = vunpack.c.l.b16 %v1570
  %v1603 = vunpack.c.l.b16 %v1571
  %v1604 = vunpack.c.l.b16 %v1572
  %v1605 = vunpack.c.l.b16 %v1573
  %v1606 = vunpack.c.l.b16 %v1574
  %v1607 = vunpack.c.l.b16 %v1575
  %v1608 = vunpack.c.l.b16 %v1576
  %v1609 = vunpack.c.l.b16 %v1577
  %v1610 = vunpack.c.l.b16 %v1578
  %v1611 = vunpack.c.l.b16 %v1579
  %v1612 = vunpack.c.l.b16 %v1580
  %v1613 = vunpack.c.l.b16 %v1581
  %v1614 = vunpack.c.l.b16 %v1582
  %v1615 = vpack.c.b16 %v1600, %v1599
  %v1616 = vpack.c.b16 %v1602, %v1601
  %v1617 = vpack.c.b16 %v1604, %v1603
  %v1618 = vpack.c.b16 %v1606, %v1605
  %v1619 = vpack.c.b16 %v1608, %v1607
  %v1620 = vpack.c.b16 %v1610, %v1609
  %v1621 = vpack.c.b16 %v1612, %v1611
  %v1622 = vpack.c.b16 %v1614, %v1613
  %1631 = vmatpush.bf16.msra.mxu0 %v1622
  %1632 = vmatpush.bf16.msra.mxu0 %v1621
  %1633 = vmatpush.bf16.msra.mxu0 %v1620
  %1634 = vmatpush.bf16.msra.mxu0 %v1619
  %1635 = vmatpush.bf16.msra.mxu0 %v1618
  %1636 = vmatpush.bf16.msra.mxu0 %v1617
  %1637 = vmatpush.bf16.msra.mxu0 %v1616
  %1638 = vmatpush.bf16.msra.mxu0 %v1615
  %1639 = vmatmul.bf16.gmra.mxu0 %v1534
  %v1640 = vpop.f32.mrf.mxu0
  %v1641 = vadd.f32 0.0, %v1640
  %v1642 = vpop.f32.mrf.mxu0
  %v1643 = vadd.f32 0.0, %v1642
  %1644 = vmatmul.bf16.gmra.mxu0 %v1535
  %v1645 = vpop.f32.mrf.mxu0
  %v1646 = vadd.f32 0.0, %v1645
  %v1647 = vpop.f32.mrf.mxu0
  %v1648 = vadd.f32 0.0, %v1647
  %1649 = vmatmul.bf16.gmra.mxu0 %v1536
  %v1650 = vpop.f32.mrf.mxu0
  %v1651 = vadd.f32 0.0, %v1650
  %v1652 = vpop.f32.mrf.mxu0
  %v1653 = vadd.f32 0.0, %v1652
  %1654 = vmatmul.bf16.gmra.mxu0 %v1537
  %v1655 = vpop.f32.mrf.mxu0
  %v1656 = vadd.f32 0.0, %v1655
  %v1657 = vpop.f32.mrf.mxu0
  %v1658 = vadd.f32 0.0, %v1657
  %1659 = vmatmul.bf16.gmra.mxu0 %v1538
  %v1660 = vpop.f32.mrf.mxu0
  %v1661 = vadd.f32 0.0, %v1660
  %v1662 = vpop.f32.mrf.mxu0
  %v1663 = vadd.f32 0.0, %v1662
  %1664 = vmatmul.bf16.gmra.mxu0 %v1539
  %v1665 = vpop.f32.mrf.mxu0
  %v1666 = vadd.f32 0.0, %v1665
  %v1667 = vpop.f32.mrf.mxu0
  %v1668 = vadd.f32 0.0, %v1667
  %1669 = vmatmul.bf16.gmra.mxu0 %v1540
  %v1670 = vpop.f32.mrf.mxu0
  %v1671 = vadd.f32 0.0, %v1670
  %v1672 = vpop.f32.mrf.mxu0
  %v1673 = vadd.f32 0.0, %v1672
  %1674 = vmatmul.bf16.gmra.mxu0 %v1541
  %v1675 = vpop.f32.mrf.mxu0
  %v1676 = vadd.f32 0.0, %v1675
  %v1677 = vpop.f32.mrf.mxu0
  %v1678 = vadd.f32 0.0, %v1677
  %1679 = vmatmul.bf16.gmra.mxu0 %v1542
  %v1680 = vpop.f32.mrf.mxu0
  %v1681 = vadd.f32 0.0, %v1680
  %v1682 = vpop.f32.mrf.mxu0
  %v1683 = vadd.f32 0.0, %v1682
  %1684 = vmatmul.bf16.gmra.mxu0 %v1543
  %v1685 = vpop.f32.mrf.mxu0
  %v1686 = vadd.f32 0.0, %v1685
  %v1687 = vpop.f32.mrf.mxu0
  %v1688 = vadd.f32 0.0, %v1687
  %1689 = vmatmul.bf16.gmra.mxu0 %v1544
  %v1690 = vpop.f32.mrf.mxu0
  %v1691 = vadd.f32 0.0, %v1690
  %v1692 = vpop.f32.mrf.mxu0
  %v1693 = vadd.f32 0.0, %v1692
  %1694 = vmatmul.bf16.gmra.mxu0 %v1545
  %v1695 = vpop.f32.mrf.mxu0
  %v1696 = vadd.f32 0.0, %v1695
  %v1697 = vpop.f32.mrf.mxu0
  %v1698 = vadd.f32 0.0, %v1697
  %1699 = vmatmul.bf16.gmra.mxu0 %v1546
  %v1700 = vpop.f32.mrf.mxu0
  %v1701 = vadd.f32 0.0, %v1700
  %v1702 = vpop.f32.mrf.mxu0
  %v1703 = vadd.f32 0.0, %v1702
  %1704 = vmatmul.bf16.gmra.mxu0 %v1547
  %v1705 = vpop.f32.mrf.mxu0
  %v1706 = vadd.f32 0.0, %v1705
  %v1707 = vpop.f32.mrf.mxu0
  %v1708 = vadd.f32 0.0, %v1707
  %1709 = vmatmul.bf16.gmra.mxu0 %v1548
  %v1710 = vpop.f32.mrf.mxu0
  %v1711 = vadd.f32 0.0, %v1710
  %v1712 = vpop.f32.mrf.mxu0
  %v1713 = vadd.f32 0.0, %v1712
  %1714 = vmatmul.bf16.gmra.mxu0 %v1549
  %v1715 = vpop.f32.mrf.mxu0
  %v1716 = vadd.f32 0.0, %v1715
  %v1717 = vpop.f32.mrf.mxu0
  %v1718 = vadd.f32 0.0, %v1717
  %1719 = vmatmul.bf16.gmra.mxu0 %v1550
  %v1720 = vpop.f32.mrf.mxu0
  %v1721 = vadd.f32 0.0, %v1720
  %v1722 = vpop.f32.mrf.mxu0
  %v1723 = vadd.f32 0.0, %v1722
  %1724 = vmatmul.bf16.gmra.mxu0 %v1551
  %v1725 = vpop.f32.mrf.mxu0
  %v1726 = vadd.f32 0.0, %v1725
  %v1727 = vpop.f32.mrf.mxu0
  %v1728 = vadd.f32 0.0, %v1727
  %1729 = vmatmul.bf16.gmra.mxu0 %v1552
  %v1730 = vpop.f32.mrf.mxu0
  %v1731 = vadd.f32 0.0, %v1730
  %v1732 = vpop.f32.mrf.mxu0
  %v1733 = vadd.f32 0.0, %v1732
  %1734 = vmatmul.bf16.gmra.mxu0 %v1553
  %v1735 = vpop.f32.mrf.mxu0
  %v1736 = vadd.f32 0.0, %v1735
  %v1737 = vpop.f32.mrf.mxu0
  %v1738 = vadd.f32 0.0, %v1737
  %1739 = vmatmul.bf16.gmra.mxu0 %v1554
  %v1740 = vpop.f32.mrf.mxu0
  %v1741 = vadd.f32 0.0, %v1740
  %v1742 = vpop.f32.mrf.mxu0
  %v1743 = vadd.f32 0.0, %v1742
  %1744 = vmatmul.bf16.gmra.mxu0 %v1555
  %v1745 = vpop.f32.mrf.mxu0
  %v1746 = vadd.f32 0.0, %v1745
  %v1747 = vpop.f32.mrf.mxu0
  %v1748 = vadd.f32 0.0, %v1747
  %1749 = vmatmul.bf16.gmra.mxu0 %v1556
  %v1750 = vpop.f32.mrf.mxu0
  %v1751 = vadd.f32 0.0, %v1750
  %v1752 = vpop.f32.mrf.mxu0
  %v1753 = vadd.f32 0.0, %v1752
  %1754 = vmatmul.bf16.gmra.mxu0 %v1557
  %v1755 = vpop.f32.mrf.mxu0
  %v1756 = vadd.f32 0.0, %v1755
  %v1757 = vpop.f32.mrf.mxu0
  %v1758 = vadd.f32 0.0, %v1757
  %1759 = vmatmul.bf16.gmra.mxu0 %v1558
  %v1760 = vpop.f32.mrf.mxu0
  %v1761 = vadd.f32 0.0, %v1760
  %v1762 = vpop.f32.mrf.mxu0
  %v1763 = vadd.f32 0.0, %v1762
  %1764 = vmatmul.bf16.gmra.mxu0 %v1559
  %v1765 = vpop.f32.mrf.mxu0
  %v1766 = vadd.f32 0.0, %v1765
  %v1767 = vpop.f32.mrf.mxu0
  %v1768 = vadd.f32 0.0, %v1767
  %1769 = vmatmul.bf16.gmra.mxu0 %v1560
  %v1770 = vpop.f32.mrf.mxu0
  %v1771 = vadd.f32 0.0, %v1770
  %v1772 = vpop.f32.mrf.mxu0
  %v1773 = vadd.f32 0.0, %v1772
  %1774 = vmatmul.bf16.gmra.mxu0 %v1561
  %v1775 = vpop.f32.mrf.mxu0
  %v1776 = vadd.f32 0.0, %v1775
  %v1777 = vpop.f32.mrf.mxu0
  %v1778 = vadd.f32 0.0, %v1777
  %1779 = vmatmul.bf16.gmra.mxu0 %v1562
  %v1780 = vpop.f32.mrf.mxu0
  %v1781 = vadd.f32 0.0, %v1780
  %v1782 = vpop.f32.mrf.mxu0
  %v1783 = vadd.f32 0.0, %v1782
  %1784 = vmatmul.bf16.gmra.mxu0 %v1563
  %v1785 = vpop.f32.mrf.mxu0
  %v1786 = vadd.f32 0.0, %v1785
  %v1787 = vpop.f32.mrf.mxu0
  %v1788 = vadd.f32 0.0, %v1787
  %1789 = vmatmul.bf16.gmra.mxu0 %v1564
  %v1790 = vpop.f32.mrf.mxu0
  %v1791 = vadd.f32 0.0, %v1790
  %v1792 = vpop.f32.mrf.mxu0
  %v1793 = vadd.f32 0.0, %v1792
  %1794 = vmatmul.bf16.gmra.mxu0 %v1565
  %v1795 = vpop.f32.mrf.mxu0
  %v1796 = vadd.f32 0.0, %v1795
  %v1797 = vpop.f32.mrf.mxu0
  %v1798 = vadd.f32 0.0, %v1797
  %1799 = vdwg.mxu0
  %v1816 = vunpack.c.l.b16 %v1197
  %v1817 = vunpack.c.l.b16 %v1198
  %v1818 = vunpack.c.l.b16 %v1199
  %v1819 = vunpack.c.l.b16 %v1200
  %v1820 = vunpack.c.l.b16 %v1201
  %v1821 = vunpack.c.l.b16 %v1202
  %v1822 = vunpack.c.l.b16 %v1203
  %v1823 = vunpack.c.l.b16 %v1204
  %v1824 = vunpack.c.l.b16 %v1205
  %v1825 = vunpack.c.l.b16 %v1206
  %v1826 = vunpack.c.l.b16 %v1207
  %v1827 = vunpack.c.l.b16 %v1208
  %v1828 = vunpack.c.l.b16 %v1209
  %v1829 = vunpack.c.l.b16 %v1210
  %v1830 = vunpack.c.l.b16 %v1211
  %v1831 = vunpack.c.l.b16 %v1212
  %v1832 = vpack.c.b16 %v1817, %v1816
  %v1833 = vpack.c.b16 %v1819, %v1818
  %v1834 = vpack.c.b16 %v1821, %v1820
  %v1835 = vpack.c.b16 %v1823, %v1822
  %v1836 = vpack.c.b16 %v1825, %v1824
  %v1837 = vpack.c.b16 %v1827, %v1826
  %v1838 = vpack.c.b16 %v1829, %v1828
  %v1839 = vpack.c.b16 %v1831, %v1830
  %1848 = vmatpush.bf16.msra.mxu0 %v1839
  %1849 = vmatpush.bf16.msra.mxu0 %v1838
  %1850 = vmatpush.bf16.msra.mxu0 %v1837
  %1851 = vmatpush.bf16.msra.mxu0 %v1836
  %1852 = vmatpush.bf16.msra.mxu0 %v1835
  %1853 = vmatpush.bf16.msra.mxu0 %v1834
  %1854 = vmatpush.bf16.msra.mxu0 %v1833
  %1855 = vmatpush.bf16.msra.mxu0 %v1832
  %1856 = vmatmul.bf16.gmra.mxu0 %v1165
  %v1857 = vpop.f32.mrf.mxu0
  %v1858 = vadd.f32 %v1641, %v1857
  %v1859 = vpop.f32.mrf.mxu0
  %v1860 = vadd.f32 %v1643, %v1859
  %1861 = vmatmul.bf16.gmra.mxu0 %v1166
  %v1862 = vpop.f32.mrf.mxu0
  %v1863 = vadd.f32 %v1646, %v1862
  %v1864 = vpop.f32.mrf.mxu0
  %v1865 = vadd.f32 %v1648, %v1864
  %1866 = vmatmul.bf16.gmra.mxu0 %v1167
  %v1867 = vpop.f32.mrf.mxu0
  %v1868 = vadd.f32 %v1651, %v1867
  %v1869 = vpop.f32.mrf.mxu0
  %v1870 = vadd.f32 %v1653, %v1869
  %1871 = vmatmul.bf16.gmra.mxu0 %v1168
  %v1872 = vpop.f32.mrf.mxu0
  %v1873 = vadd.f32 %v1656, %v1872
  %v1874 = vpop.f32.mrf.mxu0
  %v1875 = vadd.f32 %v1658, %v1874
  %1876 = vmatmul.bf16.gmra.mxu0 %v1169
  %v1877 = vpop.f32.mrf.mxu0
  %v1878 = vadd.f32 %v1661, %v1877
  %v1879 = vpop.f32.mrf.mxu0
  %v1880 = vadd.f32 %v1663, %v1879
  %1881 = vmatmul.bf16.gmra.mxu0 %v1170
  %v1882 = vpop.f32.mrf.mxu0
  %v1883 = vadd.f32 %v1666, %v1882
  %v1884 = vpop.f32.mrf.mxu0
  %v1885 = vadd.f32 %v1668, %v1884
  %1886 = vmatmul.bf16.gmra.mxu0 %v1171
  %v1887 = vpop.f32.mrf.mxu0
  %v1888 = vadd.f32 %v1671, %v1887
  %v1889 = vpop.f32.mrf.mxu0
  %v1890 = vadd.f32 %v1673, %v1889
  %1891 = vmatmul.bf16.gmra.mxu0 %v1172
  %v1892 = vpop.f32.mrf.mxu0
  %v1893 = vadd.f32 %v1676, %v1892
  %v1894 = vpop.f32.mrf.mxu0
  %v1895 = vadd.f32 %v1678, %v1894
  %1896 = vmatmul.bf16.gmra.mxu0 %v1173
  %v1897 = vpop.f32.mrf.mxu0
  %v1898 = vadd.f32 %v1681, %v1897
  %v1899 = vpop.f32.mrf.mxu0
  %v1900 = vadd.f32 %v1683, %v1899
  %1901 = vmatmul.bf16.gmra.mxu0 %v1174
  %v1902 = vpop.f32.mrf.mxu0
  %v1903 = vadd.f32 %v1686, %v1902
  %v1904 = vpop.f32.mrf.mxu0
  %v1905 = vadd.f32 %v1688, %v1904
  %1906 = vmatmul.bf16.gmra.mxu0 %v1175
  %v1907 = vpop.f32.mrf.mxu0
  %v1908 = vadd.f32 %v1691, %v1907
  %v1909 = vpop.f32.mrf.mxu0
  %v1910 = vadd.f32 %v1693, %v1909
  %1911 = vmatmul.bf16.gmra.mxu0 %v1176
  %v1912 = vpop.f32.mrf.mxu0
  %v1913 = vadd.f32 %v1696, %v1912
  %v1914 = vpop.f32.mrf.mxu0
  %v1915 = vadd.f32 %v1698, %v1914
  %1916 = vmatmul.bf16.gmra.mxu0 %v1177
  %v1917 = vpop.f32.mrf.mxu0
  %v1918 = vadd.f32 %v1701, %v1917
  %v1919 = vpop.f32.mrf.mxu0
  %v1920 = vadd.f32 %v1703, %v1919
  %1921 = vmatmul.bf16.gmra.mxu0 %v1178
  %v1922 = vpop.f32.mrf.mxu0
  %v1923 = vadd.f32 %v1706, %v1922
  %v1924 = vpop.f32.mrf.mxu0
  %v1925 = vadd.f32 %v1708, %v1924
  %1926 = vmatmul.bf16.gmra.mxu0 %v1179
  %v1927 = vpop.f32.mrf.mxu0
  %v1928 = vadd.f32 %v1711, %v1927
  %v1929 = vpop.f32.mrf.mxu0
  %v1930 = vadd.f32 %v1713, %v1929
  %1931 = vmatmul.bf16.gmra.mxu0 %v1180
  %v1932 = vpop.f32.mrf.mxu0
  %v1933 = vadd.f32 %v1716, %v1932
  %v1934 = vpop.f32.mrf.mxu0
  %v1935 = vadd.f32 %v1718, %v1934
  %1936 = vmatmul.bf16.gmra.mxu0 %v1181
  %v1937 = vpop.f32.mrf.mxu0
  %v1938 = vadd.f32 %v1721, %v1937
  %v1939 = vpop.f32.mrf.mxu0
  %v1940 = vadd.f32 %v1723, %v1939
  %1941 = vmatmul.bf16.gmra.mxu0 %v1182
  %v1942 = vpop.f32.mrf.mxu0
  %v1943 = vadd.f32 %v1726, %v1942
  %v1944 = vpop.f32.mrf.mxu0
  %v1945 = vadd.f32 %v1728, %v1944
  %1946 = vmatmul.bf16.gmra.mxu0 %v1183
  %v1947 = vpop.f32.mrf.mxu0
  %v1948 = vadd.f32 %v1731, %v1947
  %v1949 = vpop.f32.mrf.mxu0
  %v1950 = vadd.f32 %v1733, %v1949
  %1951 = vmatmul.bf16.gmra.mxu0 %v1184
  %v1952 = vpop.f32.mrf.mxu0
  %v1953 = vadd.f32 %v1736, %v1952
  %v1954 = vpop.f32.mrf.mxu0
  %v1955 = vadd.f32 %v1738, %v1954
  %1956 = vmatmul.bf16.gmra.mxu0 %v1185
  %v1957 = vpop.f32.mrf.mxu0
  %v1958 = vadd.f32 %v1741, %v1957
  %v1959 = vpop.f32.mrf.mxu0
  %v1960 = vadd.f32 %v1743, %v1959
  %1961 = vmatmul.bf16.gmra.mxu0 %v1186
  %v1962 = vpop.f32.mrf.mxu0
  %v1963 = vadd.f32 %v1746, %v1962
  %v1964 = vpop.f32.mrf.mxu0
  %v1965 = vadd.f32 %v1748, %v1964
  %1966 = vmatmul.bf16.gmra.mxu0 %v1187
  %v1967 = vpop.f32.mrf.mxu0
  %v1968 = vadd.f32 %v1751, %v1967
  %v1969 = vpop.f32.mrf.mxu0
  %v1970 = vadd.f32 %v1753, %v1969
  %1971 = vmatmul.bf16.gmra.mxu0 %v1188
  %v1972 = vpop.f32.mrf.mxu0
  %v1973 = vadd.f32 %v1756, %v1972
  %v1974 = vpop.f32.mrf.mxu0
  %v1975 = vadd.f32 %v1758, %v1974
  %1976 = vmatmul.bf16.gmra.mxu0 %v1189
  %v1977 = vpop.f32.mrf.mxu0
  %v1978 = vadd.f32 %v1761, %v1977
  %v1979 = vpop.f32.mrf.mxu0
  %v1980 = vadd.f32 %v1763, %v1979
  %1981 = vmatmul.bf16.gmra.mxu0 %v1190
  %v1982 = vpop.f32.mrf.mxu0
  %v1983 = vadd.f32 %v1766, %v1982
  %v1984 = vpop.f32.mrf.mxu0
  %v1985 = vadd.f32 %v1768, %v1984
  %1986 = vmatmul.bf16.gmra.mxu0 %v1191
  %v1987 = vpop.f32.mrf.mxu0
  %v1988 = vadd.f32 %v1771, %v1987
  %v1989 = vpop.f32.mrf.mxu0
  %v1990 = vadd.f32 %v1773, %v1989
  %1991 = vmatmul.bf16.gmra.mxu0 %v1192
  %v1992 = vpop.f32.mrf.mxu0
  %v1993 = vadd.f32 %v1776, %v1992
  %v1994 = vpop.f32.mrf.mxu0
  %v1995 = vadd.f32 %v1778, %v1994
  %1996 = vmatmul.bf16.gmra.mxu0 %v1193
  %v1997 = vpop.f32.mrf.mxu0
  %v1998 = vadd.f32 %v1781, %v1997
  %v1999 = vpop.f32.mrf.mxu0
  %v2000 = vadd.f32 %v1783, %v1999
  %2001 = vmatmul.bf16.gmra.mxu0 %v1194
  %v2002 = vpop.f32.mrf.mxu0
  %v2003 = vadd.f32 %v1786, %v2002
  %v2004 = vpop.f32.mrf.mxu0
  %v2005 = vadd.f32 %v1788, %v2004
  %2006 = vmatmul.bf16.gmra.mxu0 %v1195
  %v2007 = vpop.f32.mrf.mxu0
  %v2008 = vadd.f32 %v1791, %v2007
  %v2009 = vpop.f32.mrf.mxu0
  %v2010 = vadd.f32 %v1793, %v2009
  %2011 = vmatmul.bf16.gmra.mxu0 %v1196
  %v2012 = vpop.f32.mrf.mxu0
  %v2013 = vadd.f32 %v1796, %v2012
  %v2014 = vpop.f32.mrf.mxu0
  %v2015 = vadd.f32 %v1798, %v2014
  %2016 = vdwg.mxu0
  %vm2017 = vcmask 1045504
  %v2018 = vrot.slane %v1057, 2
  %v2019 = vrot.slane %v1058, 2
  %v2020 = vsel %vm2017, %v2018, %v2019
  %v2021 = vrot.slane %v1059, 2
  %v2022 = vsel %vm2017, %v2019, %v2021
  %v2023 = vrot.slane %v1060, 2
  %v2024 = vrot.slane %v1061, 2
  %v2025 = vsel %vm2017, %v2023, %v2024
  %v2026 = vrot.slane %v1062, 2
  %v2027 = vsel %vm2017, %v2024, %v2026
  %v2028 = vrot.slane %v1063, 2
  %v2029 = vrot.slane %v1064, 2
  %v2030 = vsel %vm2017, %v2028, %v2029
  %v2031 = vrot.slane %v1065, 2
  %v2032 = vsel %vm2017, %v2029, %v2031
  %v2033 = vrot.slane %v1066, 2
  %v2034 = vrot.slane %v1067, 2
  %v2035 = vsel %vm2017, %v2033, %v2034
  %v2036 = vrot.slane %v1068, 2
  %v2037 = vsel %vm2017, %v2034, %v2036
  %v2038 = vrot.slane %v1069, 2
  %v2039 = vrot.slane %v1070, 2
  %v2040 = vsel %vm2017, %v2038, %v2039
  %v2041 = vrot.slane %v1071, 2
  %v2042 = vsel %vm2017, %v2039, %v2041
  %v2043 = vrot.slane %v1072, 2
  %v2044 = vrot.slane %v1073, 2
  %v2045 = vsel %vm2017, %v2043, %v2044
  %v2046 = vrot.slane %v1074, 2
  %v2047 = vsel %vm2017, %v2044, %v2046
  %v2048 = vrot.slane %v1075, 2
  %v2049 = vrot.slane %v1076, 2
  %v2050 = vsel %vm2017, %v2048, %v2049
  %v2051 = vrot.slane %v1077, 2
  %v2052 = vsel %vm2017, %v2049, %v2051
  %v2053 = vrot.slane %v1078, 2
  %v2054 = vrot.slane %v1079, 2
  %v2055 = vsel %vm2017, %v2053, %v2054
  %v2056 = vrot.slane %v1080, 2
  %v2057 = vsel %vm2017, %v2054, %v2056
  %v2058 = vrot.slane %v1081, 2
  %v2059 = vrot.slane %v1082, 2
  %v2060 = vsel %vm2017, %v2058, %v2059
  %v2061 = vrot.slane %v1083, 2
  %v2062 = vsel %vm2017, %v2059, %v2061
  %v2063 = vrot.slane %v1084, 2
  %v2064 = vrot.slane %v1085, 2
  %v2065 = vsel %vm2017, %v2063, %v2064
  %v2066 = vrot.slane %v1086, 2
  %v2067 = vsel %vm2017, %v2064, %v2066
  %v2068 = vrot.slane %v1087, 2
  %v2069 = vrot.slane %v1088, 2
  %v2070 = vsel %vm2017, %v2068, %v2069
  %v2071 = vrot.slane %v1089, 2
  %v2072 = vsel %vm2017, %v2069, %v2071
  %v2073 = vrot.slane %v1090, 2
  %v2074 = vrot.slane %v1091, 2
  %v2075 = vsel %vm2017, %v2073, %v2074
  %v2076 = vrot.slane %v1092, 2
  %v2077 = vsel %vm2017, %v2074, %v2076
  %v2078 = vrot.slane %v1093, 2
  %v2079 = vrot.slane %v1094, 2
  %v2080 = vsel %vm2017, %v2078, %v2079
  %v2081 = vrot.slane %v1095, 2
  %v2082 = vsel %vm2017, %v2079, %v2081
  %v2083 = vrot.slane %v1096, 2
  %v2084 = vrot.slane %v1097, 2
  %v2085 = vsel %vm2017, %v2083, %v2084
  %v2086 = vrot.slane %v1098, 2
  %v2087 = vsel %vm2017, %v2084, %v2086
  %v2088 = vrot.slane %v1099, 2
  %v2089 = vrot.slane %v1100, 2
  %v2090 = vsel %vm2017, %v2088, %v2089
  %v2091 = vrot.slane %v1101, 2
  %v2092 = vsel %vm2017, %v2089, %v2091
  %v2093 = vrot.slane %v1102, 2
  %v2094 = vrot.slane %v1103, 2
  %v2095 = vsel %vm2017, %v2093, %v2094
  %v2096 = vrot.slane %v1104, 2
  %v2097 = vsel %vm2017, %v2094, %v2096
  %v2098 = vrot.slane %v1111, 2
  %v2099 = vrot.slane %v1112, 2
  %v2100 = vsel %vm2017, %v2098, %v2099
  %v2101 = vrot.slane %v1113, 2
  %v2102 = vsel %vm2017, %v2099, %v2101
  %v2103 = vrot.slane %v1114, 2
  %v2104 = vrot.slane %v1115, 2
  %v2105 = vsel %vm2017, %v2103, %v2104
  %v2106 = vrot.slane %v1116, 2
  %v2107 = vsel %vm2017, %v2104, %v2106
  %v2108 = vrot.slane %v1117, 2
  %v2109 = vrot.slane %v1118, 2
  %v2110 = vsel %vm2017, %v2108, %v2109
  %v2111 = vrot.slane %v1119, 2
  %v2112 = vsel %vm2017, %v2109, %v2111
  %v2113 = vrot.slane %v1120, 2
  %v2114 = vrot.slane %v1121, 2
  %v2115 = vsel %vm2017, %v2113, %v2114
  %v2116 = vrot.slane %v1122, 2
  %v2117 = vsel %vm2017, %v2114, %v2116
  %v2118 = vrot.slane %v1123, 2
  %v2119 = vrot.slane %v1124, 2
  %v2120 = vsel %vm2017, %v2118, %v2119
  %v2121 = vrot.slane %v1125, 2
  %v2122 = vsel %vm2017, %v2119, %v2121
  %v2123 = vrot.slane %v1126, 2
  %v2124 = vrot.slane %v1127, 2
  %v2125 = vsel %vm2017, %v2123, %v2124
  %v2126 = vrot.slane %v1128, 2
  %v2127 = vsel %vm2017, %v2124, %v2126
  %v2128 = vrot.slane %v1129, 2
  %v2129 = vrot.slane %v1130, 2
  %v2130 = vsel %vm2017, %v2128, %v2129
  %v2131 = vrot.slane %v1131, 2
  %v2132 = vsel %vm2017, %v2129, %v2131
  %v2133 = vrot.slane %v1132, 2
  %v2134 = vrot.slane %v1133, 2
  %v2135 = vsel %vm2017, %v2133, %v2134
  %v2136 = vrot.slane %v1134, 2
  %v2137 = vsel %vm2017, %v2134, %v2136
  %v2138 = vrot.slane %v1135, 2
  %v2139 = vrot.slane %v1136, 2
  %v2140 = vsel %vm2017, %v2138, %v2139
  %v2141 = vrot.slane %v1137, 2
  %v2142 = vsel %vm2017, %v2139, %v2141
  %v2143 = vrot.slane %v1138, 2
  %v2144 = vrot.slane %v1139, 2
  %v2145 = vsel %vm2017, %v2143, %v2144
  %v2146 = vrot.slane %v1140, 2
  %v2147 = vsel %vm2017, %v2144, %v2146
  %v2148 = vrot.slane %v1141, 2
  %v2149 = vrot.slane %v1142, 2
  %v2150 = vsel %vm2017, %v2148, %v2149
  %v2151 = vrot.slane %v1143, 2
  %v2152 = vsel %vm2017, %v2149, %v2151
  %v2153 = vrot.slane %v1144, 2
  %v2154 = vrot.slane %v1145, 2
  %v2155 = vsel %vm2017, %v2153, %v2154
  %v2156 = vrot.slane %v1146, 2
  %v2157 = vsel %vm2017, %v2154, %v2156
  %v2158 = vrot.slane %v1147, 2
  %v2159 = vrot.slane %v1148, 2
  %v2160 = vsel %vm2017, %v2158, %v2159
  %v2161 = vrot.slane %v1149, 2
  %v2162 = vsel %vm2017, %v2159, %v2161
  %v2163 = vrot.slane %v1150, 2
  %v2164 = vrot.slane %v1151, 2
  %v2165 = vsel %vm2017, %v2163, %v2164
  %v2166 = vrot.slane %v1152, 2
  %v2167 = vsel %vm2017, %v2164, %v2166
  %v2168 = vrot.slane %v1153, 2
  %v2169 = vrot.slane %v1154, 2
  %v2170 = vsel %vm2017, %v2168, %v2169
  %v2171 = vrot.slane %v1155, 2
  %v2172 = vsel %vm2017, %v2169, %v2171
  %v2173 = vrot.slane %v1156, 2
  %v2174 = vrot.slane %v1157, 2
  %v2175 = vsel %vm2017, %v2173, %v2174
  %v2176 = vrot.slane %v1158, 2
  %v2177 = vsel %vm2017, %v2174, %v2176
  %v2242 = vpack.c.bf16 %v2022, %v2020
  %v2243 = vpack.c.bf16 %v2027, %v2025
  %v2244 = vpack.c.bf16 %v2032, %v2030
  %v2245 = vpack.c.bf16 %v2037, %v2035
  %v2246 = vpack.c.bf16 %v2042, %v2040
  %v2247 = vpack.c.bf16 %v2047, %v2045
  %v2248 = vpack.c.bf16 %v2052, %v2050
  %v2249 = vpack.c.bf16 %v2057, %v2055
  %v2250 = vpack.c.bf16 %v2062, %v2060
  %v2251 = vpack.c.bf16 %v2067, %v2065
  %v2252 = vpack.c.bf16 %v2072, %v2070
  %v2253 = vpack.c.bf16 %v2077, %v2075
  %v2254 = vpack.c.bf16 %v2082, %v2080
  %v2255 = vpack.c.bf16 %v2087, %v2085
  %v2256 = vpack.c.bf16 %v2092, %v2090
  %v2257 = vpack.c.bf16 %v2097, %v2095
  %v2258 = vpack.c.bf16 %v2102, %v2100
  %v2259 = vpack.c.bf16 %v2107, %v2105
  %v2260 = vpack.c.bf16 %v2112, %v2110
  %v2261 = vpack.c.bf16 %v2117, %v2115
  %v2262 = vpack.c.bf16 %v2122, %v2120
  %v2263 = vpack.c.bf16 %v2127, %v2125
  %v2264 = vpack.c.bf16 %v2132, %v2130
  %v2265 = vpack.c.bf16 %v2137, %v2135
  %v2266 = vpack.c.bf16 %v2142, %v2140
  %v2267 = vpack.c.bf16 %v2147, %v2145
  %v2268 = vpack.c.bf16 %v2152, %v2150
  %v2269 = vpack.c.bf16 %v2157, %v2155
  %v2270 = vpack.c.bf16 %v2162, %v2160
  %v2271 = vpack.c.bf16 %v2167, %v2165
  %v2272 = vpack.c.bf16 %v2172, %v2170
  %v2273 = vpack.c.bf16 %v2177, %v2175
  %s2274 = scalar_lea.vmem %s2, 128
  %v2275 = vld [vmem:[%s2274] sm:$0xf]
  %v2276 = vld [vmem:[%s2274 + $0x4] sm:$0xf]
  %v2277 = vld [vmem:[%s2274 + $0x8] sm:$0xf]
  %v2278 = vld [vmem:[%s2274 + $0xc] sm:$0xf]
  %v2279 = vld [vmem:[%s2274 + $0x10] sm:$0xf]
  %v2280 = vld [vmem:[%s2274 + $0x14] sm:$0xf]
  %v2281 = vld [vmem:[%s2274 + $0x18] sm:$0xf]
  %v2282 = vld [vmem:[%s2274 + $0x1c] sm:$0xf]
  %v2283 = vld [vmem:[%s2274 + $0x20] sm:$0xf]
  %v2284 = vld [vmem:[%s2274 + $0x24] sm:$0xf]
  %v2285 = vld [vmem:[%s2274 + $0x28] sm:$0xf]
  %v2286 = vld [vmem:[%s2274 + $0x2c] sm:$0xf]
  %v2287 = vld [vmem:[%s2274 + $0x30] sm:$0xf]
  %v2288 = vld [vmem:[%s2274 + $0x34] sm:$0xf]
  %v2289 = vld [vmem:[%s2274 + $0x38] sm:$0xf]
  %v2290 = vld [vmem:[%s2274 + $0x3c] sm:$0xf]
  %v2307 = vunpack.c.l.b16 %v2275
  %v2308 = vunpack.c.l.b16 %v2276
  %v2309 = vunpack.c.l.b16 %v2277
  %v2310 = vunpack.c.l.b16 %v2278
  %v2311 = vunpack.c.l.b16 %v2279
  %v2312 = vunpack.c.l.b16 %v2280
  %v2313 = vunpack.c.l.b16 %v2281
  %v2314 = vunpack.c.l.b16 %v2282
  %v2315 = vunpack.c.l.b16 %v2283
  %v2316 = vunpack.c.l.b16 %v2284
  %v2317 = vunpack.c.l.b16 %v2285
  %v2318 = vunpack.c.l.b16 %v2286
  %v2319 = vunpack.c.l.b16 %v2287
  %v2320 = vunpack.c.l.b16 %v2288
  %v2321 = vunpack.c.l.b16 %v2289
  %v2322 = vunpack.c.l.b16 %v2290
  %v2323 = vpack.c.b16 %v2308, %v2307
  %v2324 = vpack.c.b16 %v2310, %v2309
  %v2325 = vpack.c.b16 %v2312, %v2311
  %v2326 = vpack.c.b16 %v2314, %v2313
  %v2327 = vpack.c.b16 %v2316, %v2315
  %v2328 = vpack.c.b16 %v2318, %v2317
  %v2329 = vpack.c.b16 %v2320, %v2319
  %v2330 = vpack.c.b16 %v2322, %v2321
  %2339 = vmatpush.bf16.msra.mxu0 %v2330
  %2340 = vmatpush.bf16.msra.mxu0 %v2329
  %2341 = vmatpush.bf16.msra.mxu0 %v2328
  %2342 = vmatpush.bf16.msra.mxu0 %v2327
  %2343 = vmatpush.bf16.msra.mxu0 %v2326
  %2344 = vmatpush.bf16.msra.mxu0 %v2325
  %2345 = vmatpush.bf16.msra.mxu0 %v2324
  %2346 = vmatpush.bf16.msra.mxu0 %v2323
  %2347 = vmatmul.bf16.gmra.mxu0 %v2242
  %v2348 = vpop.f32.mrf.mxu0
  %v2349 = vadd.f32 0.0, %v2348
  %v2350 = vpop.f32.mrf.mxu0
  %v2351 = vadd.f32 0.0, %v2350
  %2352 = vmatmul.bf16.gmra.mxu0 %v2243
  %v2353 = vpop.f32.mrf.mxu0
  %v2354 = vadd.f32 0.0, %v2353
  %v2355 = vpop.f32.mrf.mxu0
  %v2356 = vadd.f32 0.0, %v2355
  %2357 = vmatmul.bf16.gmra.mxu0 %v2244
  %v2358 = vpop.f32.mrf.mxu0
  %v2359 = vadd.f32 0.0, %v2358
  %v2360 = vpop.f32.mrf.mxu0
  %v2361 = vadd.f32 0.0, %v2360
  %2362 = vmatmul.bf16.gmra.mxu0 %v2245
  %v2363 = vpop.f32.mrf.mxu0
  %v2364 = vadd.f32 0.0, %v2363
  %v2365 = vpop.f32.mrf.mxu0
  %v2366 = vadd.f32 0.0, %v2365
  %2367 = vmatmul.bf16.gmra.mxu0 %v2246
  %v2368 = vpop.f32.mrf.mxu0
  %v2369 = vadd.f32 0.0, %v2368
  %v2370 = vpop.f32.mrf.mxu0
  %v2371 = vadd.f32 0.0, %v2370
  %2372 = vmatmul.bf16.gmra.mxu0 %v2247
  %v2373 = vpop.f32.mrf.mxu0
  %v2374 = vadd.f32 0.0, %v2373
  %v2375 = vpop.f32.mrf.mxu0
  %v2376 = vadd.f32 0.0, %v2375
  %2377 = vmatmul.bf16.gmra.mxu0 %v2248
  %v2378 = vpop.f32.mrf.mxu0
  %v2379 = vadd.f32 0.0, %v2378
  %v2380 = vpop.f32.mrf.mxu0
  %v2381 = vadd.f32 0.0, %v2380
  %2382 = vmatmul.bf16.gmra.mxu0 %v2249
  %v2383 = vpop.f32.mrf.mxu0
  %v2384 = vadd.f32 0.0, %v2383
  %v2385 = vpop.f32.mrf.mxu0
  %v2386 = vadd.f32 0.0, %v2385
  %2387 = vmatmul.bf16.gmra.mxu0 %v2250
  %v2388 = vpop.f32.mrf.mxu0
  %v2389 = vadd.f32 0.0, %v2388
  %v2390 = vpop.f32.mrf.mxu0
  %v2391 = vadd.f32 0.0, %v2390
  %2392 = vmatmul.bf16.gmra.mxu0 %v2251
  %v2393 = vpop.f32.mrf.mxu0
  %v2394 = vadd.f32 0.0, %v2393
  %v2395 = vpop.f32.mrf.mxu0
  %v2396 = vadd.f32 0.0, %v2395
  %2397 = vmatmul.bf16.gmra.mxu0 %v2252
  %v2398 = vpop.f32.mrf.mxu0
  %v2399 = vadd.f32 0.0, %v2398
  %v2400 = vpop.f32.mrf.mxu0
  %v2401 = vadd.f32 0.0, %v2400
  %2402 = vmatmul.bf16.gmra.mxu0 %v2253
  %v2403 = vpop.f32.mrf.mxu0
  %v2404 = vadd.f32 0.0, %v2403
  %v2405 = vpop.f32.mrf.mxu0
  %v2406 = vadd.f32 0.0, %v2405
  %2407 = vmatmul.bf16.gmra.mxu0 %v2254
  %v2408 = vpop.f32.mrf.mxu0
  %v2409 = vadd.f32 0.0, %v2408
  %v2410 = vpop.f32.mrf.mxu0
  %v2411 = vadd.f32 0.0, %v2410
  %2412 = vmatmul.bf16.gmra.mxu0 %v2255
  %v2413 = vpop.f32.mrf.mxu0
  %v2414 = vadd.f32 0.0, %v2413
  %v2415 = vpop.f32.mrf.mxu0
  %v2416 = vadd.f32 0.0, %v2415
  %2417 = vmatmul.bf16.gmra.mxu0 %v2256
  %v2418 = vpop.f32.mrf.mxu0
  %v2419 = vadd.f32 0.0, %v2418
  %v2420 = vpop.f32.mrf.mxu0
  %v2421 = vadd.f32 0.0, %v2420
  %2422 = vmatmul.bf16.gmra.mxu0 %v2257
  %v2423 = vpop.f32.mrf.mxu0
  %v2424 = vadd.f32 0.0, %v2423
  %v2425 = vpop.f32.mrf.mxu0
  %v2426 = vadd.f32 0.0, %v2425
  %2427 = vmatmul.bf16.gmra.mxu0 %v2258
  %v2428 = vpop.f32.mrf.mxu0
  %v2429 = vadd.f32 0.0, %v2428
  %v2430 = vpop.f32.mrf.mxu0
  %v2431 = vadd.f32 0.0, %v2430
  %2432 = vmatmul.bf16.gmra.mxu0 %v2259
  %v2433 = vpop.f32.mrf.mxu0
  %v2434 = vadd.f32 0.0, %v2433
  %v2435 = vpop.f32.mrf.mxu0
  %v2436 = vadd.f32 0.0, %v2435
  %2437 = vmatmul.bf16.gmra.mxu0 %v2260
  %v2438 = vpop.f32.mrf.mxu0
  %v2439 = vadd.f32 0.0, %v2438
  %v2440 = vpop.f32.mrf.mxu0
  %v2441 = vadd.f32 0.0, %v2440
  %2442 = vmatmul.bf16.gmra.mxu0 %v2261
  %v2443 = vpop.f32.mrf.mxu0
  %v2444 = vadd.f32 0.0, %v2443
  %v2445 = vpop.f32.mrf.mxu0
  %v2446 = vadd.f32 0.0, %v2445
  %2447 = vmatmul.bf16.gmra.mxu0 %v2262
  %v2448 = vpop.f32.mrf.mxu0
  %v2449 = vadd.f32 0.0, %v2448
  %v2450 = vpop.f32.mrf.mxu0
  %v2451 = vadd.f32 0.0, %v2450
  %2452 = vmatmul.bf16.gmra.mxu0 %v2263
  %v2453 = vpop.f32.mrf.mxu0
  %v2454 = vadd.f32 0.0, %v2453
  %v2455 = vpop.f32.mrf.mxu0
  %v2456 = vadd.f32 0.0, %v2455
  %2457 = vmatmul.bf16.gmra.mxu0 %v2264
  %v2458 = vpop.f32.mrf.mxu0
  %v2459 = vadd.f32 0.0, %v2458
  %v2460 = vpop.f32.mrf.mxu0
  %v2461 = vadd.f32 0.0, %v2460
  %2462 = vmatmul.bf16.gmra.mxu0 %v2265
  %v2463 = vpop.f32.mrf.mxu0
  %v2464 = vadd.f32 0.0, %v2463
  %v2465 = vpop.f32.mrf.mxu0
  %v2466 = vadd.f32 0.0, %v2465
  %2467 = vmatmul.bf16.gmra.mxu0 %v2266
  %v2468 = vpop.f32.mrf.mxu0
  %v2469 = vadd.f32 0.0, %v2468
  %v2470 = vpop.f32.mrf.mxu0
  %v2471 = vadd.f32 0.0, %v2470
  %2472 = vmatmul.bf16.gmra.mxu0 %v2267
  %v2473 = vpop.f32.mrf.mxu0
  %v2474 = vadd.f32 0.0, %v2473
  %v2475 = vpop.f32.mrf.mxu0
  %v2476 = vadd.f32 0.0, %v2475
  %2477 = vmatmul.bf16.gmra.mxu0 %v2268
  %v2478 = vpop.f32.mrf.mxu0
  %v2479 = vadd.f32 0.0, %v2478
  %v2480 = vpop.f32.mrf.mxu0
  %v2481 = vadd.f32 0.0, %v2480
  %2482 = vmatmul.bf16.gmra.mxu0 %v2269
  %v2483 = vpop.f32.mrf.mxu0
  %v2484 = vadd.f32 0.0, %v2483
  %v2485 = vpop.f32.mrf.mxu0
  %v2486 = vadd.f32 0.0, %v2485
  %2487 = vmatmul.bf16.gmra.mxu0 %v2270
  %v2488 = vpop.f32.mrf.mxu0
  %v2489 = vadd.f32 0.0, %v2488
  %v2490 = vpop.f32.mrf.mxu0
  %v2491 = vadd.f32 0.0, %v2490
  %2492 = vmatmul.bf16.gmra.mxu0 %v2271
  %v2493 = vpop.f32.mrf.mxu0
  %v2494 = vadd.f32 0.0, %v2493
  %v2495 = vpop.f32.mrf.mxu0
  %v2496 = vadd.f32 0.0, %v2495
  %2497 = vmatmul.bf16.gmra.mxu0 %v2272
  %v2498 = vpop.f32.mrf.mxu0
  %v2499 = vadd.f32 0.0, %v2498
  %v2500 = vpop.f32.mrf.mxu0
  %v2501 = vadd.f32 0.0, %v2500
  %2502 = vmatmul.bf16.gmra.mxu0 %v2273
  %v2503 = vpop.f32.mrf.mxu0
  %v2504 = vadd.f32 0.0, %v2503
  %v2505 = vpop.f32.mrf.mxu0
  %v2506 = vadd.f32 0.0, %v2505
  %2507 = vdwg.mxu0
  %v2508 = vadd.f32 %v1858, %v2349
  %v2509 = vadd.f32 %v1860, %v2351
  %v2510 = vadd.f32 %v1863, %v2354
  %v2511 = vadd.f32 %v1865, %v2356
  %v2512 = vadd.f32 %v1868, %v2359
  %v2513 = vadd.f32 %v1870, %v2361
  %v2514 = vadd.f32 %v1873, %v2364
  %v2515 = vadd.f32 %v1875, %v2366
  %v2516 = vadd.f32 %v1878, %v2369
  %v2517 = vadd.f32 %v1880, %v2371
  %v2518 = vadd.f32 %v1883, %v2374
  %v2519 = vadd.f32 %v1885, %v2376
  %v2520 = vadd.f32 %v1888, %v2379
  %v2521 = vadd.f32 %v1890, %v2381
  %v2522 = vadd.f32 %v1893, %v2384
  %v2523 = vadd.f32 %v1895, %v2386
  %v2524 = vadd.f32 %v1898, %v2389
  %v2525 = vadd.f32 %v1900, %v2391
  %v2526 = vadd.f32 %v1903, %v2394
  %v2527 = vadd.f32 %v1905, %v2396
  %v2528 = vadd.f32 %v1908, %v2399
  %v2529 = vadd.f32 %v1910, %v2401
  %v2530 = vadd.f32 %v1913, %v2404
  %v2531 = vadd.f32 %v1915, %v2406
  %v2532 = vadd.f32 %v1918, %v2409
  %v2533 = vadd.f32 %v1920, %v2411
  %v2534 = vadd.f32 %v1923, %v2414
  %v2535 = vadd.f32 %v1925, %v2416
  %v2536 = vadd.f32 %v1928, %v2419
  %v2537 = vadd.f32 %v1930, %v2421
  %v2538 = vadd.f32 %v1933, %v2424
  %v2539 = vadd.f32 %v1935, %v2426
  %v2540 = vadd.f32 %v1938, %v2429
  %v2541 = vadd.f32 %v1940, %v2431
  %v2542 = vadd.f32 %v1943, %v2434
  %v2543 = vadd.f32 %v1945, %v2436
  %v2544 = vadd.f32 %v1948, %v2439
  %v2545 = vadd.f32 %v1950, %v2441
  %v2546 = vadd.f32 %v1953, %v2444
  %v2547 = vadd.f32 %v1955, %v2446
  %v2548 = vadd.f32 %v1958, %v2449
  %v2549 = vadd.f32 %v1960, %v2451
  %v2550 = vadd.f32 %v1963, %v2454
  %v2551 = vadd.f32 %v1965, %v2456
  %v2552 = vadd.f32 %v1968, %v2459
  %v2553 = vadd.f32 %v1970, %v2461
  %v2554 = vadd.f32 %v1973, %v2464
  %v2555 = vadd.f32 %v1975, %v2466
  %v2556 = vadd.f32 %v1978, %v2469
  %v2557 = vadd.f32 %v1980, %v2471
  %v2558 = vadd.f32 %v1983, %v2474
  %v2559 = vadd.f32 %v1985, %v2476
  %v2560 = vadd.f32 %v1988, %v2479
  %v2561 = vadd.f32 %v1990, %v2481
  %v2562 = vadd.f32 %v1993, %v2484
  %v2563 = vadd.f32 %v1995, %v2486
  %v2564 = vadd.f32 %v1998, %v2489
  %v2565 = vadd.f32 %v2000, %v2491
  %v2566 = vadd.f32 %v2003, %v2494
  %v2567 = vadd.f32 %v2005, %v2496
  %v2568 = vadd.f32 %v2008, %v2499
  %v2569 = vadd.f32 %v2010, %v2501
  %v2570 = vadd.f32 %v2013, %v2504
  %v2571 = vadd.f32 %v2015, %v2506
  %v2572 = vpack.c.bf16 %v1106, %v1105
  %v2573 = vpack.c.bf16 %v1160, %v1159
  %s2574 = scalar_lea.vmem %s2, 192
  %v2575 = vld [vmem:[%s2574] sm:$0xf]
  %v2576 = vld [vmem:[%s2574 + $0x4] sm:$0xf]
  %v2577 = vld [vmem:[%s2574 + $0x8] sm:$0xf]
  %v2578 = vld [vmem:[%s2574 + $0xc] sm:$0xf]
  %v2579 = vld [vmem:[%s2574 + $0x10] sm:$0xf]
  %v2580 = vld [vmem:[%s2574 + $0x14] sm:$0xf]
  %v2581 = vld [vmem:[%s2574 + $0x18] sm:$0xf]
  %v2582 = vld [vmem:[%s2574 + $0x1c] sm:$0xf]
  %v2583 = vld [vmem:[%s2574 + $0x20] sm:$0xf]
  %v2584 = vld [vmem:[%s2574 + $0x24] sm:$0xf]
  %v2585 = vld [vmem:[%s2574 + $0x28] sm:$0xf]
  %v2586 = vld [vmem:[%s2574 + $0x2c] sm:$0xf]
  %v2587 = vld [vmem:[%s2574 + $0x30] sm:$0xf]
  %v2588 = vld [vmem:[%s2574 + $0x34] sm:$0xf]
  %v2589 = vld [vmem:[%s2574 + $0x38] sm:$0xf]
  %v2590 = vld [vmem:[%s2574 + $0x3c] sm:$0xf]
  %v2607 = vunpack.c.l.b16 %v2575
  %v2608 = vunpack.c.l.b16 %v2576
  %v2609 = vunpack.c.l.b16 %v2577
  %v2610 = vunpack.c.l.b16 %v2578
  %v2611 = vunpack.c.l.b16 %v2579
  %v2612 = vunpack.c.l.b16 %v2580
  %v2613 = vunpack.c.l.b16 %v2581
  %v2614 = vunpack.c.l.b16 %v2582
  %v2615 = vunpack.c.l.b16 %v2583
  %v2616 = vunpack.c.l.b16 %v2584
  %v2617 = vunpack.c.l.b16 %v2585
  %v2618 = vunpack.c.l.b16 %v2586
  %v2619 = vunpack.c.l.b16 %v2587
  %v2620 = vunpack.c.l.b16 %v2588
  %v2621 = vunpack.c.l.b16 %v2589
  %v2622 = vunpack.c.l.b16 %v2590
  %v2623 = vpack.c.b16 %v2608, %v2607
  %v2624 = vpack.c.b16 %v2610, %v2609
  %v2625 = vpack.c.b16 %v2612, %v2611
  %v2626 = vpack.c.b16 %v2614, %v2613
  %v2627 = vpack.c.b16 %v2616, %v2615
  %v2628 = vpack.c.b16 %v2618, %v2617
  %v2629 = vpack.c.b16 %v2620, %v2619
  %v2630 = vpack.c.b16 %v2622, %v2621
  %2639 = vmatpush.bf16.msra.mxu0 %v2630
  %2640 = vmatpush.bf16.msra.mxu0 %v2629
  %2641 = vmatpush.bf16.msra.mxu0 %v2628
  %2642 = vmatpush.bf16.msra.mxu0 %v2627
  %2643 = vmatpush.bf16.msra.mxu0 %v2626
  %2644 = vmatpush.bf16.msra.mxu0 %v2625
  %2645 = vmatpush.bf16.msra.mxu0 %v2624
  %2646 = vmatpush.bf16.msra.mxu0 %v2623
  %2647 = vmatmul.bf16.gmra.mxu0 %v1166
  %v2648 = vpop.f32.mrf.mxu0
  %v2649 = vadd.f32 0.0, %v2648
  %v2650 = vpop.f32.mrf.mxu0
  %v2651 = vadd.f32 0.0, %v2650
  %2652 = vmatmul.bf16.gmra.mxu0 %v1167
  %v2653 = vpop.f32.mrf.mxu0
  %v2654 = vadd.f32 0.0, %v2653
  %v2655 = vpop.f32.mrf.mxu0
  %v2656 = vadd.f32 0.0, %v2655
  %2657 = vmatmul.bf16.gmra.mxu0 %v1168
  %v2658 = vpop.f32.mrf.mxu0
  %v2659 = vadd.f32 0.0, %v2658
  %v2660 = vpop.f32.mrf.mxu0
  %v2661 = vadd.f32 0.0, %v2660
  %2662 = vmatmul.bf16.gmra.mxu0 %v1169
  %v2663 = vpop.f32.mrf.mxu0
  %v2664 = vadd.f32 0.0, %v2663
  %v2665 = vpop.f32.mrf.mxu0
  %v2666 = vadd.f32 0.0, %v2665
  %2667 = vmatmul.bf16.gmra.mxu0 %v1170
  %v2668 = vpop.f32.mrf.mxu0
  %v2669 = vadd.f32 0.0, %v2668
  %v2670 = vpop.f32.mrf.mxu0
  %v2671 = vadd.f32 0.0, %v2670
  %2672 = vmatmul.bf16.gmra.mxu0 %v1171
  %v2673 = vpop.f32.mrf.mxu0
  %v2674 = vadd.f32 0.0, %v2673
  %v2675 = vpop.f32.mrf.mxu0
  %v2676 = vadd.f32 0.0, %v2675
  %2677 = vmatmul.bf16.gmra.mxu0 %v1172
  %v2678 = vpop.f32.mrf.mxu0
  %v2679 = vadd.f32 0.0, %v2678
  %v2680 = vpop.f32.mrf.mxu0
  %v2681 = vadd.f32 0.0, %v2680
  %2682 = vmatmul.bf16.gmra.mxu0 %v1173
  %v2683 = vpop.f32.mrf.mxu0
  %v2684 = vadd.f32 0.0, %v2683
  %v2685 = vpop.f32.mrf.mxu0
  %v2686 = vadd.f32 0.0, %v2685
  %2687 = vmatmul.bf16.gmra.mxu0 %v1174
  %v2688 = vpop.f32.mrf.mxu0
  %v2689 = vadd.f32 0.0, %v2688
  %v2690 = vpop.f32.mrf.mxu0
  %v2691 = vadd.f32 0.0, %v2690
  %2692 = vmatmul.bf16.gmra.mxu0 %v1175
  %v2693 = vpop.f32.mrf.mxu0
  %v2694 = vadd.f32 0.0, %v2693
  %v2695 = vpop.f32.mrf.mxu0
  %v2696 = vadd.f32 0.0, %v2695
  %2697 = vmatmul.bf16.gmra.mxu0 %v1176
  %v2698 = vpop.f32.mrf.mxu0
  %v2699 = vadd.f32 0.0, %v2698
  %v2700 = vpop.f32.mrf.mxu0
  %v2701 = vadd.f32 0.0, %v2700
  %2702 = vmatmul.bf16.gmra.mxu0 %v1177
  %v2703 = vpop.f32.mrf.mxu0
  %v2704 = vadd.f32 0.0, %v2703
  %v2705 = vpop.f32.mrf.mxu0
  %v2706 = vadd.f32 0.0, %v2705
  %2707 = vmatmul.bf16.gmra.mxu0 %v1178
  %v2708 = vpop.f32.mrf.mxu0
  %v2709 = vadd.f32 0.0, %v2708
  %v2710 = vpop.f32.mrf.mxu0
  %v2711 = vadd.f32 0.0, %v2710
  %2712 = vmatmul.bf16.gmra.mxu0 %v1179
  %v2713 = vpop.f32.mrf.mxu0
  %v2714 = vadd.f32 0.0, %v2713
  %v2715 = vpop.f32.mrf.mxu0
  %v2716 = vadd.f32 0.0, %v2715
  %2717 = vmatmul.bf16.gmra.mxu0 %v1180
  %v2718 = vpop.f32.mrf.mxu0
  %v2719 = vadd.f32 0.0, %v2718
  %v2720 = vpop.f32.mrf.mxu0
  %v2721 = vadd.f32 0.0, %v2720
  %2722 = vmatmul.bf16.gmra.mxu0 %v2572
  %v2723 = vpop.f32.mrf.mxu0
  %v2724 = vadd.f32 0.0, %v2723
  %v2725 = vpop.f32.mrf.mxu0
  %v2726 = vadd.f32 0.0, %v2725
  %2727 = vmatmul.bf16.gmra.mxu0 %v1182
  %v2728 = vpop.f32.mrf.mxu0
  %v2729 = vadd.f32 0.0, %v2728
  %v2730 = vpop.f32.mrf.mxu0
  %v2731 = vadd.f32 0.0, %v2730
  %2732 = vmatmul.bf16.gmra.mxu0 %v1183
  %v2733 = vpop.f32.mrf.mxu0
  %v2734 = vadd.f32 0.0, %v2733
  %v2735 = vpop.f32.mrf.mxu0
  %v2736 = vadd.f32 0.0, %v2735
  %2737 = vmatmul.bf16.gmra.mxu0 %v1184
  %v2738 = vpop.f32.mrf.mxu0
  %v2739 = vadd.f32 0.0, %v2738
  %v2740 = vpop.f32.mrf.mxu0
  %v2741 = vadd.f32 0.0, %v2740
  %2742 = vmatmul.bf16.gmra.mxu0 %v1185
  %v2743 = vpop.f32.mrf.mxu0
  %v2744 = vadd.f32 0.0, %v2743
  %v2745 = vpop.f32.mrf.mxu0
  %v2746 = vadd.f32 0.0, %v2745
  %2747 = vmatmul.bf16.gmra.mxu0 %v1186
  %v2748 = vpop.f32.mrf.mxu0
  %v2749 = vadd.f32 0.0, %v2748
  %v2750 = vpop.f32.mrf.mxu0
  %v2751 = vadd.f32 0.0, %v2750
  %2752 = vmatmul.bf16.gmra.mxu0 %v1187
  %v2753 = vpop.f32.mrf.mxu0
  %v2754 = vadd.f32 0.0, %v2753
  %v2755 = vpop.f32.mrf.mxu0
  %v2756 = vadd.f32 0.0, %v2755
  %2757 = vmatmul.bf16.gmra.mxu0 %v1188
  %v2758 = vpop.f32.mrf.mxu0
  %v2759 = vadd.f32 0.0, %v2758
  %v2760 = vpop.f32.mrf.mxu0
  %v2761 = vadd.f32 0.0, %v2760
  %2762 = vmatmul.bf16.gmra.mxu0 %v1189
  %v2763 = vpop.f32.mrf.mxu0
  %v2764 = vadd.f32 0.0, %v2763
  %v2765 = vpop.f32.mrf.mxu0
  %v2766 = vadd.f32 0.0, %v2765
  %2767 = vmatmul.bf16.gmra.mxu0 %v1190
  %v2768 = vpop.f32.mrf.mxu0
  %v2769 = vadd.f32 0.0, %v2768
  %v2770 = vpop.f32.mrf.mxu0
  %v2771 = vadd.f32 0.0, %v2770
  %2772 = vmatmul.bf16.gmra.mxu0 %v1191
  %v2773 = vpop.f32.mrf.mxu0
  %v2774 = vadd.f32 0.0, %v2773
  %v2775 = vpop.f32.mrf.mxu0
  %v2776 = vadd.f32 0.0, %v2775
  %2777 = vmatmul.bf16.gmra.mxu0 %v1192
  %v2778 = vpop.f32.mrf.mxu0
  %v2779 = vadd.f32 0.0, %v2778
  %v2780 = vpop.f32.mrf.mxu0
  %v2781 = vadd.f32 0.0, %v2780
  %2782 = vmatmul.bf16.gmra.mxu0 %v1193
  %v2783 = vpop.f32.mrf.mxu0
  %v2784 = vadd.f32 0.0, %v2783
  %v2785 = vpop.f32.mrf.mxu0
  %v2786 = vadd.f32 0.0, %v2785
  %2787 = vmatmul.bf16.gmra.mxu0 %v1194
  %v2788 = vpop.f32.mrf.mxu0
  %v2789 = vadd.f32 0.0, %v2788
  %v2790 = vpop.f32.mrf.mxu0
  %v2791 = vadd.f32 0.0, %v2790
  %2792 = vmatmul.bf16.gmra.mxu0 %v1195
  %v2793 = vpop.f32.mrf.mxu0
  %v2794 = vadd.f32 0.0, %v2793
  %v2795 = vpop.f32.mrf.mxu0
  %v2796 = vadd.f32 0.0, %v2795
  %2797 = vmatmul.bf16.gmra.mxu0 %v1196
  %v2798 = vpop.f32.mrf.mxu0
  %v2799 = vadd.f32 0.0, %v2798
  %v2800 = vpop.f32.mrf.mxu0
  %v2801 = vadd.f32 0.0, %v2800
  %2802 = vmatmul.bf16.gmra.mxu0 %v2573
  %v2803 = vpop.f32.mrf.mxu0
  %v2804 = vadd.f32 0.0, %v2803
  %v2805 = vpop.f32.mrf.mxu0
  %v2806 = vadd.f32 0.0, %v2805
  %2807 = vdwg.mxu0
  %v2808 = vadd.f32 %v2508, %v2649
  %v2809 = vadd.f32 %v2509, %v2651
  %v2810 = vadd.f32 %v2510, %v2654
  %v2811 = vadd.f32 %v2511, %v2656
  %v2812 = vadd.f32 %v2512, %v2659
  %v2813 = vadd.f32 %v2513, %v2661
  %v2814 = vadd.f32 %v2514, %v2664
  %v2815 = vadd.f32 %v2515, %v2666
  %v2816 = vadd.f32 %v2516, %v2669
  %v2817 = vadd.f32 %v2517, %v2671
  %v2818 = vadd.f32 %v2518, %v2674
  %v2819 = vadd.f32 %v2519, %v2676
  %v2820 = vadd.f32 %v2520, %v2679
  %v2821 = vadd.f32 %v2521, %v2681
  %v2822 = vadd.f32 %v2522, %v2684
  %v2823 = vadd.f32 %v2523, %v2686
  %v2824 = vadd.f32 %v2524, %v2689
  %v2825 = vadd.f32 %v2525, %v2691
  %v2826 = vadd.f32 %v2526, %v2694
  %v2827 = vadd.f32 %v2527, %v2696
  %v2828 = vadd.f32 %v2528, %v2699
  %v2829 = vadd.f32 %v2529, %v2701
  %v2830 = vadd.f32 %v2530, %v2704
  %v2831 = vadd.f32 %v2531, %v2706
  %v2832 = vadd.f32 %v2532, %v2709
  %v2833 = vadd.f32 %v2533, %v2711
  %v2834 = vadd.f32 %v2534, %v2714
  %v2835 = vadd.f32 %v2535, %v2716
  %v2836 = vadd.f32 %v2536, %v2719
  %v2837 = vadd.f32 %v2537, %v2721
  %v2838 = vadd.f32 %v2538, %v2724
  %v2839 = vadd.f32 %v2539, %v2726
  %v2840 = vadd.f32 %v2540, %v2729
  %v2841 = vadd.f32 %v2541, %v2731
  %v2842 = vadd.f32 %v2542, %v2734
  %v2843 = vadd.f32 %v2543, %v2736
  %v2844 = vadd.f32 %v2544, %v2739
  %v2845 = vadd.f32 %v2545, %v2741
  %v2846 = vadd.f32 %v2546, %v2744
  %v2847 = vadd.f32 %v2547, %v2746
  %v2848 = vadd.f32 %v2548, %v2749
  %v2849 = vadd.f32 %v2549, %v2751
  %v2850 = vadd.f32 %v2550, %v2754
  %v2851 = vadd.f32 %v2551, %v2756
  %v2852 = vadd.f32 %v2552, %v2759
  %v2853 = vadd.f32 %v2553, %v2761
  %v2854 = vadd.f32 %v2554, %v2764
  %v2855 = vadd.f32 %v2555, %v2766
  %v2856 = vadd.f32 %v2556, %v2769
  %v2857 = vadd.f32 %v2557, %v2771
  %v2858 = vadd.f32 %v2558, %v2774
  %v2859 = vadd.f32 %v2559, %v2776
  %v2860 = vadd.f32 %v2560, %v2779
  %v2861 = vadd.f32 %v2561, %v2781
  %v2862 = vadd.f32 %v2562, %v2784
  %v2863 = vadd.f32 %v2563, %v2786
  %v2864 = vadd.f32 %v2564, %v2789
  %v2865 = vadd.f32 %v2565, %v2791
  %v2866 = vadd.f32 %v2566, %v2794
  %v2867 = vadd.f32 %v2567, %v2796
  %v2868 = vadd.f32 %v2568, %v2799
  %v2869 = vadd.f32 %v2569, %v2801
  %v2870 = vadd.f32 %v2570, %v2804
  %v2871 = vadd.f32 %v2571, %v2806
  %v2878 = vrot.slane %v1105, 1
  %v2879 = vrot.slane %v1106, 1
  %v2880 = vsel %vm1309, %v2878, %v2879
  %v2881 = vrot.slane %v1107, 1
  %v2882 = vsel %vm1309, %v2879, %v2881
  %v2883 = vrot.slane %v1159, 1
  %v2884 = vrot.slane %v1160, 1
  %v2885 = vsel %vm1309, %v2883, %v2884
  %v2886 = vrot.slane %v1161, 1
  %v2887 = vsel %vm1309, %v2884, %v2886
  %v2892 = vpack.c.bf16 %v2882, %v2880
  %v2893 = vpack.c.bf16 %v2887, %v2885
  %s2894 = scalar_lea.vmem %s2, 256
  %v2895 = vld [vmem:[%s2894] sm:$0xf]
  %v2896 = vld [vmem:[%s2894 + $0x4] sm:$0xf]
  %v2897 = vld [vmem:[%s2894 + $0x8] sm:$0xf]
  %v2898 = vld [vmem:[%s2894 + $0xc] sm:$0xf]
  %v2899 = vld [vmem:[%s2894 + $0x10] sm:$0xf]
  %v2900 = vld [vmem:[%s2894 + $0x14] sm:$0xf]
  %v2901 = vld [vmem:[%s2894 + $0x18] sm:$0xf]
  %v2902 = vld [vmem:[%s2894 + $0x1c] sm:$0xf]
  %v2903 = vld [vmem:[%s2894 + $0x20] sm:$0xf]
  %v2904 = vld [vmem:[%s2894 + $0x24] sm:$0xf]
  %v2905 = vld [vmem:[%s2894 + $0x28] sm:$0xf]
  %v2906 = vld [vmem:[%s2894 + $0x2c] sm:$0xf]
  %v2907 = vld [vmem:[%s2894 + $0x30] sm:$0xf]
  %v2908 = vld [vmem:[%s2894 + $0x34] sm:$0xf]
  %v2909 = vld [vmem:[%s2894 + $0x38] sm:$0xf]
  %v2910 = vld [vmem:[%s2894 + $0x3c] sm:$0xf]
  %v2927 = vunpack.c.l.b16 %v2895
  %v2928 = vunpack.c.l.b16 %v2896
  %v2929 = vunpack.c.l.b16 %v2897
  %v2930 = vunpack.c.l.b16 %v2898
  %v2931 = vunpack.c.l.b16 %v2899
  %v2932 = vunpack.c.l.b16 %v2900
  %v2933 = vunpack.c.l.b16 %v2901
  %v2934 = vunpack.c.l.b16 %v2902
  %v2935 = vunpack.c.l.b16 %v2903
  %v2936 = vunpack.c.l.b16 %v2904
  %v2937 = vunpack.c.l.b16 %v2905
  %v2938 = vunpack.c.l.b16 %v2906
  %v2939 = vunpack.c.l.b16 %v2907
  %v2940 = vunpack.c.l.b16 %v2908
  %v2941 = vunpack.c.l.b16 %v2909
  %v2942 = vunpack.c.l.b16 %v2910
  %v2943 = vpack.c.b16 %v2928, %v2927
  %v2944 = vpack.c.b16 %v2930, %v2929
  %v2945 = vpack.c.b16 %v2932, %v2931
  %v2946 = vpack.c.b16 %v2934, %v2933
  %v2947 = vpack.c.b16 %v2936, %v2935
  %v2948 = vpack.c.b16 %v2938, %v2937
  %v2949 = vpack.c.b16 %v2940, %v2939
  %v2950 = vpack.c.b16 %v2942, %v2941
  %2959 = vmatpush.bf16.msra.mxu0 %v2950
  %2960 = vmatpush.bf16.msra.mxu0 %v2949
  %2961 = vmatpush.bf16.msra.mxu0 %v2948
  %2962 = vmatpush.bf16.msra.mxu0 %v2947
  %2963 = vmatpush.bf16.msra.mxu0 %v2946
  %2964 = vmatpush.bf16.msra.mxu0 %v2945
  %2965 = vmatpush.bf16.msra.mxu0 %v2944
  %2966 = vmatpush.bf16.msra.mxu0 %v2943
  %2967 = vmatmul.bf16.gmra.mxu0 %v1535
  %v2968 = vpop.f32.mrf.mxu0
  %v2969 = vadd.f32 0.0, %v2968
  %v2970 = vpop.f32.mrf.mxu0
  %v2971 = vadd.f32 0.0, %v2970
  %2972 = vmatmul.bf16.gmra.mxu0 %v1536
  %v2973 = vpop.f32.mrf.mxu0
  %v2974 = vadd.f32 0.0, %v2973
  %v2975 = vpop.f32.mrf.mxu0
  %v2976 = vadd.f32 0.0, %v2975
  %2977 = vmatmul.bf16.gmra.mxu0 %v1537
  %v2978 = vpop.f32.mrf.mxu0
  %v2979 = vadd.f32 0.0, %v2978
  %v2980 = vpop.f32.mrf.mxu0
  %v2981 = vadd.f32 0.0, %v2980
  %2982 = vmatmul.bf16.gmra.mxu0 %v1538
  %v2983 = vpop.f32.mrf.mxu0
  %v2984 = vadd.f32 0.0, %v2983
  %v2985 = vpop.f32.mrf.mxu0
  %v2986 = vadd.f32 0.0, %v2985
  %2987 = vmatmul.bf16.gmra.mxu0 %v1539
  %v2988 = vpop.f32.mrf.mxu0
  %v2989 = vadd.f32 0.0, %v2988
  %v2990 = vpop.f32.mrf.mxu0
  %v2991 = vadd.f32 0.0, %v2990
  %2992 = vmatmul.bf16.gmra.mxu0 %v1540
  %v2993 = vpop.f32.mrf.mxu0
  %v2994 = vadd.f32 0.0, %v2993
  %v2995 = vpop.f32.mrf.mxu0
  %v2996 = vadd.f32 0.0, %v2995
  %2997 = vmatmul.bf16.gmra.mxu0 %v1541
  %v2998 = vpop.f32.mrf.mxu0
  %v2999 = vadd.f32 0.0, %v2998
  %v3000 = vpop.f32.mrf.mxu0
  %v3001 = vadd.f32 0.0, %v3000
  %3002 = vmatmul.bf16.gmra.mxu0 %v1542
  %v3003 = vpop.f32.mrf.mxu0
  %v3004 = vadd.f32 0.0, %v3003
  %v3005 = vpop.f32.mrf.mxu0
  %v3006 = vadd.f32 0.0, %v3005
  %3007 = vmatmul.bf16.gmra.mxu0 %v1543
  %v3008 = vpop.f32.mrf.mxu0
  %v3009 = vadd.f32 0.0, %v3008
  %v3010 = vpop.f32.mrf.mxu0
  %v3011 = vadd.f32 0.0, %v3010
  %3012 = vmatmul.bf16.gmra.mxu0 %v1544
  %v3013 = vpop.f32.mrf.mxu0
  %v3014 = vadd.f32 0.0, %v3013
  %v3015 = vpop.f32.mrf.mxu0
  %v3016 = vadd.f32 0.0, %v3015
  %3017 = vmatmul.bf16.gmra.mxu0 %v1545
  %v3018 = vpop.f32.mrf.mxu0
  %v3019 = vadd.f32 0.0, %v3018
  %v3020 = vpop.f32.mrf.mxu0
  %v3021 = vadd.f32 0.0, %v3020
  %3022 = vmatmul.bf16.gmra.mxu0 %v1546
  %v3023 = vpop.f32.mrf.mxu0
  %v3024 = vadd.f32 0.0, %v3023
  %v3025 = vpop.f32.mrf.mxu0
  %v3026 = vadd.f32 0.0, %v3025
  %3027 = vmatmul.bf16.gmra.mxu0 %v1547
  %v3028 = vpop.f32.mrf.mxu0
  %v3029 = vadd.f32 0.0, %v3028
  %v3030 = vpop.f32.mrf.mxu0
  %v3031 = vadd.f32 0.0, %v3030
  %3032 = vmatmul.bf16.gmra.mxu0 %v1548
  %v3033 = vpop.f32.mrf.mxu0
  %v3034 = vadd.f32 0.0, %v3033
  %v3035 = vpop.f32.mrf.mxu0
  %v3036 = vadd.f32 0.0, %v3035
  %3037 = vmatmul.bf16.gmra.mxu0 %v1549
  %v3038 = vpop.f32.mrf.mxu0
  %v3039 = vadd.f32 0.0, %v3038
  %v3040 = vpop.f32.mrf.mxu0
  %v3041 = vadd.f32 0.0, %v3040
  %3042 = vmatmul.bf16.gmra.mxu0 %v2892
  %v3043 = vpop.f32.mrf.mxu0
  %v3044 = vadd.f32 0.0, %v3043
  %v3045 = vpop.f32.mrf.mxu0
  %v3046 = vadd.f32 0.0, %v3045
  %3047 = vmatmul.bf16.gmra.mxu0 %v1551
  %v3048 = vpop.f32.mrf.mxu0
  %v3049 = vadd.f32 0.0, %v3048
  %v3050 = vpop.f32.mrf.mxu0
  %v3051 = vadd.f32 0.0, %v3050
  %3052 = vmatmul.bf16.gmra.mxu0 %v1552
  %v3053 = vpop.f32.mrf.mxu0
  %v3054 = vadd.f32 0.0, %v3053
  %v3055 = vpop.f32.mrf.mxu0
  %v3056 = vadd.f32 0.0, %v3055
  %3057 = vmatmul.bf16.gmra.mxu0 %v1553
  %v3058 = vpop.f32.mrf.mxu0
  %v3059 = vadd.f32 0.0, %v3058
  %v3060 = vpop.f32.mrf.mxu0
  %v3061 = vadd.f32 0.0, %v3060
  %3062 = vmatmul.bf16.gmra.mxu0 %v1554
  %v3063 = vpop.f32.mrf.mxu0
  %v3064 = vadd.f32 0.0, %v3063
  %v3065 = vpop.f32.mrf.mxu0
  %v3066 = vadd.f32 0.0, %v3065
  %3067 = vmatmul.bf16.gmra.mxu0 %v1555
  %v3068 = vpop.f32.mrf.mxu0
  %v3069 = vadd.f32 0.0, %v3068
  %v3070 = vpop.f32.mrf.mxu0
  %v3071 = vadd.f32 0.0, %v3070
  %3072 = vmatmul.bf16.gmra.mxu0 %v1556
  %v3073 = vpop.f32.mrf.mxu0
  %v3074 = vadd.f32 0.0, %v3073
  %v3075 = vpop.f32.mrf.mxu0
  %v3076 = vadd.f32 0.0, %v3075
  %3077 = vmatmul.bf16.gmra.mxu0 %v1557
  %v3078 = vpop.f32.mrf.mxu0
  %v3079 = vadd.f32 0.0, %v3078
  %v3080 = vpop.f32.mrf.mxu0
  %v3081 = vadd.f32 0.0, %v3080
  %3082 = vmatmul.bf16.gmra.mxu0 %v1558
  %v3083 = vpop.f32.mrf.mxu0
  %v3084 = vadd.f32 0.0, %v3083
  %v3085 = vpop.f32.mrf.mxu0
  %v3086 = vadd.f32 0.0, %v3085
  %3087 = vmatmul.bf16.gmra.mxu0 %v1559
  %v3088 = vpop.f32.mrf.mxu0
  %v3089 = vadd.f32 0.0, %v3088
  %v3090 = vpop.f32.mrf.mxu0
  %v3091 = vadd.f32 0.0, %v3090
  %3092 = vmatmul.bf16.gmra.mxu0 %v1560
  %v3093 = vpop.f32.mrf.mxu0
  %v3094 = vadd.f32 0.0, %v3093
  %v3095 = vpop.f32.mrf.mxu0
  %v3096 = vadd.f32 0.0, %v3095
  %3097 = vmatmul.bf16.gmra.mxu0 %v1561
  %v3098 = vpop.f32.mrf.mxu0
  %v3099 = vadd.f32 0.0, %v3098
  %v3100 = vpop.f32.mrf.mxu0
  %v3101 = vadd.f32 0.0, %v3100
  %3102 = vmatmul.bf16.gmra.mxu0 %v1562
  %v3103 = vpop.f32.mrf.mxu0
  %v3104 = vadd.f32 0.0, %v3103
  %v3105 = vpop.f32.mrf.mxu0
  %v3106 = vadd.f32 0.0, %v3105
  %3107 = vmatmul.bf16.gmra.mxu0 %v1563
  %v3108 = vpop.f32.mrf.mxu0
  %v3109 = vadd.f32 0.0, %v3108
  %v3110 = vpop.f32.mrf.mxu0
  %v3111 = vadd.f32 0.0, %v3110
  %3112 = vmatmul.bf16.gmra.mxu0 %v1564
  %v3113 = vpop.f32.mrf.mxu0
  %v3114 = vadd.f32 0.0, %v3113
  %v3115 = vpop.f32.mrf.mxu0
  %v3116 = vadd.f32 0.0, %v3115
  %3117 = vmatmul.bf16.gmra.mxu0 %v1565
  %v3118 = vpop.f32.mrf.mxu0
  %v3119 = vadd.f32 0.0, %v3118
  %v3120 = vpop.f32.mrf.mxu0
  %v3121 = vadd.f32 0.0, %v3120
  %3122 = vmatmul.bf16.gmra.mxu0 %v2893
  %v3123 = vpop.f32.mrf.mxu0
  %v3124 = vadd.f32 0.0, %v3123
  %v3125 = vpop.f32.mrf.mxu0
  %v3126 = vadd.f32 0.0, %v3125
  %3127 = vdwg.mxu0
  %v3128 = vadd.f32 %v2808, %v2969
  %v3129 = vadd.f32 %v2809, %v2971
  %v3130 = vadd.f32 %v2810, %v2974
  %v3131 = vadd.f32 %v2811, %v2976
  %v3132 = vadd.f32 %v2812, %v2979
  %v3133 = vadd.f32 %v2813, %v2981
  %v3134 = vadd.f32 %v2814, %v2984
  %v3135 = vadd.f32 %v2815, %v2986
  %v3136 = vadd.f32 %v2816, %v2989
  %v3137 = vadd.f32 %v2817, %v2991
  %v3138 = vadd.f32 %v2818, %v2994
  %v3139 = vadd.f32 %v2819, %v2996
  %v3140 = vadd.f32 %v2820, %v2999
  %v3141 = vadd.f32 %v2821, %v3001
  %v3142 = vadd.f32 %v2822, %v3004
  %v3143 = vadd.f32 %v2823, %v3006
  %v3144 = vadd.f32 %v2824, %v3009
  %v3145 = vadd.f32 %v2825, %v3011
  %v3146 = vadd.f32 %v2826, %v3014
  %v3147 = vadd.f32 %v2827, %v3016
  %v3148 = vadd.f32 %v2828, %v3019
  %v3149 = vadd.f32 %v2829, %v3021
  %v3150 = vadd.f32 %v2830, %v3024
  %v3151 = vadd.f32 %v2831, %v3026
  %v3152 = vadd.f32 %v2832, %v3029
  %v3153 = vadd.f32 %v2833, %v3031
  %v3154 = vadd.f32 %v2834, %v3034
  %v3155 = vadd.f32 %v2835, %v3036
  %v3156 = vadd.f32 %v2836, %v3039
  %v3157 = vadd.f32 %v2837, %v3041
  %v3158 = vadd.f32 %v2838, %v3044
  %v3159 = vadd.f32 %v2839, %v3046
  %v3160 = vadd.f32 %v2840, %v3049
  %v3161 = vadd.f32 %v2841, %v3051
  %v3162 = vadd.f32 %v2842, %v3054
  %v3163 = vadd.f32 %v2843, %v3056
  %v3164 = vadd.f32 %v2844, %v3059
  %v3165 = vadd.f32 %v2845, %v3061
  %v3166 = vadd.f32 %v2846, %v3064
  %v3167 = vadd.f32 %v2847, %v3066
  %v3168 = vadd.f32 %v2848, %v3069
  %v3169 = vadd.f32 %v2849, %v3071
  %v3170 = vadd.f32 %v2850, %v3074
  %v3171 = vadd.f32 %v2851, %v3076
  %v3172 = vadd.f32 %v2852, %v3079
  %v3173 = vadd.f32 %v2853, %v3081
  %v3174 = vadd.f32 %v2854, %v3084
  %v3175 = vadd.f32 %v2855, %v3086
  %v3176 = vadd.f32 %v2856, %v3089
  %v3177 = vadd.f32 %v2857, %v3091
  %v3178 = vadd.f32 %v2858, %v3094
  %v3179 = vadd.f32 %v2859, %v3096
  %v3180 = vadd.f32 %v2860, %v3099
  %v3181 = vadd.f32 %v2861, %v3101
  %v3182 = vadd.f32 %v2862, %v3104
  %v3183 = vadd.f32 %v2863, %v3106
  %v3184 = vadd.f32 %v2864, %v3109
  %v3185 = vadd.f32 %v2865, %v3111
  %v3186 = vadd.f32 %v2866, %v3114
  %v3187 = vadd.f32 %v2867, %v3116
  %v3188 = vadd.f32 %v2868, %v3119
  %v3189 = vadd.f32 %v2869, %v3121
  %v3190 = vadd.f32 %v2870, %v3124
  %v3191 = vadd.f32 %v2871, %v3126
  %v3192 = vrot.slane %v1105, 2
  %v3193 = vrot.slane %v1106, 2
  %v3194 = vsel %vm2017, %v3192, %v3193
  %v3195 = vrot.slane %v1107, 2
  %v3196 = vsel %vm2017, %v3193, %v3195
  %v3197 = vrot.slane %v1159, 2
  %v3198 = vrot.slane %v1160, 2
  %v3199 = vsel %vm2017, %v3197, %v3198
  %v3200 = vrot.slane %v1161, 2
  %v3201 = vsel %vm2017, %v3198, %v3200
  %v3206 = vpack.c.bf16 %v3196, %v3194
  %v3207 = vpack.c.bf16 %v3201, %v3199
  %s3208 = scalar_lea.vmem %s2, 320
  %v3209 = vld [vmem:[%s3208] sm:$0xf]
  %v3210 = vld [vmem:[%s3208 + $0x4] sm:$0xf]
  %v3211 = vld [vmem:[%s3208 + $0x8] sm:$0xf]
  %v3212 = vld [vmem:[%s3208 + $0xc] sm:$0xf]
  %v3213 = vld [vmem:[%s3208 + $0x10] sm:$0xf]
  %v3214 = vld [vmem:[%s3208 + $0x14] sm:$0xf]
  %v3215 = vld [vmem:[%s3208 + $0x18] sm:$0xf]
  %v3216 = vld [vmem:[%s3208 + $0x1c] sm:$0xf]
  %v3217 = vld [vmem:[%s3208 + $0x20] sm:$0xf]
  %v3218 = vld [vmem:[%s3208 + $0x24] sm:$0xf]
  %v3219 = vld [vmem:[%s3208 + $0x28] sm:$0xf]
  %v3220 = vld [vmem:[%s3208 + $0x2c] sm:$0xf]
  %v3221 = vld [vmem:[%s3208 + $0x30] sm:$0xf]
  %v3222 = vld [vmem:[%s3208 + $0x34] sm:$0xf]
  %v3223 = vld [vmem:[%s3208 + $0x38] sm:$0xf]
  %v3224 = vld [vmem:[%s3208 + $0x3c] sm:$0xf]
  %v3241 = vunpack.c.l.b16 %v3209
  %v3242 = vunpack.c.l.b16 %v3210
  %v3243 = vunpack.c.l.b16 %v3211
  %v3244 = vunpack.c.l.b16 %v3212
  %v3245 = vunpack.c.l.b16 %v3213
  %v3246 = vunpack.c.l.b16 %v3214
  %v3247 = vunpack.c.l.b16 %v3215
  %v3248 = vunpack.c.l.b16 %v3216
  %v3249 = vunpack.c.l.b16 %v3217
  %v3250 = vunpack.c.l.b16 %v3218
  %v3251 = vunpack.c.l.b16 %v3219
  %v3252 = vunpack.c.l.b16 %v3220
  %v3253 = vunpack.c.l.b16 %v3221
  %v3254 = vunpack.c.l.b16 %v3222
  %v3255 = vunpack.c.l.b16 %v3223
  %v3256 = vunpack.c.l.b16 %v3224
  %v3257 = vpack.c.b16 %v3242, %v3241
  %v3258 = vpack.c.b16 %v3244, %v3243
  %v3259 = vpack.c.b16 %v3246, %v3245
  %v3260 = vpack.c.b16 %v3248, %v3247
  %v3261 = vpack.c.b16 %v3250, %v3249
  %v3262 = vpack.c.b16 %v3252, %v3251
  %v3263 = vpack.c.b16 %v3254, %v3253
  %v3264 = vpack.c.b16 %v3256, %v3255
  %3273 = vmatpush.bf16.msra.mxu0 %v3264
  %3274 = vmatpush.bf16.msra.mxu0 %v3263
  %3275 = vmatpush.bf16.msra.mxu0 %v3262
  %3276 = vmatpush.bf16.msra.mxu0 %v3261
  %3277 = vmatpush.bf16.msra.mxu0 %v3260
  %3278 = vmatpush.bf16.msra.mxu0 %v3259
  %3279 = vmatpush.bf16.msra.mxu0 %v3258
  %3280 = vmatpush.bf16.msra.mxu0 %v3257
  %3281 = vmatmul.bf16.gmra.mxu0 %v2243
  %v3282 = vpop.f32.mrf.mxu0
  %v3283 = vadd.f32 0.0, %v3282
  %v3284 = vpop.f32.mrf.mxu0
  %v3285 = vadd.f32 0.0, %v3284
  %3286 = vmatmul.bf16.gmra.mxu0 %v2244
  %v3287 = vpop.f32.mrf.mxu0
  %v3288 = vadd.f32 0.0, %v3287
  %v3289 = vpop.f32.mrf.mxu0
  %v3290 = vadd.f32 0.0, %v3289
  %3291 = vmatmul.bf16.gmra.mxu0 %v2245
  %v3292 = vpop.f32.mrf.mxu0
  %v3293 = vadd.f32 0.0, %v3292
  %v3294 = vpop.f32.mrf.mxu0
  %v3295 = vadd.f32 0.0, %v3294
  %3296 = vmatmul.bf16.gmra.mxu0 %v2246
  %v3297 = vpop.f32.mrf.mxu0
  %v3298 = vadd.f32 0.0, %v3297
  %v3299 = vpop.f32.mrf.mxu0
  %v3300 = vadd.f32 0.0, %v3299
  %3301 = vmatmul.bf16.gmra.mxu0 %v2247
  %v3302 = vpop.f32.mrf.mxu0
  %v3303 = vadd.f32 0.0, %v3302
  %v3304 = vpop.f32.mrf.mxu0
  %v3305 = vadd.f32 0.0, %v3304
  %3306 = vmatmul.bf16.gmra.mxu0 %v2248
  %v3307 = vpop.f32.mrf.mxu0
  %v3308 = vadd.f32 0.0, %v3307
  %v3309 = vpop.f32.mrf.mxu0
  %v3310 = vadd.f32 0.0, %v3309
  %3311 = vmatmul.bf16.gmra.mxu0 %v2249
  %v3312 = vpop.f32.mrf.mxu0
  %v3313 = vadd.f32 0.0, %v3312
  %v3314 = vpop.f32.mrf.mxu0
  %v3315 = vadd.f32 0.0, %v3314
  %3316 = vmatmul.bf16.gmra.mxu0 %v2250
  %v3317 = vpop.f32.mrf.mxu0
  %v3318 = vadd.f32 0.0, %v3317
  %v3319 = vpop.f32.mrf.mxu0
  %v3320 = vadd.f32 0.0, %v3319
  %3321 = vmatmul.bf16.gmra.mxu0 %v2251
  %v3322 = vpop.f32.mrf.mxu0
  %v3323 = vadd.f32 0.0, %v3322
  %v3324 = vpop.f32.mrf.mxu0
  %v3325 = vadd.f32 0.0, %v3324
  %3326 = vmatmul.bf16.gmra.mxu0 %v2252
  %v3327 = vpop.f32.mrf.mxu0
  %v3328 = vadd.f32 0.0, %v3327
  %v3329 = vpop.f32.mrf.mxu0
  %v3330 = vadd.f32 0.0, %v3329
  %3331 = vmatmul.bf16.gmra.mxu0 %v2253
  %v3332 = vpop.f32.mrf.mxu0
  %v3333 = vadd.f32 0.0, %v3332
  %v3334 = vpop.f32.mrf.mxu0
  %v3335 = vadd.f32 0.0, %v3334
  %3336 = vmatmul.bf16.gmra.mxu0 %v2254
  %v3337 = vpop.f32.mrf.mxu0
  %v3338 = vadd.f32 0.0, %v3337
  %v3339 = vpop.f32.mrf.mxu0
  %v3340 = vadd.f32 0.0, %v3339
  %3341 = vmatmul.bf16.gmra.mxu0 %v2255
  %v3342 = vpop.f32.mrf.mxu0
  %v3343 = vadd.f32 0.0, %v3342
  %v3344 = vpop.f32.mrf.mxu0
  %v3345 = vadd.f32 0.0, %v3344
  %3346 = vmatmul.bf16.gmra.mxu0 %v2256
  %v3347 = vpop.f32.mrf.mxu0
  %v3348 = vadd.f32 0.0, %v3347
  %v3349 = vpop.f32.mrf.mxu0
  %v3350 = vadd.f32 0.0, %v3349
  %3351 = vmatmul.bf16.gmra.mxu0 %v2257
  %v3352 = vpop.f32.mrf.mxu0
  %v3353 = vadd.f32 0.0, %v3352
  %v3354 = vpop.f32.mrf.mxu0
  %v3355 = vadd.f32 0.0, %v3354
  %3356 = vmatmul.bf16.gmra.mxu0 %v3206
  %v3357 = vpop.f32.mrf.mxu0
  %v3358 = vadd.f32 0.0, %v3357
  %v3359 = vpop.f32.mrf.mxu0
  %v3360 = vadd.f32 0.0, %v3359
  %3361 = vmatmul.bf16.gmra.mxu0 %v2259
  %v3362 = vpop.f32.mrf.mxu0
  %v3363 = vadd.f32 0.0, %v3362
  %v3364 = vpop.f32.mrf.mxu0
  %v3365 = vadd.f32 0.0, %v3364
  %3366 = vmatmul.bf16.gmra.mxu0 %v2260
  %v3367 = vpop.f32.mrf.mxu0
  %v3368 = vadd.f32 0.0, %v3367
  %v3369 = vpop.f32.mrf.mxu0
  %v3370 = vadd.f32 0.0, %v3369
  %3371 = vmatmul.bf16.gmra.mxu0 %v2261
  %v3372 = vpop.f32.mrf.mxu0
  %v3373 = vadd.f32 0.0, %v3372
  %v3374 = vpop.f32.mrf.mxu0
  %v3375 = vadd.f32 0.0, %v3374
  %3376 = vmatmul.bf16.gmra.mxu0 %v2262
  %v3377 = vpop.f32.mrf.mxu0
  %v3378 = vadd.f32 0.0, %v3377
  %v3379 = vpop.f32.mrf.mxu0
  %v3380 = vadd.f32 0.0, %v3379
  %3381 = vmatmul.bf16.gmra.mxu0 %v2263
  %v3382 = vpop.f32.mrf.mxu0
  %v3383 = vadd.f32 0.0, %v3382
  %v3384 = vpop.f32.mrf.mxu0
  %v3385 = vadd.f32 0.0, %v3384
  %3386 = vmatmul.bf16.gmra.mxu0 %v2264
  %v3387 = vpop.f32.mrf.mxu0
  %v3388 = vadd.f32 0.0, %v3387
  %v3389 = vpop.f32.mrf.mxu0
  %v3390 = vadd.f32 0.0, %v3389
  %3391 = vmatmul.bf16.gmra.mxu0 %v2265
  %v3392 = vpop.f32.mrf.mxu0
  %v3393 = vadd.f32 0.0, %v3392
  %v3394 = vpop.f32.mrf.mxu0
  %v3395 = vadd.f32 0.0, %v3394
  %3396 = vmatmul.bf16.gmra.mxu0 %v2266
  %v3397 = vpop.f32.mrf.mxu0
  %v3398 = vadd.f32 0.0, %v3397
  %v3399 = vpop.f32.mrf.mxu0
  %v3400 = vadd.f32 0.0, %v3399
  %3401 = vmatmul.bf16.gmra.mxu0 %v2267
  %v3402 = vpop.f32.mrf.mxu0
  %v3403 = vadd.f32 0.0, %v3402
  %v3404 = vpop.f32.mrf.mxu0
  %v3405 = vadd.f32 0.0, %v3404
  %3406 = vmatmul.bf16.gmra.mxu0 %v2268
  %v3407 = vpop.f32.mrf.mxu0
  %v3408 = vadd.f32 0.0, %v3407
  %v3409 = vpop.f32.mrf.mxu0
  %v3410 = vadd.f32 0.0, %v3409
  %3411 = vmatmul.bf16.gmra.mxu0 %v2269
  %v3412 = vpop.f32.mrf.mxu0
  %v3413 = vadd.f32 0.0, %v3412
  %v3414 = vpop.f32.mrf.mxu0
  %v3415 = vadd.f32 0.0, %v3414
  %3416 = vmatmul.bf16.gmra.mxu0 %v2270
  %v3417 = vpop.f32.mrf.mxu0
  %v3418 = vadd.f32 0.0, %v3417
  %v3419 = vpop.f32.mrf.mxu0
  %v3420 = vadd.f32 0.0, %v3419
  %3421 = vmatmul.bf16.gmra.mxu0 %v2271
  %v3422 = vpop.f32.mrf.mxu0
  %v3423 = vadd.f32 0.0, %v3422
  %v3424 = vpop.f32.mrf.mxu0
  %v3425 = vadd.f32 0.0, %v3424
  %3426 = vmatmul.bf16.gmra.mxu0 %v2272
  %v3427 = vpop.f32.mrf.mxu0
  %v3428 = vadd.f32 0.0, %v3427
  %v3429 = vpop.f32.mrf.mxu0
  %v3430 = vadd.f32 0.0, %v3429
  %3431 = vmatmul.bf16.gmra.mxu0 %v2273
  %v3432 = vpop.f32.mrf.mxu0
  %v3433 = vadd.f32 0.0, %v3432
  %v3434 = vpop.f32.mrf.mxu0
  %v3435 = vadd.f32 0.0, %v3434
  %3436 = vmatmul.bf16.gmra.mxu0 %v3207
  %v3437 = vpop.f32.mrf.mxu0
  %v3438 = vadd.f32 0.0, %v3437
  %v3439 = vpop.f32.mrf.mxu0
  %v3440 = vadd.f32 0.0, %v3439
  %3441 = vdwg.mxu0
  %v3442 = vadd.f32 %v3128, %v3283
  %v3443 = vadd.f32 %v3129, %v3285
  %v3444 = vadd.f32 %v3130, %v3288
  %v3445 = vadd.f32 %v3131, %v3290
  %v3446 = vadd.f32 %v3132, %v3293
  %v3447 = vadd.f32 %v3133, %v3295
  %v3448 = vadd.f32 %v3134, %v3298
  %v3449 = vadd.f32 %v3135, %v3300
  %v3450 = vadd.f32 %v3136, %v3303
  %v3451 = vadd.f32 %v3137, %v3305
  %v3452 = vadd.f32 %v3138, %v3308
  %v3453 = vadd.f32 %v3139, %v3310
  %v3454 = vadd.f32 %v3140, %v3313
  %v3455 = vadd.f32 %v3141, %v3315
  %v3456 = vadd.f32 %v3142, %v3318
  %v3457 = vadd.f32 %v3143, %v3320
  %v3458 = vadd.f32 %v3144, %v3323
  %v3459 = vadd.f32 %v3145, %v3325
  %v3460 = vadd.f32 %v3146, %v3328
  %v3461 = vadd.f32 %v3147, %v3330
  %v3462 = vadd.f32 %v3148, %v3333
  %v3463 = vadd.f32 %v3149, %v3335
  %v3464 = vadd.f32 %v3150, %v3338
  %v3465 = vadd.f32 %v3151, %v3340
  %v3466 = vadd.f32 %v3152, %v3343
  %v3467 = vadd.f32 %v3153, %v3345
  %v3468 = vadd.f32 %v3154, %v3348
  %v3469 = vadd.f32 %v3155, %v3350
  %v3470 = vadd.f32 %v3156, %v3353
  %v3471 = vadd.f32 %v3157, %v3355
  %v3472 = vadd.f32 %v3158, %v3358
  %v3473 = vadd.f32 %v3159, %v3360
  %v3474 = vadd.f32 %v3160, %v3363
  %v3475 = vadd.f32 %v3161, %v3365
  %v3476 = vadd.f32 %v3162, %v3368
  %v3477 = vadd.f32 %v3163, %v3370
  %v3478 = vadd.f32 %v3164, %v3373
  %v3479 = vadd.f32 %v3165, %v3375
  %v3480 = vadd.f32 %v3166, %v3378
  %v3481 = vadd.f32 %v3167, %v3380
  %v3482 = vadd.f32 %v3168, %v3383
  %v3483 = vadd.f32 %v3169, %v3385
  %v3484 = vadd.f32 %v3170, %v3388
  %v3485 = vadd.f32 %v3171, %v3390
  %v3486 = vadd.f32 %v3172, %v3393
  %v3487 = vadd.f32 %v3173, %v3395
  %v3488 = vadd.f32 %v3174, %v3398
  %v3489 = vadd.f32 %v3175, %v3400
  %v3490 = vadd.f32 %v3176, %v3403
  %v3491 = vadd.f32 %v3177, %v3405
  %v3492 = vadd.f32 %v3178, %v3408
  %v3493 = vadd.f32 %v3179, %v3410
  %v3494 = vadd.f32 %v3180, %v3413
  %v3495 = vadd.f32 %v3181, %v3415
  %v3496 = vadd.f32 %v3182, %v3418
  %v3497 = vadd.f32 %v3183, %v3420
  %v3498 = vadd.f32 %v3184, %v3423
  %v3499 = vadd.f32 %v3185, %v3425
  %v3500 = vadd.f32 %v3186, %v3428
  %v3501 = vadd.f32 %v3187, %v3430
  %v3502 = vadd.f32 %v3188, %v3433
  %v3503 = vadd.f32 %v3189, %v3435
  %v3504 = vadd.f32 %v3190, %v3438
  %v3505 = vadd.f32 %v3191, %v3440
  %v3506 = vpack.c.bf16 %v1109, %v1108
  %v3507 = vpack.c.bf16 %v1163, %v1162
  %s3508 = scalar_lea.vmem %s2, 384
  %v3509 = vld [vmem:[%s3508] sm:$0xf]
  %v3510 = vld [vmem:[%s3508 + $0x4] sm:$0xf]
  %v3511 = vld [vmem:[%s3508 + $0x8] sm:$0xf]
  %v3512 = vld [vmem:[%s3508 + $0xc] sm:$0xf]
  %v3513 = vld [vmem:[%s3508 + $0x10] sm:$0xf]
  %v3514 = vld [vmem:[%s3508 + $0x14] sm:$0xf]
  %v3515 = vld [vmem:[%s3508 + $0x18] sm:$0xf]
  %v3516 = vld [vmem:[%s3508 + $0x1c] sm:$0xf]
  %v3517 = vld [vmem:[%s3508 + $0x20] sm:$0xf]
  %v3518 = vld [vmem:[%s3508 + $0x24] sm:$0xf]
  %v3519 = vld [vmem:[%s3508 + $0x28] sm:$0xf]
  %v3520 = vld [vmem:[%s3508 + $0x2c] sm:$0xf]
  %v3521 = vld [vmem:[%s3508 + $0x30] sm:$0xf]
  %v3522 = vld [vmem:[%s3508 + $0x34] sm:$0xf]
  %v3523 = vld [vmem:[%s3508 + $0x38] sm:$0xf]
  %v3524 = vld [vmem:[%s3508 + $0x3c] sm:$0xf]
  %v3541 = vunpack.c.l.b16 %v3509
  %v3542 = vunpack.c.l.b16 %v3510
  %v3543 = vunpack.c.l.b16 %v3511
  %v3544 = vunpack.c.l.b16 %v3512
  %v3545 = vunpack.c.l.b16 %v3513
  %v3546 = vunpack.c.l.b16 %v3514
  %v3547 = vunpack.c.l.b16 %v3515
  %v3548 = vunpack.c.l.b16 %v3516
  %v3549 = vunpack.c.l.b16 %v3517
  %v3550 = vunpack.c.l.b16 %v3518
  %v3551 = vunpack.c.l.b16 %v3519
  %v3552 = vunpack.c.l.b16 %v3520
  %v3553 = vunpack.c.l.b16 %v3521
  %v3554 = vunpack.c.l.b16 %v3522
  %v3555 = vunpack.c.l.b16 %v3523
  %v3556 = vunpack.c.l.b16 %v3524
  %v3557 = vpack.c.b16 %v3542, %v3541
  %v3558 = vpack.c.b16 %v3544, %v3543
  %v3559 = vpack.c.b16 %v3546, %v3545
  %v3560 = vpack.c.b16 %v3548, %v3547
  %v3561 = vpack.c.b16 %v3550, %v3549
  %v3562 = vpack.c.b16 %v3552, %v3551
  %v3563 = vpack.c.b16 %v3554, %v3553
  %v3564 = vpack.c.b16 %v3556, %v3555
  %3573 = vmatpush.bf16.msra.mxu0 %v3564
  %3574 = vmatpush.bf16.msra.mxu0 %v3563
  %3575 = vmatpush.bf16.msra.mxu0 %v3562
  %3576 = vmatpush.bf16.msra.mxu0 %v3561
  %3577 = vmatpush.bf16.msra.mxu0 %v3560
  %3578 = vmatpush.bf16.msra.mxu0 %v3559
  %3579 = vmatpush.bf16.msra.mxu0 %v3558
  %3580 = vmatpush.bf16.msra.mxu0 %v3557
  %3581 = vmatmul.bf16.gmra.mxu0 %v1167
  %v3582 = vpop.f32.mrf.mxu0
  %v3583 = vadd.f32 0.0, %v3582
  %v3584 = vpop.f32.mrf.mxu0
  %v3585 = vadd.f32 0.0, %v3584
  %3586 = vmatmul.bf16.gmra.mxu0 %v1168
  %v3587 = vpop.f32.mrf.mxu0
  %v3588 = vadd.f32 0.0, %v3587
  %v3589 = vpop.f32.mrf.mxu0
  %v3590 = vadd.f32 0.0, %v3589
  %3591 = vmatmul.bf16.gmra.mxu0 %v1169
  %v3592 = vpop.f32.mrf.mxu0
  %v3593 = vadd.f32 0.0, %v3592
  %v3594 = vpop.f32.mrf.mxu0
  %v3595 = vadd.f32 0.0, %v3594
  %3596 = vmatmul.bf16.gmra.mxu0 %v1170
  %v3597 = vpop.f32.mrf.mxu0
  %v3598 = vadd.f32 0.0, %v3597
  %v3599 = vpop.f32.mrf.mxu0
  %v3600 = vadd.f32 0.0, %v3599
  %3601 = vmatmul.bf16.gmra.mxu0 %v1171
  %v3602 = vpop.f32.mrf.mxu0
  %v3603 = vadd.f32 0.0, %v3602
  %v3604 = vpop.f32.mrf.mxu0
  %v3605 = vadd.f32 0.0, %v3604
  %3606 = vmatmul.bf16.gmra.mxu0 %v1172
  %v3607 = vpop.f32.mrf.mxu0
  %v3608 = vadd.f32 0.0, %v3607
  %v3609 = vpop.f32.mrf.mxu0
  %v3610 = vadd.f32 0.0, %v3609
  %3611 = vmatmul.bf16.gmra.mxu0 %v1173
  %v3612 = vpop.f32.mrf.mxu0
  %v3613 = vadd.f32 0.0, %v3612
  %v3614 = vpop.f32.mrf.mxu0
  %v3615 = vadd.f32 0.0, %v3614
  %3616 = vmatmul.bf16.gmra.mxu0 %v1174
  %v3617 = vpop.f32.mrf.mxu0
  %v3618 = vadd.f32 0.0, %v3617
  %v3619 = vpop.f32.mrf.mxu0
  %v3620 = vadd.f32 0.0, %v3619
  %3621 = vmatmul.bf16.gmra.mxu0 %v1175
  %v3622 = vpop.f32.mrf.mxu0
  %v3623 = vadd.f32 0.0, %v3622
  %v3624 = vpop.f32.mrf.mxu0
  %v3625 = vadd.f32 0.0, %v3624
  %3626 = vmatmul.bf16.gmra.mxu0 %v1176
  %v3627 = vpop.f32.mrf.mxu0
  %v3628 = vadd.f32 0.0, %v3627
  %v3629 = vpop.f32.mrf.mxu0
  %v3630 = vadd.f32 0.0, %v3629
  %3631 = vmatmul.bf16.gmra.mxu0 %v1177
  %v3632 = vpop.f32.mrf.mxu0
  %v3633 = vadd.f32 0.0, %v3632
  %v3634 = vpop.f32.mrf.mxu0
  %v3635 = vadd.f32 0.0, %v3634
  %3636 = vmatmul.bf16.gmra.mxu0 %v1178
  %v3637 = vpop.f32.mrf.mxu0
  %v3638 = vadd.f32 0.0, %v3637
  %v3639 = vpop.f32.mrf.mxu0
  %v3640 = vadd.f32 0.0, %v3639
  %3641 = vmatmul.bf16.gmra.mxu0 %v1179
  %v3642 = vpop.f32.mrf.mxu0
  %v3643 = vadd.f32 0.0, %v3642
  %v3644 = vpop.f32.mrf.mxu0
  %v3645 = vadd.f32 0.0, %v3644
  %3646 = vmatmul.bf16.gmra.mxu0 %v1180
  %v3647 = vpop.f32.mrf.mxu0
  %v3648 = vadd.f32 0.0, %v3647
  %v3649 = vpop.f32.mrf.mxu0
  %v3650 = vadd.f32 0.0, %v3649
  %3651 = vmatmul.bf16.gmra.mxu0 %v2572
  %v3652 = vpop.f32.mrf.mxu0
  %v3653 = vadd.f32 0.0, %v3652
  %v3654 = vpop.f32.mrf.mxu0
  %v3655 = vadd.f32 0.0, %v3654
  %3656 = vmatmul.bf16.gmra.mxu0 %v3506
  %v3657 = vpop.f32.mrf.mxu0
  %v3658 = vadd.f32 0.0, %v3657
  %v3659 = vpop.f32.mrf.mxu0
  %v3660 = vadd.f32 0.0, %v3659
  %3661 = vmatmul.bf16.gmra.mxu0 %v1183
  %v3662 = vpop.f32.mrf.mxu0
  %v3663 = vadd.f32 0.0, %v3662
  %v3664 = vpop.f32.mrf.mxu0
  %v3665 = vadd.f32 0.0, %v3664
  %3666 = vmatmul.bf16.gmra.mxu0 %v1184
  %v3667 = vpop.f32.mrf.mxu0
  %v3668 = vadd.f32 0.0, %v3667
  %v3669 = vpop.f32.mrf.mxu0
  %v3670 = vadd.f32 0.0, %v3669
  %3671 = vmatmul.bf16.gmra.mxu0 %v1185
  %v3672 = vpop.f32.mrf.mxu0
  %v3673 = vadd.f32 0.0, %v3672
  %v3674 = vpop.f32.mrf.mxu0
  %v3675 = vadd.f32 0.0, %v3674
  %3676 = vmatmul.bf16.gmra.mxu0 %v1186
  %v3677 = vpop.f32.mrf.mxu0
  %v3678 = vadd.f32 0.0, %v3677
  %v3679 = vpop.f32.mrf.mxu0
  %v3680 = vadd.f32 0.0, %v3679
  %3681 = vmatmul.bf16.gmra.mxu0 %v1187
  %v3682 = vpop.f32.mrf.mxu0
  %v3683 = vadd.f32 0.0, %v3682
  %v3684 = vpop.f32.mrf.mxu0
  %v3685 = vadd.f32 0.0, %v3684
  %3686 = vmatmul.bf16.gmra.mxu0 %v1188
  %v3687 = vpop.f32.mrf.mxu0
  %v3688 = vadd.f32 0.0, %v3687
  %v3689 = vpop.f32.mrf.mxu0
  %v3690 = vadd.f32 0.0, %v3689
  %3691 = vmatmul.bf16.gmra.mxu0 %v1189
  %v3692 = vpop.f32.mrf.mxu0
  %v3693 = vadd.f32 0.0, %v3692
  %v3694 = vpop.f32.mrf.mxu0
  %v3695 = vadd.f32 0.0, %v3694
  %3696 = vmatmul.bf16.gmra.mxu0 %v1190
  %v3697 = vpop.f32.mrf.mxu0
  %v3698 = vadd.f32 0.0, %v3697
  %v3699 = vpop.f32.mrf.mxu0
  %v3700 = vadd.f32 0.0, %v3699
  %3701 = vmatmul.bf16.gmra.mxu0 %v1191
  %v3702 = vpop.f32.mrf.mxu0
  %v3703 = vadd.f32 0.0, %v3702
  %v3704 = vpop.f32.mrf.mxu0
  %v3705 = vadd.f32 0.0, %v3704
  %3706 = vmatmul.bf16.gmra.mxu0 %v1192
  %v3707 = vpop.f32.mrf.mxu0
  %v3708 = vadd.f32 0.0, %v3707
  %v3709 = vpop.f32.mrf.mxu0
  %v3710 = vadd.f32 0.0, %v3709
  %3711 = vmatmul.bf16.gmra.mxu0 %v1193
  %v3712 = vpop.f32.mrf.mxu0
  %v3713 = vadd.f32 0.0, %v3712
  %v3714 = vpop.f32.mrf.mxu0
  %v3715 = vadd.f32 0.0, %v3714
  %3716 = vmatmul.bf16.gmra.mxu0 %v1194
  %v3717 = vpop.f32.mrf.mxu0
  %v3718 = vadd.f32 0.0, %v3717
  %v3719 = vpop.f32.mrf.mxu0
  %v3720 = vadd.f32 0.0, %v3719
  %3721 = vmatmul.bf16.gmra.mxu0 %v1195
  %v3722 = vpop.f32.mrf.mxu0
  %v3723 = vadd.f32 0.0, %v3722
  %v3724 = vpop.f32.mrf.mxu0
  %v3725 = vadd.f32 0.0, %v3724
  %3726 = vmatmul.bf16.gmra.mxu0 %v1196
  %v3727 = vpop.f32.mrf.mxu0
  %v3728 = vadd.f32 0.0, %v3727
  %v3729 = vpop.f32.mrf.mxu0
  %v3730 = vadd.f32 0.0, %v3729
  %3731 = vmatmul.bf16.gmra.mxu0 %v2573
  %v3732 = vpop.f32.mrf.mxu0
  %v3733 = vadd.f32 0.0, %v3732
  %v3734 = vpop.f32.mrf.mxu0
  %v3735 = vadd.f32 0.0, %v3734
  %3736 = vmatmul.bf16.gmra.mxu0 %v3507
  %v3737 = vpop.f32.mrf.mxu0
  %v3738 = vadd.f32 0.0, %v3737
  %v3739 = vpop.f32.mrf.mxu0
  %v3740 = vadd.f32 0.0, %v3739
  %3741 = vdwg.mxu0
  %v3742 = vadd.f32 %v3442, %v3583
  %v3743 = vadd.f32 %v3443, %v3585
  %v3744 = vadd.f32 %v3444, %v3588
  %v3745 = vadd.f32 %v3445, %v3590
  %v3746 = vadd.f32 %v3446, %v3593
  %v3747 = vadd.f32 %v3447, %v3595
  %v3748 = vadd.f32 %v3448, %v3598
  %v3749 = vadd.f32 %v3449, %v3600
  %v3750 = vadd.f32 %v3450, %v3603
  %v3751 = vadd.f32 %v3451, %v3605
  %v3752 = vadd.f32 %v3452, %v3608
  %v3753 = vadd.f32 %v3453, %v3610
  %v3754 = vadd.f32 %v3454, %v3613
  %v3755 = vadd.f32 %v3455, %v3615
  %v3756 = vadd.f32 %v3456, %v3618
  %v3757 = vadd.f32 %v3457, %v3620
  %v3758 = vadd.f32 %v3458, %v3623
  %v3759 = vadd.f32 %v3459, %v3625
  %v3760 = vadd.f32 %v3460, %v3628
  %v3761 = vadd.f32 %v3461, %v3630
  %v3762 = vadd.f32 %v3462, %v3633
  %v3763 = vadd.f32 %v3463, %v3635
  %v3764 = vadd.f32 %v3464, %v3638
  %v3765 = vadd.f32 %v3465, %v3640
  %v3766 = vadd.f32 %v3466, %v3643
  %v3767 = vadd.f32 %v3467, %v3645
  %v3768 = vadd.f32 %v3468, %v3648
  %v3769 = vadd.f32 %v3469, %v3650
  %v3770 = vadd.f32 %v3470, %v3653
  %v3771 = vadd.f32 %v3471, %v3655
  %v3772 = vadd.f32 %v3472, %v3658
  %v3773 = vadd.f32 %v3473, %v3660
  %v3774 = vadd.f32 %v3474, %v3663
  %v3775 = vadd.f32 %v3475, %v3665
  %v3776 = vadd.f32 %v3476, %v3668
  %v3777 = vadd.f32 %v3477, %v3670
  %v3778 = vadd.f32 %v3478, %v3673
  %v3779 = vadd.f32 %v3479, %v3675
  %v3780 = vadd.f32 %v3480, %v3678
  %v3781 = vadd.f32 %v3481, %v3680
  %v3782 = vadd.f32 %v3482, %v3683
  %v3783 = vadd.f32 %v3483, %v3685
  %v3784 = vadd.f32 %v3484, %v3688
  %v3785 = vadd.f32 %v3485, %v3690
  %v3786 = vadd.f32 %v3486, %v3693
  %v3787 = vadd.f32 %v3487, %v3695
  %v3788 = vadd.f32 %v3488, %v3698
  %v3789 = vadd.f32 %v3489, %v3700
  %v3790 = vadd.f32 %v3490, %v3703
  %v3791 = vadd.f32 %v3491, %v3705
  %v3792 = vadd.f32 %v3492, %v3708
  %v3793 = vadd.f32 %v3493, %v3710
  %v3794 = vadd.f32 %v3494, %v3713
  %v3795 = vadd.f32 %v3495, %v3715
  %v3796 = vadd.f32 %v3496, %v3718
  %v3797 = vadd.f32 %v3497, %v3720
  %v3798 = vadd.f32 %v3498, %v3723
  %v3799 = vadd.f32 %v3499, %v3725
  %v3800 = vadd.f32 %v3500, %v3728
  %v3801 = vadd.f32 %v3501, %v3730
  %v3802 = vadd.f32 %v3502, %v3733
  %v3803 = vadd.f32 %v3503, %v3735
  %v3804 = vadd.f32 %v3504, %v3738
  %v3805 = vadd.f32 %v3505, %v3740
  %v3812 = vrot.slane %v1108, 1
  %v3813 = vrot.slane %v1109, 1
  %v3814 = vsel %vm1309, %v3812, %v3813
  %v3815 = vrot.slane %v1110, 1
  %v3816 = vsel %vm1309, %v3813, %v3815
  %v3817 = vrot.slane %v1162, 1
  %v3818 = vrot.slane %v1163, 1
  %v3819 = vsel %vm1309, %v3817, %v3818
  %v3820 = vrot.slane %v1164, 1
  %v3821 = vsel %vm1309, %v3818, %v3820
  %v3826 = vpack.c.bf16 %v3816, %v3814
  %v3827 = vpack.c.bf16 %v3821, %v3819
  %s3828 = scalar_lea.vmem %s2, 448
  %v3829 = vld [vmem:[%s3828] sm:$0xf]
  %v3830 = vld [vmem:[%s3828 + $0x4] sm:$0xf]
  %v3831 = vld [vmem:[%s3828 + $0x8] sm:$0xf]
  %v3832 = vld [vmem:[%s3828 + $0xc] sm:$0xf]
  %v3833 = vld [vmem:[%s3828 + $0x10] sm:$0xf]
  %v3834 = vld [vmem:[%s3828 + $0x14] sm:$0xf]
  %v3835 = vld [vmem:[%s3828 + $0x18] sm:$0xf]
  %v3836 = vld [vmem:[%s3828 + $0x1c] sm:$0xf]
  %v3837 = vld [vmem:[%s3828 + $0x20] sm:$0xf]
  %v3838 = vld [vmem:[%s3828 + $0x24] sm:$0xf]
  %v3839 = vld [vmem:[%s3828 + $0x28] sm:$0xf]
  %v3840 = vld [vmem:[%s3828 + $0x2c] sm:$0xf]
  %v3841 = vld [vmem:[%s3828 + $0x30] sm:$0xf]
  %v3842 = vld [vmem:[%s3828 + $0x34] sm:$0xf]
  %v3843 = vld [vmem:[%s3828 + $0x38] sm:$0xf]
  %v3844 = vld [vmem:[%s3828 + $0x3c] sm:$0xf]
  %v3861 = vunpack.c.l.b16 %v3829
  %v3862 = vunpack.c.l.b16 %v3830
  %v3863 = vunpack.c.l.b16 %v3831
  %v3864 = vunpack.c.l.b16 %v3832
  %v3865 = vunpack.c.l.b16 %v3833
  %v3866 = vunpack.c.l.b16 %v3834
  %v3867 = vunpack.c.l.b16 %v3835
  %v3868 = vunpack.c.l.b16 %v3836
  %v3869 = vunpack.c.l.b16 %v3837
  %v3870 = vunpack.c.l.b16 %v3838
  %v3871 = vunpack.c.l.b16 %v3839
  %v3872 = vunpack.c.l.b16 %v3840
  %v3873 = vunpack.c.l.b16 %v3841
  %v3874 = vunpack.c.l.b16 %v3842
  %v3875 = vunpack.c.l.b16 %v3843
  %v3876 = vunpack.c.l.b16 %v3844
  %v3877 = vpack.c.b16 %v3862, %v3861
  %v3878 = vpack.c.b16 %v3864, %v3863
  %v3879 = vpack.c.b16 %v3866, %v3865
  %v3880 = vpack.c.b16 %v3868, %v3867
  %v3881 = vpack.c.b16 %v3870, %v3869
  %v3882 = vpack.c.b16 %v3872, %v3871
  %v3883 = vpack.c.b16 %v3874, %v3873
  %v3884 = vpack.c.b16 %v3876, %v3875
  %3893 = vmatpush.bf16.msra.mxu0 %v3884
  %3894 = vmatpush.bf16.msra.mxu0 %v3883
  %3895 = vmatpush.bf16.msra.mxu0 %v3882
  %3896 = vmatpush.bf16.msra.mxu0 %v3881
  %3897 = vmatpush.bf16.msra.mxu0 %v3880
  %3898 = vmatpush.bf16.msra.mxu0 %v3879
  %3899 = vmatpush.bf16.msra.mxu0 %v3878
  %3900 = vmatpush.bf16.msra.mxu0 %v3877
  %3901 = vmatmul.bf16.gmra.mxu0 %v1536
  %v3902 = vpop.f32.mrf.mxu0
  %v3903 = vadd.f32 0.0, %v3902
  %v3904 = vpop.f32.mrf.mxu0
  %v3905 = vadd.f32 0.0, %v3904
  %3906 = vmatmul.bf16.gmra.mxu0 %v1537
  %v3907 = vpop.f32.mrf.mxu0
  %v3908 = vadd.f32 0.0, %v3907
  %v3909 = vpop.f32.mrf.mxu0
  %v3910 = vadd.f32 0.0, %v3909
  %3911 = vmatmul.bf16.gmra.mxu0 %v1538
  %v3912 = vpop.f32.mrf.mxu0
  %v3913 = vadd.f32 0.0, %v3912
  %v3914 = vpop.f32.mrf.mxu0
  %v3915 = vadd.f32 0.0, %v3914
  %3916 = vmatmul.bf16.gmra.mxu0 %v1539
  %v3917 = vpop.f32.mrf.mxu0
  %v3918 = vadd.f32 0.0, %v3917
  %v3919 = vpop.f32.mrf.mxu0
  %v3920 = vadd.f32 0.0, %v3919
  %3921 = vmatmul.bf16.gmra.mxu0 %v1540
  %v3922 = vpop.f32.mrf.mxu0
  %v3923 = vadd.f32 0.0, %v3922
  %v3924 = vpop.f32.mrf.mxu0
  %v3925 = vadd.f32 0.0, %v3924
  %3926 = vmatmul.bf16.gmra.mxu0 %v1541
  %v3927 = vpop.f32.mrf.mxu0
  %v3928 = vadd.f32 0.0, %v3927
  %v3929 = vpop.f32.mrf.mxu0
  %v3930 = vadd.f32 0.0, %v3929
  %3931 = vmatmul.bf16.gmra.mxu0 %v1542
  %v3932 = vpop.f32.mrf.mxu0
  %v3933 = vadd.f32 0.0, %v3932
  %v3934 = vpop.f32.mrf.mxu0
  %v3935 = vadd.f32 0.0, %v3934
  %3936 = vmatmul.bf16.gmra.mxu0 %v1543
  %v3937 = vpop.f32.mrf.mxu0
  %v3938 = vadd.f32 0.0, %v3937
  %v3939 = vpop.f32.mrf.mxu0
  %v3940 = vadd.f32 0.0, %v3939
  %3941 = vmatmul.bf16.gmra.mxu0 %v1544
  %v3942 = vpop.f32.mrf.mxu0
  %v3943 = vadd.f32 0.0, %v3942
  %v3944 = vpop.f32.mrf.mxu0
  %v3945 = vadd.f32 0.0, %v3944
  %3946 = vmatmul.bf16.gmra.mxu0 %v1545
  %v3947 = vpop.f32.mrf.mxu0
  %v3948 = vadd.f32 0.0, %v3947
  %v3949 = vpop.f32.mrf.mxu0
  %v3950 = vadd.f32 0.0, %v3949
  %3951 = vmatmul.bf16.gmra.mxu0 %v1546
  %v3952 = vpop.f32.mrf.mxu0
  %v3953 = vadd.f32 0.0, %v3952
  %v3954 = vpop.f32.mrf.mxu0
  %v3955 = vadd.f32 0.0, %v3954
  %3956 = vmatmul.bf16.gmra.mxu0 %v1547
  %v3957 = vpop.f32.mrf.mxu0
  %v3958 = vadd.f32 0.0, %v3957
  %v3959 = vpop.f32.mrf.mxu0
  %v3960 = vadd.f32 0.0, %v3959
  %3961 = vmatmul.bf16.gmra.mxu0 %v1548
  %v3962 = vpop.f32.mrf.mxu0
  %v3963 = vadd.f32 0.0, %v3962
  %v3964 = vpop.f32.mrf.mxu0
  %v3965 = vadd.f32 0.0, %v3964
  %3966 = vmatmul.bf16.gmra.mxu0 %v1549
  %v3967 = vpop.f32.mrf.mxu0
  %v3968 = vadd.f32 0.0, %v3967
  %v3969 = vpop.f32.mrf.mxu0
  %v3970 = vadd.f32 0.0, %v3969
  %3971 = vmatmul.bf16.gmra.mxu0 %v2892
  %v3972 = vpop.f32.mrf.mxu0
  %v3973 = vadd.f32 0.0, %v3972
  %v3974 = vpop.f32.mrf.mxu0
  %v3975 = vadd.f32 0.0, %v3974
  %3976 = vmatmul.bf16.gmra.mxu0 %v3826
  %v3977 = vpop.f32.mrf.mxu0
  %v3978 = vadd.f32 0.0, %v3977
  %v3979 = vpop.f32.mrf.mxu0
  %v3980 = vadd.f32 0.0, %v3979
  %3981 = vmatmul.bf16.gmra.mxu0 %v1552
  %v3982 = vpop.f32.mrf.mxu0
  %v3983 = vadd.f32 0.0, %v3982
  %v3984 = vpop.f32.mrf.mxu0
  %v3985 = vadd.f32 0.0, %v3984
  %3986 = vmatmul.bf16.gmra.mxu0 %v1553
  %v3987 = vpop.f32.mrf.mxu0
  %v3988 = vadd.f32 0.0, %v3987
  %v3989 = vpop.f32.mrf.mxu0
  %v3990 = vadd.f32 0.0, %v3989
  %3991 = vmatmul.bf16.gmra.mxu0 %v1554
  %v3992 = vpop.f32.mrf.mxu0
  %v3993 = vadd.f32 0.0, %v3992
  %v3994 = vpop.f32.mrf.mxu0
  %v3995 = vadd.f32 0.0, %v3994
  %3996 = vmatmul.bf16.gmra.mxu0 %v1555
  %v3997 = vpop.f32.mrf.mxu0
  %v3998 = vadd.f32 0.0, %v3997
  %v3999 = vpop.f32.mrf.mxu0
  %v4000 = vadd.f32 0.0, %v3999
  %4001 = vmatmul.bf16.gmra.mxu0 %v1556
  %v4002 = vpop.f32.mrf.mxu0
  %v4003 = vadd.f32 0.0, %v4002
  %v4004 = vpop.f32.mrf.mxu0
  %v4005 = vadd.f32 0.0, %v4004
  %4006 = vmatmul.bf16.gmra.mxu0 %v1557
  %v4007 = vpop.f32.mrf.mxu0
  %v4008 = vadd.f32 0.0, %v4007
  %v4009 = vpop.f32.mrf.mxu0
  %v4010 = vadd.f32 0.0, %v4009
  %4011 = vmatmul.bf16.gmra.mxu0 %v1558
  %v4012 = vpop.f32.mrf.mxu0
  %v4013 = vadd.f32 0.0, %v4012
  %v4014 = vpop.f32.mrf.mxu0
  %v4015 = vadd.f32 0.0, %v4014
  %4016 = vmatmul.bf16.gmra.mxu0 %v1559
  %v4017 = vpop.f32.mrf.mxu0
  %v4018 = vadd.f32 0.0, %v4017
  %v4019 = vpop.f32.mrf.mxu0
  %v4020 = vadd.f32 0.0, %v4019
  %4021 = vmatmul.bf16.gmra.mxu0 %v1560
  %v4022 = vpop.f32.mrf.mxu0
  %v4023 = vadd.f32 0.0, %v4022
  %v4024 = vpop.f32.mrf.mxu0
  %v4025 = vadd.f32 0.0, %v4024
  %4026 = vmatmul.bf16.gmra.mxu0 %v1561
  %v4027 = vpop.f32.mrf.mxu0
  %v4028 = vadd.f32 0.0, %v4027
  %v4029 = vpop.f32.mrf.mxu0
  %v4030 = vadd.f32 0.0, %v4029
  %4031 = vmatmul.bf16.gmra.mxu0 %v1562
  %v4032 = vpop.f32.mrf.mxu0
  %v4033 = vadd.f32 0.0, %v4032
  %v4034 = vpop.f32.mrf.mxu0
  %v4035 = vadd.f32 0.0, %v4034
  %4036 = vmatmul.bf16.gmra.mxu0 %v1563
  %v4037 = vpop.f32.mrf.mxu0
  %v4038 = vadd.f32 0.0, %v4037
  %v4039 = vpop.f32.mrf.mxu0
  %v4040 = vadd.f32 0.0, %v4039
  %4041 = vmatmul.bf16.gmra.mxu0 %v1564
  %v4042 = vpop.f32.mrf.mxu0
  %v4043 = vadd.f32 0.0, %v4042
  %v4044 = vpop.f32.mrf.mxu0
  %v4045 = vadd.f32 0.0, %v4044
  %4046 = vmatmul.bf16.gmra.mxu0 %v1565
  %v4047 = vpop.f32.mrf.mxu0
  %v4048 = vadd.f32 0.0, %v4047
  %v4049 = vpop.f32.mrf.mxu0
  %v4050 = vadd.f32 0.0, %v4049
  %4051 = vmatmul.bf16.gmra.mxu0 %v2893
  %v4052 = vpop.f32.mrf.mxu0
  %v4053 = vadd.f32 0.0, %v4052
  %v4054 = vpop.f32.mrf.mxu0
  %v4055 = vadd.f32 0.0, %v4054
  %4056 = vmatmul.bf16.gmra.mxu0 %v3827
  %v4057 = vpop.f32.mrf.mxu0
  %v4058 = vadd.f32 0.0, %v4057
  %v4059 = vpop.f32.mrf.mxu0
  %v4060 = vadd.f32 0.0, %v4059
  %4061 = vdwg.mxu0
  %v4062 = vadd.f32 %v3742, %v3903
  %v4063 = vadd.f32 %v3743, %v3905
  %v4064 = vadd.f32 %v3744, %v3908
  %v4065 = vadd.f32 %v3745, %v3910
  %v4066 = vadd.f32 %v3746, %v3913
  %v4067 = vadd.f32 %v3747, %v3915
  %v4068 = vadd.f32 %v3748, %v3918
  %v4069 = vadd.f32 %v3749, %v3920
  %v4070 = vadd.f32 %v3750, %v3923
  %v4071 = vadd.f32 %v3751, %v3925
  %v4072 = vadd.f32 %v3752, %v3928
  %v4073 = vadd.f32 %v3753, %v3930
  %v4074 = vadd.f32 %v3754, %v3933
  %v4075 = vadd.f32 %v3755, %v3935
  %v4076 = vadd.f32 %v3756, %v3938
  %v4077 = vadd.f32 %v3757, %v3940
  %v4078 = vadd.f32 %v3758, %v3943
  %v4079 = vadd.f32 %v3759, %v3945
  %v4080 = vadd.f32 %v3760, %v3948
  %v4081 = vadd.f32 %v3761, %v3950
  %v4082 = vadd.f32 %v3762, %v3953
  %v4083 = vadd.f32 %v3763, %v3955
  %v4084 = vadd.f32 %v3764, %v3958
  %v4085 = vadd.f32 %v3765, %v3960
  %v4086 = vadd.f32 %v3766, %v3963
  %v4087 = vadd.f32 %v3767, %v3965
  %v4088 = vadd.f32 %v3768, %v3968
  %v4089 = vadd.f32 %v3769, %v3970
  %v4090 = vadd.f32 %v3770, %v3973
  %v4091 = vadd.f32 %v3771, %v3975
  %v4092 = vadd.f32 %v3772, %v3978
  %v4093 = vadd.f32 %v3773, %v3980
  %v4094 = vadd.f32 %v3774, %v3983
  %v4095 = vadd.f32 %v3775, %v3985
  %v4096 = vadd.f32 %v3776, %v3988
  %v4097 = vadd.f32 %v3777, %v3990
  %v4098 = vadd.f32 %v3778, %v3993
  %v4099 = vadd.f32 %v3779, %v3995
  %v4100 = vadd.f32 %v3780, %v3998
  %v4101 = vadd.f32 %v3781, %v4000
  %v4102 = vadd.f32 %v3782, %v4003
  %v4103 = vadd.f32 %v3783, %v4005
  %v4104 = vadd.f32 %v3784, %v4008
  %v4105 = vadd.f32 %v3785, %v4010
  %v4106 = vadd.f32 %v3786, %v4013
  %v4107 = vadd.f32 %v3787, %v4015
  %v4108 = vadd.f32 %v3788, %v4018
  %v4109 = vadd.f32 %v3789, %v4020
  %v4110 = vadd.f32 %v3790, %v4023
  %v4111 = vadd.f32 %v3791, %v4025
  %v4112 = vadd.f32 %v3792, %v4028
  %v4113 = vadd.f32 %v3793, %v4030
  %v4114 = vadd.f32 %v3794, %v4033
  %v4115 = vadd.f32 %v3795, %v4035
  %v4116 = vadd.f32 %v3796, %v4038
  %v4117 = vadd.f32 %v3797, %v4040
  %v4118 = vadd.f32 %v3798, %v4043
  %v4119 = vadd.f32 %v3799, %v4045
  %v4120 = vadd.f32 %v3800, %v4048
  %v4121 = vadd.f32 %v3801, %v4050
  %v4122 = vadd.f32 %v3802, %v4053
  %v4123 = vadd.f32 %v3803, %v4055
  %v4124 = vadd.f32 %v3804, %v4058
  %v4125 = vadd.f32 %v3805, %v4060
  %v4126 = vrot.slane %v1108, 2
  %v4127 = vrot.slane %v1109, 2
  %v4128 = vsel %vm2017, %v4126, %v4127
  %v4129 = vrot.slane %v1110, 2
  %v4130 = vsel %vm2017, %v4127, %v4129
  %v4131 = vrot.slane %v1162, 2
  %v4132 = vrot.slane %v1163, 2
  %v4133 = vsel %vm2017, %v4131, %v4132
  %v4134 = vrot.slane %v1164, 2
  %v4135 = vsel %vm2017, %v4132, %v4134
  %v4140 = vpack.c.bf16 %v4130, %v4128
  %v4141 = vpack.c.bf16 %v4135, %v4133
  %s4142 = scalar_lea.vmem %s2, 512
  %v4143 = vld [vmem:[%s4142] sm:$0xf]
  %v4144 = vld [vmem:[%s4142 + $0x4] sm:$0xf]
  %v4145 = vld [vmem:[%s4142 + $0x8] sm:$0xf]
  %v4146 = vld [vmem:[%s4142 + $0xc] sm:$0xf]
  %v4147 = vld [vmem:[%s4142 + $0x10] sm:$0xf]
  %v4148 = vld [vmem:[%s4142 + $0x14] sm:$0xf]
  %v4149 = vld [vmem:[%s4142 + $0x18] sm:$0xf]
  %v4150 = vld [vmem:[%s4142 + $0x1c] sm:$0xf]
  %v4151 = vld [vmem:[%s4142 + $0x20] sm:$0xf]
  %v4152 = vld [vmem:[%s4142 + $0x24] sm:$0xf]
  %v4153 = vld [vmem:[%s4142 + $0x28] sm:$0xf]
  %v4154 = vld [vmem:[%s4142 + $0x2c] sm:$0xf]
  %v4155 = vld [vmem:[%s4142 + $0x30] sm:$0xf]
  %v4156 = vld [vmem:[%s4142 + $0x34] sm:$0xf]
  %v4157 = vld [vmem:[%s4142 + $0x38] sm:$0xf]
  %v4158 = vld [vmem:[%s4142 + $0x3c] sm:$0xf]
  %v4175 = vunpack.c.l.b16 %v4143
  %v4176 = vunpack.c.l.b16 %v4144
  %v4177 = vunpack.c.l.b16 %v4145
  %v4178 = vunpack.c.l.b16 %v4146
  %v4179 = vunpack.c.l.b16 %v4147
  %v4180 = vunpack.c.l.b16 %v4148
  %v4181 = vunpack.c.l.b16 %v4149
  %v4182 = vunpack.c.l.b16 %v4150
  %v4183 = vunpack.c.l.b16 %v4151
  %v4184 = vunpack.c.l.b16 %v4152
  %v4185 = vunpack.c.l.b16 %v4153
  %v4186 = vunpack.c.l.b16 %v4154
  %v4187 = vunpack.c.l.b16 %v4155
  %v4188 = vunpack.c.l.b16 %v4156
  %v4189 = vunpack.c.l.b16 %v4157
  %v4190 = vunpack.c.l.b16 %v4158
  %v4191 = vpack.c.b16 %v4176, %v4175
  %v4192 = vpack.c.b16 %v4178, %v4177
  %v4193 = vpack.c.b16 %v4180, %v4179
  %v4194 = vpack.c.b16 %v4182, %v4181
  %v4195 = vpack.c.b16 %v4184, %v4183
  %v4196 = vpack.c.b16 %v4186, %v4185
  %v4197 = vpack.c.b16 %v4188, %v4187
  %v4198 = vpack.c.b16 %v4190, %v4189
  %4207 = vmatpush.bf16.msra.mxu0 %v4198
  %4208 = vmatpush.bf16.msra.mxu0 %v4197
  %4209 = vmatpush.bf16.msra.mxu0 %v4196
  %4210 = vmatpush.bf16.msra.mxu0 %v4195
  %4211 = vmatpush.bf16.msra.mxu0 %v4194
  %4212 = vmatpush.bf16.msra.mxu0 %v4193
  %4213 = vmatpush.bf16.msra.mxu0 %v4192
  %4214 = vmatpush.bf16.msra.mxu0 %v4191
  %4215 = vmatmul.bf16.gmra.mxu0 %v2244
  %v4216 = vpop.f32.mrf.mxu0
  %v4217 = vadd.f32 0.0, %v4216
  %v4218 = vpop.f32.mrf.mxu0
  %v4219 = vadd.f32 0.0, %v4218
  %4220 = vmatmul.bf16.gmra.mxu0 %v2245
  %v4221 = vpop.f32.mrf.mxu0
  %v4222 = vadd.f32 0.0, %v4221
  %v4223 = vpop.f32.mrf.mxu0
  %v4224 = vadd.f32 0.0, %v4223
  %4225 = vmatmul.bf16.gmra.mxu0 %v2246
  %v4226 = vpop.f32.mrf.mxu0
  %v4227 = vadd.f32 0.0, %v4226
  %v4228 = vpop.f32.mrf.mxu0
  %v4229 = vadd.f32 0.0, %v4228
  %4230 = vmatmul.bf16.gmra.mxu0 %v2247
  %v4231 = vpop.f32.mrf.mxu0
  %v4232 = vadd.f32 0.0, %v4231
  %v4233 = vpop.f32.mrf.mxu0
  %v4234 = vadd.f32 0.0, %v4233
  %4235 = vmatmul.bf16.gmra.mxu0 %v2248
  %v4236 = vpop.f32.mrf.mxu0
  %v4237 = vadd.f32 0.0, %v4236
  %v4238 = vpop.f32.mrf.mxu0
  %v4239 = vadd.f32 0.0, %v4238
  %4240 = vmatmul.bf16.gmra.mxu0 %v2249
  %v4241 = vpop.f32.mrf.mxu0
  %v4242 = vadd.f32 0.0, %v4241
  %v4243 = vpop.f32.mrf.mxu0
  %v4244 = vadd.f32 0.0, %v4243
  %4245 = vmatmul.bf16.gmra.mxu0 %v2250
  %v4246 = vpop.f32.mrf.mxu0
  %v4247 = vadd.f32 0.0, %v4246
  %v4248 = vpop.f32.mrf.mxu0
  %v4249 = vadd.f32 0.0, %v4248
  %4250 = vmatmul.bf16.gmra.mxu0 %v2251
  %v4251 = vpop.f32.mrf.mxu0
  %v4252 = vadd.f32 0.0, %v4251
  %v4253 = vpop.f32.mrf.mxu0
  %v4254 = vadd.f32 0.0, %v4253
  %4255 = vmatmul.bf16.gmra.mxu0 %v2252
  %v4256 = vpop.f32.mrf.mxu0
  %v4257 = vadd.f32 0.0, %v4256
  %v4258 = vpop.f32.mrf.mxu0
  %v4259 = vadd.f32 0.0, %v4258
  %4260 = vmatmul.bf16.gmra.mxu0 %v2253
  %v4261 = vpop.f32.mrf.mxu0
  %v4262 = vadd.f32 0.0, %v4261
  %v4263 = vpop.f32.mrf.mxu0
  %v4264 = vadd.f32 0.0, %v4263
  %4265 = vmatmul.bf16.gmra.mxu0 %v2254
  %v4266 = vpop.f32.mrf.mxu0
  %v4267 = vadd.f32 0.0, %v4266
  %v4268 = vpop.f32.mrf.mxu0
  %v4269 = vadd.f32 0.0, %v4268
  %4270 = vmatmul.bf16.gmra.mxu0 %v2255
  %v4271 = vpop.f32.mrf.mxu0
  %v4272 = vadd.f32 0.0, %v4271
  %v4273 = vpop.f32.mrf.mxu0
  %v4274 = vadd.f32 0.0, %v4273
  %4275 = vmatmul.bf16.gmra.mxu0 %v2256
  %v4276 = vpop.f32.mrf.mxu0
  %v4277 = vadd.f32 0.0, %v4276
  %v4278 = vpop.f32.mrf.mxu0
  %v4279 = vadd.f32 0.0, %v4278
  %4280 = vmatmul.bf16.gmra.mxu0 %v2257
  %v4281 = vpop.f32.mrf.mxu0
  %v4282 = vadd.f32 0.0, %v4281
  %v4283 = vpop.f32.mrf.mxu0
  %v4284 = vadd.f32 0.0, %v4283
  %4285 = vmatmul.bf16.gmra.mxu0 %v3206
  %v4286 = vpop.f32.mrf.mxu0
  %v4287 = vadd.f32 0.0, %v4286
  %v4288 = vpop.f32.mrf.mxu0
  %v4289 = vadd.f32 0.0, %v4288
  %4290 = vmatmul.bf16.gmra.mxu0 %v4140
  %v4291 = vpop.f32.mrf.mxu0
  %v4292 = vadd.f32 0.0, %v4291
  %v4293 = vpop.f32.mrf.mxu0
  %v4294 = vadd.f32 0.0, %v4293
  %4295 = vmatmul.bf16.gmra.mxu0 %v2260
  %v4296 = vpop.f32.mrf.mxu0
  %v4297 = vadd.f32 0.0, %v4296
  %v4298 = vpop.f32.mrf.mxu0
  %v4299 = vadd.f32 0.0, %v4298
  %4300 = vmatmul.bf16.gmra.mxu0 %v2261
  %v4301 = vpop.f32.mrf.mxu0
  %v4302 = vadd.f32 0.0, %v4301
  %v4303 = vpop.f32.mrf.mxu0
  %v4304 = vadd.f32 0.0, %v4303
  %4305 = vmatmul.bf16.gmra.mxu0 %v2262
  %v4306 = vpop.f32.mrf.mxu0
  %v4307 = vadd.f32 0.0, %v4306
  %v4308 = vpop.f32.mrf.mxu0
  %v4309 = vadd.f32 0.0, %v4308
  %4310 = vmatmul.bf16.gmra.mxu0 %v2263
  %v4311 = vpop.f32.mrf.mxu0
  %v4312 = vadd.f32 0.0, %v4311
  %v4313 = vpop.f32.mrf.mxu0
  %v4314 = vadd.f32 0.0, %v4313
  %4315 = vmatmul.bf16.gmra.mxu0 %v2264
  %v4316 = vpop.f32.mrf.mxu0
  %v4317 = vadd.f32 0.0, %v4316
  %v4318 = vpop.f32.mrf.mxu0
  %v4319 = vadd.f32 0.0, %v4318
  %4320 = vmatmul.bf16.gmra.mxu0 %v2265
  %v4321 = vpop.f32.mrf.mxu0
  %v4322 = vadd.f32 0.0, %v4321
  %v4323 = vpop.f32.mrf.mxu0
  %v4324 = vadd.f32 0.0, %v4323
  %4325 = vmatmul.bf16.gmra.mxu0 %v2266
  %v4326 = vpop.f32.mrf.mxu0
  %v4327 = vadd.f32 0.0, %v4326
  %v4328 = vpop.f32.mrf.mxu0
  %v4329 = vadd.f32 0.0, %v4328
  %4330 = vmatmul.bf16.gmra.mxu0 %v2267
  %v4331 = vpop.f32.mrf.mxu0
  %v4332 = vadd.f32 0.0, %v4331
  %v4333 = vpop.f32.mrf.mxu0
  %v4334 = vadd.f32 0.0, %v4333
  %4335 = vmatmul.bf16.gmra.mxu0 %v2268
  %v4336 = vpop.f32.mrf.mxu0
  %v4337 = vadd.f32 0.0, %v4336
  %v4338 = vpop.f32.mrf.mxu0
  %v4339 = vadd.f32 0.0, %v4338
  %4340 = vmatmul.bf16.gmra.mxu0 %v2269
  %v4341 = vpop.f32.mrf.mxu0
  %v4342 = vadd.f32 0.0, %v4341
  %v4343 = vpop.f32.mrf.mxu0
  %v4344 = vadd.f32 0.0, %v4343
  %4345 = vmatmul.bf16.gmra.mxu0 %v2270
  %v4346 = vpop.f32.mrf.mxu0
  %v4347 = vadd.f32 0.0, %v4346
  %v4348 = vpop.f32.mrf.mxu0
  %v4349 = vadd.f32 0.0, %v4348
  %4350 = vmatmul.bf16.gmra.mxu0 %v2271
  %v4351 = vpop.f32.mrf.mxu0
  %v4352 = vadd.f32 0.0, %v4351
  %v4353 = vpop.f32.mrf.mxu0
  %v4354 = vadd.f32 0.0, %v4353
  %4355 = vmatmul.bf16.gmra.mxu0 %v2272
  %v4356 = vpop.f32.mrf.mxu0
  %v4357 = vadd.f32 0.0, %v4356
  %v4358 = vpop.f32.mrf.mxu0
  %v4359 = vadd.f32 0.0, %v4358
  %4360 = vmatmul.bf16.gmra.mxu0 %v2273
  %v4361 = vpop.f32.mrf.mxu0
  %v4362 = vadd.f32 0.0, %v4361
  %v4363 = vpop.f32.mrf.mxu0
  %v4364 = vadd.f32 0.0, %v4363
  %4365 = vmatmul.bf16.gmra.mxu0 %v3207
  %v4366 = vpop.f32.mrf.mxu0
  %v4367 = vadd.f32 0.0, %v4366
  %v4368 = vpop.f32.mrf.mxu0
  %v4369 = vadd.f32 0.0, %v4368
  %4370 = vmatmul.bf16.gmra.mxu0 %v4141
  %v4371 = vpop.f32.mrf.mxu0
  %v4372 = vadd.f32 0.0, %v4371
  %v4373 = vpop.f32.mrf.mxu0
  %v4374 = vadd.f32 0.0, %v4373
  %4375 = vdwg.mxu0
  %v4376 = vadd.f32 %v4062, %v4217
  %v4377 = vadd.f32 %v4063, %v4219
  %v4378 = vadd.f32 %v4064, %v4222
  %v4379 = vadd.f32 %v4065, %v4224
  %v4380 = vadd.f32 %v4066, %v4227
  %v4381 = vadd.f32 %v4067, %v4229
  %v4382 = vadd.f32 %v4068, %v4232
  %v4383 = vadd.f32 %v4069, %v4234
  %v4384 = vadd.f32 %v4070, %v4237
  %v4385 = vadd.f32 %v4071, %v4239
  %v4386 = vadd.f32 %v4072, %v4242
  %v4387 = vadd.f32 %v4073, %v4244
  %v4388 = vadd.f32 %v4074, %v4247
  %v4389 = vadd.f32 %v4075, %v4249
  %v4390 = vadd.f32 %v4076, %v4252
  %v4391 = vadd.f32 %v4077, %v4254
  %v4392 = vadd.f32 %v4078, %v4257
  %v4393 = vadd.f32 %v4079, %v4259
  %v4394 = vadd.f32 %v4080, %v4262
  %v4395 = vadd.f32 %v4081, %v4264
  %v4396 = vadd.f32 %v4082, %v4267
  %v4397 = vadd.f32 %v4083, %v4269
  %v4398 = vadd.f32 %v4084, %v4272
  %v4399 = vadd.f32 %v4085, %v4274
  %v4400 = vadd.f32 %v4086, %v4277
  %v4401 = vadd.f32 %v4087, %v4279
  %v4402 = vadd.f32 %v4088, %v4282
  %v4403 = vadd.f32 %v4089, %v4284
  %v4404 = vadd.f32 %v4090, %v4287
  %v4405 = vadd.f32 %v4091, %v4289
  %v4406 = vadd.f32 %v4092, %v4292
  %v4407 = vadd.f32 %v4093, %v4294
  %v4408 = vadd.f32 %v4094, %v4297
  %v4409 = vadd.f32 %v4095, %v4299
  %v4410 = vadd.f32 %v4096, %v4302
  %v4411 = vadd.f32 %v4097, %v4304
  %v4412 = vadd.f32 %v4098, %v4307
  %v4413 = vadd.f32 %v4099, %v4309
  %v4414 = vadd.f32 %v4100, %v4312
  %v4415 = vadd.f32 %v4101, %v4314
  %v4416 = vadd.f32 %v4102, %v4317
  %v4417 = vadd.f32 %v4103, %v4319
  %v4418 = vadd.f32 %v4104, %v4322
  %v4419 = vadd.f32 %v4105, %v4324
  %v4420 = vadd.f32 %v4106, %v4327
  %v4421 = vadd.f32 %v4107, %v4329
  %v4422 = vadd.f32 %v4108, %v4332
  %v4423 = vadd.f32 %v4109, %v4334
  %v4424 = vadd.f32 %v4110, %v4337
  %v4425 = vadd.f32 %v4111, %v4339
  %v4426 = vadd.f32 %v4112, %v4342
  %v4427 = vadd.f32 %v4113, %v4344
  %v4428 = vadd.f32 %v4114, %v4347
  %v4429 = vadd.f32 %v4115, %v4349
  %v4430 = vadd.f32 %v4116, %v4352
  %v4431 = vadd.f32 %v4117, %v4354
  %v4432 = vadd.f32 %v4118, %v4357
  %v4433 = vadd.f32 %v4119, %v4359
  %v4434 = vadd.f32 %v4120, %v4362
  %v4435 = vadd.f32 %v4121, %v4364
  %v4436 = vadd.f32 %v4122, %v4367
  %v4437 = vadd.f32 %v4123, %v4369
  %v4438 = vadd.f32 %v4124, %v4372
  %v4439 = vadd.f32 %v4125, %v4374
  %v4440 = vld [vmem:[%s6] sm:$0x1]
  %v4441 = vld [vmem:[%s7] sm:$0x1]
  %v4442 = vadd.f32 %v4376, %v4377
  %v4443 = vadd.f32 %v4442, %v4378
  %v4444 = vadd.f32 %v4443, %v4379
  %v4445 = vadd.f32 %v4444, %v4380
  %v4446 = vadd.f32 %v4445, %v4381
  %v4447 = vadd.f32 %v4446, %v4382
  %v4448 = vadd.f32 %v4447, %v4383
  %v4449 = vadd.f32 %v4448, %v4384
  %v4450 = vadd.f32 %v4449, %v4385
  %v4451 = vadd.f32 %v4450, %v4386
  %v4452 = vadd.f32 %v4451, %v4387
  %v4453 = vadd.f32 %v4452, %v4388
  %v4454 = vadd.f32 %v4453, %v4389
  %v4455 = vadd.f32 %v4454, %v4390
  %v4456 = vadd.f32 %v4455, %v4391
  %v4457 = vadd.f32 %v4456, %v4392
  %v4458 = vadd.f32 %v4457, %v4393
  %v4459 = vadd.f32 %v4458, %v4394
  %v4460 = vadd.f32 %v4459, %v4395
  %v4461 = vadd.f32 %v4460, %v4396
  %v4462 = vadd.f32 %v4461, %v4397
  %v4463 = vadd.f32 %v4462, %v4398
  %v4464 = vadd.f32 %v4463, %v4399
  %v4465 = vadd.f32 %v4464, %v4400
  %v4466 = vadd.f32 %v4465, %v4401
  %v4467 = vadd.f32 %v4466, %v4402
  %v4468 = vadd.f32 %v4467, %v4403
  %v4469 = vadd.f32 %v4468, %v4404
  %v4470 = vadd.f32 %v4469, %v4405
  %v4471 = vadd.f32 %v4470, %v4406
  %v4472 = vadd.f32 %v4471, %v4407
  %v4473 = vadd.f32 %v4472, %v4408
  %v4474 = vadd.f32 %v4473, %v4409
  %v4475 = vadd.f32 %v4474, %v4410
  %v4476 = vadd.f32 %v4475, %v4411
  %v4477 = vadd.f32 %v4476, %v4412
  %v4478 = vadd.f32 %v4477, %v4413
  %v4479 = vadd.f32 %v4478, %v4414
  %v4480 = vadd.f32 %v4479, %v4415
  %v4481 = vadd.f32 %v4480, %v4416
  %v4482 = vadd.f32 %v4481, %v4417
  %v4483 = vadd.f32 %v4482, %v4418
  %v4484 = vadd.f32 %v4483, %v4419
  %v4485 = vadd.f32 %v4484, %v4420
  %v4486 = vadd.f32 %v4485, %v4421
  %v4487 = vadd.f32 %v4486, %v4422
  %v4488 = vadd.f32 %v4487, %v4423
  %v4489 = vadd.f32 %v4488, %v4424
  %v4490 = vadd.f32 %v4489, %v4425
  %v4491 = vadd.f32 %v4490, %v4426
  %v4492 = vadd.f32 %v4491, %v4427
  %v4493 = vadd.f32 %v4492, %v4428
  %v4494 = vadd.f32 %v4493, %v4429
  %v4495 = vadd.f32 %v4494, %v4430
  %v4496 = vadd.f32 %v4495, %v4431
  %v4497 = vadd.f32 %v4496, %v4432
  %v4498 = vadd.f32 %v4497, %v4433
  %v4499 = vadd.f32 %v4498, %v4434
  %v4500 = vadd.f32 %v4499, %v4435
  %v4501 = vadd.f32 %v4500, %v4436
  %v4502 = vadd.f32 %v4501, %v4437
  %v4503 = vadd.f32 %v4502, %v4438
  %v4504 = vadd.f32 %v4503, %v4439
  %v4505 = vrot.slane %v4504, 4
  %v4506 = vadd.f32 %v4504, %v4505
  %v4507 = vrot.slane %v4506, 2
  %v4508 = vadd.f32 %v4506, %v4507
  %v4509 = vrot.slane %v4508, 1
  %v4510 = vadd.f32 %v4508, %v4509
  %v4511 = vmul.f32 %v4510, 0.001953125
  %v4512 = vsub.f32 %v4376, %v4511
  %v4513 = vsub.f32 %v4377, %v4511
  %v4514 = vsub.f32 %v4378, %v4511
  %v4515 = vsub.f32 %v4379, %v4511
  %v4516 = vsub.f32 %v4380, %v4511
  %v4517 = vsub.f32 %v4381, %v4511
  %v4518 = vsub.f32 %v4382, %v4511
  %v4519 = vsub.f32 %v4383, %v4511
  %v4520 = vsub.f32 %v4384, %v4511
  %v4521 = vsub.f32 %v4385, %v4511
  %v4522 = vsub.f32 %v4386, %v4511
  %v4523 = vsub.f32 %v4387, %v4511
  %v4524 = vsub.f32 %v4388, %v4511
  %v4525 = vsub.f32 %v4389, %v4511
  %v4526 = vsub.f32 %v4390, %v4511
  %v4527 = vsub.f32 %v4391, %v4511
  %v4528 = vsub.f32 %v4392, %v4511
  %v4529 = vsub.f32 %v4393, %v4511
  %v4530 = vsub.f32 %v4394, %v4511
  %v4531 = vsub.f32 %v4395, %v4511
  %v4532 = vsub.f32 %v4396, %v4511
  %v4533 = vsub.f32 %v4397, %v4511
  %v4534 = vsub.f32 %v4398, %v4511
  %v4535 = vsub.f32 %v4399, %v4511
  %v4536 = vsub.f32 %v4400, %v4511
  %v4537 = vsub.f32 %v4401, %v4511
  %v4538 = vsub.f32 %v4402, %v4511
  %v4539 = vsub.f32 %v4403, %v4511
  %v4540 = vsub.f32 %v4404, %v4511
  %v4541 = vsub.f32 %v4405, %v4511
  %v4542 = vsub.f32 %v4406, %v4511
  %v4543 = vsub.f32 %v4407, %v4511
  %v4544 = vsub.f32 %v4408, %v4511
  %v4545 = vsub.f32 %v4409, %v4511
  %v4546 = vsub.f32 %v4410, %v4511
  %v4547 = vsub.f32 %v4411, %v4511
  %v4548 = vsub.f32 %v4412, %v4511
  %v4549 = vsub.f32 %v4413, %v4511
  %v4550 = vsub.f32 %v4414, %v4511
  %v4551 = vsub.f32 %v4415, %v4511
  %v4552 = vsub.f32 %v4416, %v4511
  %v4553 = vsub.f32 %v4417, %v4511
  %v4554 = vsub.f32 %v4418, %v4511
  %v4555 = vsub.f32 %v4419, %v4511
  %v4556 = vsub.f32 %v4420, %v4511
  %v4557 = vsub.f32 %v4421, %v4511
  %v4558 = vsub.f32 %v4422, %v4511
  %v4559 = vsub.f32 %v4423, %v4511
  %v4560 = vsub.f32 %v4424, %v4511
  %v4561 = vsub.f32 %v4425, %v4511
  %v4562 = vsub.f32 %v4426, %v4511
  %v4563 = vsub.f32 %v4427, %v4511
  %v4564 = vsub.f32 %v4428, %v4511
  %v4565 = vsub.f32 %v4429, %v4511
  %v4566 = vsub.f32 %v4430, %v4511
  %v4567 = vsub.f32 %v4431, %v4511
  %v4568 = vsub.f32 %v4432, %v4511
  %v4569 = vsub.f32 %v4433, %v4511
  %v4570 = vsub.f32 %v4434, %v4511
  %v4571 = vsub.f32 %v4435, %v4511
  %v4572 = vsub.f32 %v4436, %v4511
  %v4573 = vsub.f32 %v4437, %v4511
  %v4574 = vsub.f32 %v4438, %v4511
  %v4575 = vsub.f32 %v4439, %v4511
  %v4576 = vmul.f32 %v4512, %v4512
  %v4577 = vmul.f32 %v4513, %v4513
  %v4578 = vmul.f32 %v4514, %v4514
  %v4579 = vmul.f32 %v4515, %v4515
  %v4580 = vmul.f32 %v4516, %v4516
  %v4581 = vmul.f32 %v4517, %v4517
  %v4582 = vmul.f32 %v4518, %v4518
  %v4583 = vmul.f32 %v4519, %v4519
  %v4584 = vmul.f32 %v4520, %v4520
  %v4585 = vmul.f32 %v4521, %v4521
  %v4586 = vmul.f32 %v4522, %v4522
  %v4587 = vmul.f32 %v4523, %v4523
  %v4588 = vmul.f32 %v4524, %v4524
  %v4589 = vmul.f32 %v4525, %v4525
  %v4590 = vmul.f32 %v4526, %v4526
  %v4591 = vmul.f32 %v4527, %v4527
  %v4592 = vmul.f32 %v4528, %v4528
  %v4593 = vmul.f32 %v4529, %v4529
  %v4594 = vmul.f32 %v4530, %v4530
  %v4595 = vmul.f32 %v4531, %v4531
  %v4596 = vmul.f32 %v4532, %v4532
  %v4597 = vmul.f32 %v4533, %v4533
  %v4598 = vmul.f32 %v4534, %v4534
  %v4599 = vmul.f32 %v4535, %v4535
  %v4600 = vmul.f32 %v4536, %v4536
  %v4601 = vmul.f32 %v4537, %v4537
  %v4602 = vmul.f32 %v4538, %v4538
  %v4603 = vmul.f32 %v4539, %v4539
  %v4604 = vmul.f32 %v4540, %v4540
  %v4605 = vmul.f32 %v4541, %v4541
  %v4606 = vmul.f32 %v4542, %v4542
  %v4607 = vmul.f32 %v4543, %v4543
  %v4608 = vmul.f32 %v4544, %v4544
  %v4609 = vmul.f32 %v4545, %v4545
  %v4610 = vmul.f32 %v4546, %v4546
  %v4611 = vmul.f32 %v4547, %v4547
  %v4612 = vmul.f32 %v4548, %v4548
  %v4613 = vmul.f32 %v4549, %v4549
  %v4614 = vmul.f32 %v4550, %v4550
  %v4615 = vmul.f32 %v4551, %v4551
  %v4616 = vmul.f32 %v4552, %v4552
  %v4617 = vmul.f32 %v4553, %v4553
  %v4618 = vmul.f32 %v4554, %v4554
  %v4619 = vmul.f32 %v4555, %v4555
  %v4620 = vmul.f32 %v4556, %v4556
  %v4621 = vmul.f32 %v4557, %v4557
  %v4622 = vmul.f32 %v4558, %v4558
  %v4623 = vmul.f32 %v4559, %v4559
  %v4624 = vmul.f32 %v4560, %v4560
  %v4625 = vmul.f32 %v4561, %v4561
  %v4626 = vmul.f32 %v4562, %v4562
  %v4627 = vmul.f32 %v4563, %v4563
  %v4628 = vmul.f32 %v4564, %v4564
  %v4629 = vmul.f32 %v4565, %v4565
  %v4630 = vmul.f32 %v4566, %v4566
  %v4631 = vmul.f32 %v4567, %v4567
  %v4632 = vmul.f32 %v4568, %v4568
  %v4633 = vmul.f32 %v4569, %v4569
  %v4634 = vmul.f32 %v4570, %v4570
  %v4635 = vmul.f32 %v4571, %v4571
  %v4636 = vmul.f32 %v4572, %v4572
  %v4637 = vmul.f32 %v4573, %v4573
  %v4638 = vmul.f32 %v4574, %v4574
  %v4639 = vmul.f32 %v4575, %v4575
  %v4640 = vadd.f32 %v4576, %v4577
  %v4641 = vadd.f32 %v4640, %v4578
  %v4642 = vadd.f32 %v4641, %v4579
  %v4643 = vadd.f32 %v4642, %v4580
  %v4644 = vadd.f32 %v4643, %v4581
  %v4645 = vadd.f32 %v4644, %v4582
  %v4646 = vadd.f32 %v4645, %v4583
  %v4647 = vadd.f32 %v4646, %v4584
  %v4648 = vadd.f32 %v4647, %v4585
  %v4649 = vadd.f32 %v4648, %v4586
  %v4650 = vadd.f32 %v4649, %v4587
  %v4651 = vadd.f32 %v4650, %v4588
  %v4652 = vadd.f32 %v4651, %v4589
  %v4653 = vadd.f32 %v4652, %v4590
  %v4654 = vadd.f32 %v4653, %v4591
  %v4655 = vadd.f32 %v4654, %v4592
  %v4656 = vadd.f32 %v4655, %v4593
  %v4657 = vadd.f32 %v4656, %v4594
  %v4658 = vadd.f32 %v4657, %v4595
  %v4659 = vadd.f32 %v4658, %v4596
  %v4660 = vadd.f32 %v4659, %v4597
  %v4661 = vadd.f32 %v4660, %v4598
  %v4662 = vadd.f32 %v4661, %v4599
  %v4663 = vadd.f32 %v4662, %v4600
  %v4664 = vadd.f32 %v4663, %v4601
  %v4665 = vadd.f32 %v4664, %v4602
  %v4666 = vadd.f32 %v4665, %v4603
  %v4667 = vadd.f32 %v4666, %v4604
  %v4668 = vadd.f32 %v4667, %v4605
  %v4669 = vadd.f32 %v4668, %v4606
  %v4670 = vadd.f32 %v4669, %v4607
  %v4671 = vadd.f32 %v4670, %v4608
  %v4672 = vadd.f32 %v4671, %v4609
  %v4673 = vadd.f32 %v4672, %v4610
  %v4674 = vadd.f32 %v4673, %v4611
  %v4675 = vadd.f32 %v4674, %v4612
  %v4676 = vadd.f32 %v4675, %v4613
  %v4677 = vadd.f32 %v4676, %v4614
  %v4678 = vadd.f32 %v4677, %v4615
  %v4679 = vadd.f32 %v4678, %v4616
  %v4680 = vadd.f32 %v4679, %v4617
  %v4681 = vadd.f32 %v4680, %v4618
  %v4682 = vadd.f32 %v4681, %v4619
  %v4683 = vadd.f32 %v4682, %v4620
  %v4684 = vadd.f32 %v4683, %v4621
  %v4685 = vadd.f32 %v4684, %v4622
  %v4686 = vadd.f32 %v4685, %v4623
  %v4687 = vadd.f32 %v4686, %v4624
  %v4688 = vadd.f32 %v4687, %v4625
  %v4689 = vadd.f32 %v4688, %v4626
  %v4690 = vadd.f32 %v4689, %v4627
  %v4691 = vadd.f32 %v4690, %v4628
  %v4692 = vadd.f32 %v4691, %v4629
  %v4693 = vadd.f32 %v4692, %v4630
  %v4694 = vadd.f32 %v4693, %v4631
  %v4695 = vadd.f32 %v4694, %v4632
  %v4696 = vadd.f32 %v4695, %v4633
  %v4697 = vadd.f32 %v4696, %v4634
  %v4698 = vadd.f32 %v4697, %v4635
  %v4699 = vadd.f32 %v4698, %v4636
  %v4700 = vadd.f32 %v4699, %v4637
  %v4701 = vadd.f32 %v4700, %v4638
  %v4702 = vadd.f32 %v4701, %v4639
  %v4703 = vrot.slane %v4702, 4
  %v4704 = vadd.f32 %v4702, %v4703
  %v4705 = vrot.slane %v4704, 2
  %v4706 = vadd.f32 %v4704, %v4705
  %v4707 = vrot.slane %v4706, 1
  %v4708 = vadd.f32 %v4706, %v4707
  %v4709 = vmul.f32 %v4708, 0.001953125
  %v4710 = vadd.f32 %v4709, 1e-05
  %v4711 = vrsqrt.pop %v4710
  %v4712 = vmul.f32 %v4711, %v4710
  %v4713 = vmul.f32 %v4712, %v4711
  %v4714 = vmul.f32 0.5, %v4713
  %v4715 = vsub.f32 1.5, %v4714
  %v4716 = vmul.f32 %v4711, %v4715
  %vm4717 = vweird.f32 %v4710
  %vm4718 = vweird.f32 %v4711
  %vm4719 = vmor %vm4717, %vm4718
  %v4720 = vsel %vm4719, %v4711, %v4716
  %v4721 = vmul.f32 %v4512, %v4720
  %v4722 = vmul.f32 %v4513, %v4720
  %v4723 = vmul.f32 %v4514, %v4720
  %v4724 = vmul.f32 %v4515, %v4720
  %v4725 = vmul.f32 %v4516, %v4720
  %v4726 = vmul.f32 %v4517, %v4720
  %v4727 = vmul.f32 %v4518, %v4720
  %v4728 = vmul.f32 %v4519, %v4720
  %v4729 = vmul.f32 %v4520, %v4720
  %v4730 = vmul.f32 %v4521, %v4720
  %v4731 = vmul.f32 %v4522, %v4720
  %v4732 = vmul.f32 %v4523, %v4720
  %v4733 = vmul.f32 %v4524, %v4720
  %v4734 = vmul.f32 %v4525, %v4720
  %v4735 = vmul.f32 %v4526, %v4720
  %v4736 = vmul.f32 %v4527, %v4720
  %v4737 = vmul.f32 %v4528, %v4720
  %v4738 = vmul.f32 %v4529, %v4720
  %v4739 = vmul.f32 %v4530, %v4720
  %v4740 = vmul.f32 %v4531, %v4720
  %v4741 = vmul.f32 %v4532, %v4720
  %v4742 = vmul.f32 %v4533, %v4720
  %v4743 = vmul.f32 %v4534, %v4720
  %v4744 = vmul.f32 %v4535, %v4720
  %v4745 = vmul.f32 %v4536, %v4720
  %v4746 = vmul.f32 %v4537, %v4720
  %v4747 = vmul.f32 %v4538, %v4720
  %v4748 = vmul.f32 %v4539, %v4720
  %v4749 = vmul.f32 %v4540, %v4720
  %v4750 = vmul.f32 %v4541, %v4720
  %v4751 = vmul.f32 %v4542, %v4720
  %v4752 = vmul.f32 %v4543, %v4720
  %v4753 = vmul.f32 %v4544, %v4720
  %v4754 = vmul.f32 %v4545, %v4720
  %v4755 = vmul.f32 %v4546, %v4720
  %v4756 = vmul.f32 %v4547, %v4720
  %v4757 = vmul.f32 %v4548, %v4720
  %v4758 = vmul.f32 %v4549, %v4720
  %v4759 = vmul.f32 %v4550, %v4720
  %v4760 = vmul.f32 %v4551, %v4720
  %v4761 = vmul.f32 %v4552, %v4720
  %v4762 = vmul.f32 %v4553, %v4720
  %v4763 = vmul.f32 %v4554, %v4720
  %v4764 = vmul.f32 %v4555, %v4720
  %v4765 = vmul.f32 %v4556, %v4720
  %v4766 = vmul.f32 %v4557, %v4720
  %v4767 = vmul.f32 %v4558, %v4720
  %v4768 = vmul.f32 %v4559, %v4720
  %v4769 = vmul.f32 %v4560, %v4720
  %v4770 = vmul.f32 %v4561, %v4720
  %v4771 = vmul.f32 %v4562, %v4720
  %v4772 = vmul.f32 %v4563, %v4720
  %v4773 = vmul.f32 %v4564, %v4720
  %v4774 = vmul.f32 %v4565, %v4720
  %v4775 = vmul.f32 %v4566, %v4720
  %v4776 = vmul.f32 %v4567, %v4720
  %v4777 = vmul.f32 %v4568, %v4720
  %v4778 = vmul.f32 %v4569, %v4720
  %v4779 = vmul.f32 %v4570, %v4720
  %v4780 = vmul.f32 %v4571, %v4720
  %v4781 = vmul.f32 %v4572, %v4720
  %v4782 = vmul.f32 %v4573, %v4720
  %v4783 = vmul.f32 %v4574, %v4720
  %v4784 = vmul.f32 %v4575, %v4720
  %v4786 = vperm.slane %v4440, 0
  %v4788 = vmul.f32 %v4721, %v4786
  %v4789 = vmul.f32 %v4722, %v4786
  %v4790 = vmul.f32 %v4723, %v4786
  %v4791 = vmul.f32 %v4724, %v4786
  %v4792 = vmul.f32 %v4725, %v4786
  %v4793 = vmul.f32 %v4726, %v4786
  %v4794 = vmul.f32 %v4727, %v4786
  %v4795 = vmul.f32 %v4728, %v4786
  %v4796 = vmul.f32 %v4729, %v4786
  %v4797 = vmul.f32 %v4730, %v4786
  %v4798 = vmul.f32 %v4731, %v4786
  %v4799 = vmul.f32 %v4732, %v4786
  %v4800 = vmul.f32 %v4733, %v4786
  %v4801 = vmul.f32 %v4734, %v4786
  %v4802 = vmul.f32 %v4735, %v4786
  %v4803 = vmul.f32 %v4736, %v4786
  %v4804 = vmul.f32 %v4737, %v4786
  %v4805 = vmul.f32 %v4738, %v4786
  %v4806 = vmul.f32 %v4739, %v4786
  %v4807 = vmul.f32 %v4740, %v4786
  %v4808 = vmul.f32 %v4741, %v4786
  %v4809 = vmul.f32 %v4742, %v4786
  %v4810 = vmul.f32 %v4743, %v4786
  %v4811 = vmul.f32 %v4744, %v4786
  %v4812 = vmul.f32 %v4745, %v4786
  %v4813 = vmul.f32 %v4746, %v4786
  %v4814 = vmul.f32 %v4747, %v4786
  %v4815 = vmul.f32 %v4748, %v4786
  %v4816 = vmul.f32 %v4749, %v4786
  %v4817 = vmul.f32 %v4750, %v4786
  %v4818 = vmul.f32 %v4751, %v4786
  %v4819 = vmul.f32 %v4752, %v4786
  %v4820 = vmul.f32 %v4753, %v4786
  %v4821 = vmul.f32 %v4754, %v4786
  %v4822 = vmul.f32 %v4755, %v4786
  %v4823 = vmul.f32 %v4756, %v4786
  %v4824 = vmul.f32 %v4757, %v4786
  %v4825 = vmul.f32 %v4758, %v4786
  %v4826 = vmul.f32 %v4759, %v4786
  %v4827 = vmul.f32 %v4760, %v4786
  %v4828 = vmul.f32 %v4761, %v4786
  %v4829 = vmul.f32 %v4762, %v4786
  %v4830 = vmul.f32 %v4763, %v4786
  %v4831 = vmul.f32 %v4764, %v4786
  %v4832 = vmul.f32 %v4765, %v4786
  %v4833 = vmul.f32 %v4766, %v4786
  %v4834 = vmul.f32 %v4767, %v4786
  %v4835 = vmul.f32 %v4768, %v4786
  %v4836 = vmul.f32 %v4769, %v4786
  %v4837 = vmul.f32 %v4770, %v4786
  %v4838 = vmul.f32 %v4771, %v4786
  %v4839 = vmul.f32 %v4772, %v4786
  %v4840 = vmul.f32 %v4773, %v4786
  %v4841 = vmul.f32 %v4774, %v4786
  %v4842 = vmul.f32 %v4775, %v4786
  %v4843 = vmul.f32 %v4776, %v4786
  %v4844 = vmul.f32 %v4777, %v4786
  %v4845 = vmul.f32 %v4778, %v4786
  %v4846 = vmul.f32 %v4779, %v4786
  %v4847 = vmul.f32 %v4780, %v4786
  %v4848 = vmul.f32 %v4781, %v4786
  %v4849 = vmul.f32 %v4782, %v4786
  %v4850 = vmul.f32 %v4783, %v4786
  %v4851 = vmul.f32 %v4784, %v4786
  %v4853 = vperm.slane %v4441, 0
  %v4855 = vadd.f32 %v4788, %v4853
  %v4856 = vadd.f32 %v4789, %v4853
  %v4857 = vadd.f32 %v4790, %v4853
  %v4858 = vadd.f32 %v4791, %v4853
  %v4859 = vadd.f32 %v4792, %v4853
  %v4860 = vadd.f32 %v4793, %v4853
  %v4861 = vadd.f32 %v4794, %v4853
  %v4862 = vadd.f32 %v4795, %v4853
  %v4863 = vadd.f32 %v4796, %v4853
  %v4864 = vadd.f32 %v4797, %v4853
  %v4865 = vadd.f32 %v4798, %v4853
  %v4866 = vadd.f32 %v4799, %v4853
  %v4867 = vadd.f32 %v4800, %v4853
  %v4868 = vadd.f32 %v4801, %v4853
  %v4869 = vadd.f32 %v4802, %v4853
  %v4870 = vadd.f32 %v4803, %v4853
  %v4871 = vadd.f32 %v4804, %v4853
  %v4872 = vadd.f32 %v4805, %v4853
  %v4873 = vadd.f32 %v4806, %v4853
  %v4874 = vadd.f32 %v4807, %v4853
  %v4875 = vadd.f32 %v4808, %v4853
  %v4876 = vadd.f32 %v4809, %v4853
  %v4877 = vadd.f32 %v4810, %v4853
  %v4878 = vadd.f32 %v4811, %v4853
  %v4879 = vadd.f32 %v4812, %v4853
  %v4880 = vadd.f32 %v4813, %v4853
  %v4881 = vadd.f32 %v4814, %v4853
  %v4882 = vadd.f32 %v4815, %v4853
  %v4883 = vadd.f32 %v4816, %v4853
  %v4884 = vadd.f32 %v4817, %v4853
  %v4885 = vadd.f32 %v4818, %v4853
  %v4886 = vadd.f32 %v4819, %v4853
  %v4887 = vadd.f32 %v4820, %v4853
  %v4888 = vadd.f32 %v4821, %v4853
  %v4889 = vadd.f32 %v4822, %v4853
  %v4890 = vadd.f32 %v4823, %v4853
  %v4891 = vadd.f32 %v4824, %v4853
  %v4892 = vadd.f32 %v4825, %v4853
  %v4893 = vadd.f32 %v4826, %v4853
  %v4894 = vadd.f32 %v4827, %v4853
  %v4895 = vadd.f32 %v4828, %v4853
  %v4896 = vadd.f32 %v4829, %v4853
  %v4897 = vadd.f32 %v4830, %v4853
  %v4898 = vadd.f32 %v4831, %v4853
  %v4899 = vadd.f32 %v4832, %v4853
  %v4900 = vadd.f32 %v4833, %v4853
  %v4901 = vadd.f32 %v4834, %v4853
  %v4902 = vadd.f32 %v4835, %v4853
  %v4903 = vadd.f32 %v4836, %v4853
  %v4904 = vadd.f32 %v4837, %v4853
  %v4905 = vadd.f32 %v4838, %v4853
  %v4906 = vadd.f32 %v4839, %v4853
  %v4907 = vadd.f32 %v4840, %v4853
  %v4908 = vadd.f32 %v4841, %v4853
  %v4909 = vadd.f32 %v4842, %v4853
  %v4910 = vadd.f32 %v4843, %v4853
  %v4911 = vadd.f32 %v4844, %v4853
  %v4912 = vadd.f32 %v4845, %v4853
  %v4913 = vadd.f32 %v4846, %v4853
  %v4914 = vadd.f32 %v4847, %v4853
  %v4915 = vadd.f32 %v4848, %v4853
  %v4916 = vadd.f32 %v4849, %v4853
  %v4917 = vadd.f32 %v4850, %v4853
  %v4918 = vadd.f32 %v4851, %v4853
  %v4919 = vmax.f32 %v4855, 0.0
  %v4920 = vmax.f32 %v4856, 0.0
  %v4921 = vmax.f32 %v4857, 0.0
  %v4922 = vmax.f32 %v4858, 0.0
  %v4923 = vmax.f32 %v4859, 0.0
  %v4924 = vmax.f32 %v4860, 0.0
  %v4925 = vmax.f32 %v4861, 0.0
  %v4926 = vmax.f32 %v4862, 0.0
  %v4927 = vmax.f32 %v4863, 0.0
  %v4928 = vmax.f32 %v4864, 0.0
  %v4929 = vmax.f32 %v4865, 0.0
  %v4930 = vmax.f32 %v4866, 0.0
  %v4931 = vmax.f32 %v4867, 0.0
  %v4932 = vmax.f32 %v4868, 0.0
  %v4933 = vmax.f32 %v4869, 0.0
  %v4934 = vmax.f32 %v4870, 0.0
  %v4935 = vmax.f32 %v4871, 0.0
  %v4936 = vmax.f32 %v4872, 0.0
  %v4937 = vmax.f32 %v4873, 0.0
  %v4938 = vmax.f32 %v4874, 0.0
  %v4939 = vmax.f32 %v4875, 0.0
  %v4940 = vmax.f32 %v4876, 0.0
  %v4941 = vmax.f32 %v4877, 0.0
  %v4942 = vmax.f32 %v4878, 0.0
  %v4943 = vmax.f32 %v4879, 0.0
  %v4944 = vmax.f32 %v4880, 0.0
  %v4945 = vmax.f32 %v4881, 0.0
  %v4946 = vmax.f32 %v4882, 0.0
  %v4947 = vmax.f32 %v4883, 0.0
  %v4948 = vmax.f32 %v4884, 0.0
  %v4949 = vmax.f32 %v4885, 0.0
  %v4950 = vmax.f32 %v4886, 0.0
  %v4951 = vmax.f32 %v4887, 0.0
  %v4952 = vmax.f32 %v4888, 0.0
  %v4953 = vmax.f32 %v4889, 0.0
  %v4954 = vmax.f32 %v4890, 0.0
  %v4955 = vmax.f32 %v4891, 0.0
  %v4956 = vmax.f32 %v4892, 0.0
  %v4957 = vmax.f32 %v4893, 0.0
  %v4958 = vmax.f32 %v4894, 0.0
  %v4959 = vmax.f32 %v4895, 0.0
  %v4960 = vmax.f32 %v4896, 0.0
  %v4961 = vmax.f32 %v4897, 0.0
  %v4962 = vmax.f32 %v4898, 0.0
  %v4963 = vmax.f32 %v4899, 0.0
  %v4964 = vmax.f32 %v4900, 0.0
  %v4965 = vmax.f32 %v4901, 0.0
  %v4966 = vmax.f32 %v4902, 0.0
  %v4967 = vmax.f32 %v4903, 0.0
  %v4968 = vmax.f32 %v4904, 0.0
  %v4969 = vmax.f32 %v4905, 0.0
  %v4970 = vmax.f32 %v4906, 0.0
  %v4971 = vmax.f32 %v4907, 0.0
  %v4972 = vmax.f32 %v4908, 0.0
  %v4973 = vmax.f32 %v4909, 0.0
  %v4974 = vmax.f32 %v4910, 0.0
  %v4975 = vmax.f32 %v4911, 0.0
  %v4976 = vmax.f32 %v4912, 0.0
  %v4977 = vmax.f32 %v4913, 0.0
  %v4978 = vmax.f32 %v4914, 0.0
  %v4979 = vmax.f32 %v4915, 0.0
  %v4980 = vmax.f32 %v4916, 0.0
  %v4981 = vmax.f32 %v4917, 0.0
  %v4982 = vmax.f32 %v4918, 0.0
  %v4983 = vpack.c.bf16 %v4920, %v4919
  %v4984 = vpack.c.bf16 %v4922, %v4921
  %v4985 = vpack.c.bf16 %v4924, %v4923
  %v4986 = vpack.c.bf16 %v4926, %v4925
  %v4987 = vpack.c.bf16 %v4928, %v4927
  %v4988 = vpack.c.bf16 %v4930, %v4929
  %v4989 = vpack.c.bf16 %v4932, %v4931
  %v4990 = vpack.c.bf16 %v4934, %v4933
  %v4991 = vpack.c.bf16 %v4936, %v4935
  %v4992 = vpack.c.bf16 %v4938, %v4937
  %v4993 = vpack.c.bf16 %v4940, %v4939
  %v4994 = vpack.c.bf16 %v4942, %v4941
  %v4995 = vpack.c.bf16 %v4944, %v4943
  %v4996 = vpack.c.bf16 %v4946, %v4945
  %v4997 = vpack.c.bf16 %v4948, %v4947
  %v4998 = vpack.c.bf16 %v4950, %v4949
  %v4999 = vpack.c.bf16 %v4952, %v4951
  %v5000 = vpack.c.bf16 %v4954, %v4953
  %v5001 = vpack.c.bf16 %v4956, %v4955
  %v5002 = vpack.c.bf16 %v4958, %v4957
  %v5003 = vpack.c.bf16 %v4960, %v4959
  %v5004 = vpack.c.bf16 %v4962, %v4961
  %v5005 = vpack.c.bf16 %v4964, %v4963
  %v5006 = vpack.c.bf16 %v4966, %v4965
  %v5007 = vpack.c.bf16 %v4968, %v4967
  %v5008 = vpack.c.bf16 %v4970, %v4969
  %v5009 = vpack.c.bf16 %v4972, %v4971
  %v5010 = vpack.c.bf16 %v4974, %v4973
  %v5011 = vpack.c.bf16 %v4976, %v4975
  %v5012 = vpack.c.bf16 %v4978, %v4977
  %v5013 = vpack.c.bf16 %v4980, %v4979
  %v5014 = vpack.c.bf16 %v4982, %v4981
  %v5015 = vld [vmem:[%s3] sm:$0xf]
  %v5016 = vld [vmem:[%s3 + $0x4] sm:$0xf]
  %v5017 = vld [vmem:[%s3 + $0x8] sm:$0xf]
  %v5018 = vld [vmem:[%s3 + $0xc] sm:$0xf]
  %v5019 = vld [vmem:[%s3 + $0x10] sm:$0xf]
  %v5020 = vld [vmem:[%s3 + $0x14] sm:$0xf]
  %v5021 = vld [vmem:[%s3 + $0x18] sm:$0xf]
  %v5022 = vld [vmem:[%s3 + $0x1c] sm:$0xf]
  %v5023 = vld [vmem:[%s3 + $0x20] sm:$0xf]
  %v5024 = vld [vmem:[%s3 + $0x24] sm:$0xf]
  %v5025 = vld [vmem:[%s3 + $0x28] sm:$0xf]
  %v5026 = vld [vmem:[%s3 + $0x2c] sm:$0xf]
  %v5027 = vld [vmem:[%s3 + $0x30] sm:$0xf]
  %v5028 = vld [vmem:[%s3 + $0x34] sm:$0xf]
  %v5029 = vld [vmem:[%s3 + $0x38] sm:$0xf]
  %v5030 = vld [vmem:[%s3 + $0x3c] sm:$0xf]
  %v5047 = vunpack.c.l.b16 %v5015
  %v5048 = vunpack.c.l.b16 %v5016
  %v5049 = vunpack.c.l.b16 %v5017
  %v5050 = vunpack.c.l.b16 %v5018
  %v5051 = vunpack.c.l.b16 %v5019
  %v5052 = vunpack.c.l.b16 %v5020
  %v5053 = vunpack.c.l.b16 %v5021
  %v5054 = vunpack.c.l.b16 %v5022
  %v5055 = vunpack.c.l.b16 %v5023
  %v5056 = vunpack.c.l.b16 %v5024
  %v5057 = vunpack.c.l.b16 %v5025
  %v5058 = vunpack.c.l.b16 %v5026
  %v5059 = vunpack.c.l.b16 %v5027
  %v5060 = vunpack.c.l.b16 %v5028
  %v5061 = vunpack.c.l.b16 %v5029
  %v5062 = vunpack.c.l.b16 %v5030
  %v5063 = vpack.c.b16 %v5048, %v5047
  %v5064 = vpack.c.b16 %v5050, %v5049
  %v5065 = vpack.c.b16 %v5052, %v5051
  %v5066 = vpack.c.b16 %v5054, %v5053
  %v5067 = vpack.c.b16 %v5056, %v5055
  %v5068 = vpack.c.b16 %v5058, %v5057
  %v5069 = vpack.c.b16 %v5060, %v5059
  %v5070 = vpack.c.b16 %v5062, %v5061
  %5079 = vmatpush.bf16.msra.mxu0 %v5070
  %5080 = vmatpush.bf16.msra.mxu0 %v5069
  %5081 = vmatpush.bf16.msra.mxu0 %v5068
  %5082 = vmatpush.bf16.msra.mxu0 %v5067
  %5083 = vmatpush.bf16.msra.mxu0 %v5066
  %5084 = vmatpush.bf16.msra.mxu0 %v5065
  %5085 = vmatpush.bf16.msra.mxu0 %v5064
  %5086 = vmatpush.bf16.msra.mxu0 %v5063
  %5087 = vmatmul.bf16.gmra.mxu0 %v4983
  %v5088 = vpop.f32.mrf.mxu0
  %v5089 = vadd.f32 0.0, %v5088
  %v5090 = vpop.f32.mrf.mxu0
  %v5091 = vadd.f32 0.0, %v5090
  %5092 = vmatmul.bf16.gmra.mxu0 %v4984
  %v5093 = vpop.f32.mrf.mxu0
  %v5094 = vadd.f32 0.0, %v5093
  %v5095 = vpop.f32.mrf.mxu0
  %v5096 = vadd.f32 0.0, %v5095
  %5097 = vmatmul.bf16.gmra.mxu0 %v4985
  %v5098 = vpop.f32.mrf.mxu0
  %v5099 = vadd.f32 0.0, %v5098
  %v5100 = vpop.f32.mrf.mxu0
  %v5101 = vadd.f32 0.0, %v5100
  %5102 = vmatmul.bf16.gmra.mxu0 %v4986
  %v5103 = vpop.f32.mrf.mxu0
  %v5104 = vadd.f32 0.0, %v5103
  %v5105 = vpop.f32.mrf.mxu0
  %v5106 = vadd.f32 0.0, %v5105
  %5107 = vmatmul.bf16.gmra.mxu0 %v4987
  %v5108 = vpop.f32.mrf.mxu0
  %v5109 = vadd.f32 0.0, %v5108
  %v5110 = vpop.f32.mrf.mxu0
  %v5111 = vadd.f32 0.0, %v5110
  %5112 = vmatmul.bf16.gmra.mxu0 %v4988
  %v5113 = vpop.f32.mrf.mxu0
  %v5114 = vadd.f32 0.0, %v5113
  %v5115 = vpop.f32.mrf.mxu0
  %v5116 = vadd.f32 0.0, %v5115
  %5117 = vmatmul.bf16.gmra.mxu0 %v4989
  %v5118 = vpop.f32.mrf.mxu0
  %v5119 = vadd.f32 0.0, %v5118
  %v5120 = vpop.f32.mrf.mxu0
  %v5121 = vadd.f32 0.0, %v5120
  %5122 = vmatmul.bf16.gmra.mxu0 %v4990
  %v5123 = vpop.f32.mrf.mxu0
  %v5124 = vadd.f32 0.0, %v5123
  %v5125 = vpop.f32.mrf.mxu0
  %v5126 = vadd.f32 0.0, %v5125
  %5127 = vmatmul.bf16.gmra.mxu0 %v4991
  %v5128 = vpop.f32.mrf.mxu0
  %v5129 = vadd.f32 0.0, %v5128
  %v5130 = vpop.f32.mrf.mxu0
  %v5131 = vadd.f32 0.0, %v5130
  %5132 = vmatmul.bf16.gmra.mxu0 %v4992
  %v5133 = vpop.f32.mrf.mxu0
  %v5134 = vadd.f32 0.0, %v5133
  %v5135 = vpop.f32.mrf.mxu0
  %v5136 = vadd.f32 0.0, %v5135
  %5137 = vmatmul.bf16.gmra.mxu0 %v4993
  %v5138 = vpop.f32.mrf.mxu0
  %v5139 = vadd.f32 0.0, %v5138
  %v5140 = vpop.f32.mrf.mxu0
  %v5141 = vadd.f32 0.0, %v5140
  %5142 = vmatmul.bf16.gmra.mxu0 %v4994
  %v5143 = vpop.f32.mrf.mxu0
  %v5144 = vadd.f32 0.0, %v5143
  %v5145 = vpop.f32.mrf.mxu0
  %v5146 = vadd.f32 0.0, %v5145
  %5147 = vmatmul.bf16.gmra.mxu0 %v4995
  %v5148 = vpop.f32.mrf.mxu0
  %v5149 = vadd.f32 0.0, %v5148
  %v5150 = vpop.f32.mrf.mxu0
  %v5151 = vadd.f32 0.0, %v5150
  %5152 = vmatmul.bf16.gmra.mxu0 %v4996
  %v5153 = vpop.f32.mrf.mxu0
  %v5154 = vadd.f32 0.0, %v5153
  %v5155 = vpop.f32.mrf.mxu0
  %v5156 = vadd.f32 0.0, %v5155
  %5157 = vmatmul.bf16.gmra.mxu0 %v4997
  %v5158 = vpop.f32.mrf.mxu0
  %v5159 = vadd.f32 0.0, %v5158
  %v5160 = vpop.f32.mrf.mxu0
  %v5161 = vadd.f32 0.0, %v5160
  %5162 = vmatmul.bf16.gmra.mxu0 %v4998
  %v5163 = vpop.f32.mrf.mxu0
  %v5164 = vadd.f32 0.0, %v5163
  %v5165 = vpop.f32.mrf.mxu0
  %v5166 = vadd.f32 0.0, %v5165
  %5167 = vmatmul.bf16.gmra.mxu0 %v4999
  %v5168 = vpop.f32.mrf.mxu0
  %v5169 = vadd.f32 0.0, %v5168
  %v5170 = vpop.f32.mrf.mxu0
  %v5171 = vadd.f32 0.0, %v5170
  %5172 = vmatmul.bf16.gmra.mxu0 %v5000
  %v5173 = vpop.f32.mrf.mxu0
  %v5174 = vadd.f32 0.0, %v5173
  %v5175 = vpop.f32.mrf.mxu0
  %v5176 = vadd.f32 0.0, %v5175
  %5177 = vmatmul.bf16.gmra.mxu0 %v5001
  %v5178 = vpop.f32.mrf.mxu0
  %v5179 = vadd.f32 0.0, %v5178
  %v5180 = vpop.f32.mrf.mxu0
  %v5181 = vadd.f32 0.0, %v5180
  %5182 = vmatmul.bf16.gmra.mxu0 %v5002
  %v5183 = vpop.f32.mrf.mxu0
  %v5184 = vadd.f32 0.0, %v5183
  %v5185 = vpop.f32.mrf.mxu0
  %v5186 = vadd.f32 0.0, %v5185
  %5187 = vmatmul.bf16.gmra.mxu0 %v5003
  %v5188 = vpop.f32.mrf.mxu0
  %v5189 = vadd.f32 0.0, %v5188
  %v5190 = vpop.f32.mrf.mxu0
  %v5191 = vadd.f32 0.0, %v5190
  %5192 = vmatmul.bf16.gmra.mxu0 %v5004
  %v5193 = vpop.f32.mrf.mxu0
  %v5194 = vadd.f32 0.0, %v5193
  %v5195 = vpop.f32.mrf.mxu0
  %v5196 = vadd.f32 0.0, %v5195
  %5197 = vmatmul.bf16.gmra.mxu0 %v5005
  %v5198 = vpop.f32.mrf.mxu0
  %v5199 = vadd.f32 0.0, %v5198
  %v5200 = vpop.f32.mrf.mxu0
  %v5201 = vadd.f32 0.0, %v5200
  %5202 = vmatmul.bf16.gmra.mxu0 %v5006
  %v5203 = vpop.f32.mrf.mxu0
  %v5204 = vadd.f32 0.0, %v5203
  %v5205 = vpop.f32.mrf.mxu0
  %v5206 = vadd.f32 0.0, %v5205
  %5207 = vmatmul.bf16.gmra.mxu0 %v5007
  %v5208 = vpop.f32.mrf.mxu0
  %v5209 = vadd.f32 0.0, %v5208
  %v5210 = vpop.f32.mrf.mxu0
  %v5211 = vadd.f32 0.0, %v5210
  %5212 = vmatmul.bf16.gmra.mxu0 %v5008
  %v5213 = vpop.f32.mrf.mxu0
  %v5214 = vadd.f32 0.0, %v5213
  %v5215 = vpop.f32.mrf.mxu0
  %v5216 = vadd.f32 0.0, %v5215
  %5217 = vmatmul.bf16.gmra.mxu0 %v5009
  %v5218 = vpop.f32.mrf.mxu0
  %v5219 = vadd.f32 0.0, %v5218
  %v5220 = vpop.f32.mrf.mxu0
  %v5221 = vadd.f32 0.0, %v5220
  %5222 = vmatmul.bf16.gmra.mxu0 %v5010
  %v5223 = vpop.f32.mrf.mxu0
  %v5224 = vadd.f32 0.0, %v5223
  %v5225 = vpop.f32.mrf.mxu0
  %v5226 = vadd.f32 0.0, %v5225
  %5227 = vmatmul.bf16.gmra.mxu0 %v5011
  %v5228 = vpop.f32.mrf.mxu0
  %v5229 = vadd.f32 0.0, %v5228
  %v5230 = vpop.f32.mrf.mxu0
  %v5231 = vadd.f32 0.0, %v5230
  %5232 = vmatmul.bf16.gmra.mxu0 %v5012
  %v5233 = vpop.f32.mrf.mxu0
  %v5234 = vadd.f32 0.0, %v5233
  %v5235 = vpop.f32.mrf.mxu0
  %v5236 = vadd.f32 0.0, %v5235
  %5237 = vmatmul.bf16.gmra.mxu0 %v5013
  %v5238 = vpop.f32.mrf.mxu0
  %v5239 = vadd.f32 0.0, %v5238
  %v5240 = vpop.f32.mrf.mxu0
  %v5241 = vadd.f32 0.0, %v5240
  %5242 = vmatmul.bf16.gmra.mxu0 %v5014
  %v5243 = vpop.f32.mrf.mxu0
  %v5244 = vadd.f32 0.0, %v5243
  %v5245 = vpop.f32.mrf.mxu0
  %v5246 = vadd.f32 0.0, %v5245
  %5247 = vdwg.mxu0
  %v5248 = vld [vmem:[%s8] sm:$0x1]
  %v5249 = vld [vmem:[%s9] sm:$0x1]
  %v5250 = vadd.f32 %v5089, %v5091
  %v5251 = vadd.f32 %v5250, %v5094
  %v5252 = vadd.f32 %v5251, %v5096
  %v5253 = vadd.f32 %v5252, %v5099
  %v5254 = vadd.f32 %v5253, %v5101
  %v5255 = vadd.f32 %v5254, %v5104
  %v5256 = vadd.f32 %v5255, %v5106
  %v5257 = vadd.f32 %v5256, %v5109
  %v5258 = vadd.f32 %v5257, %v5111
  %v5259 = vadd.f32 %v5258, %v5114
  %v5260 = vadd.f32 %v5259, %v5116
  %v5261 = vadd.f32 %v5260, %v5119
  %v5262 = vadd.f32 %v5261, %v5121
  %v5263 = vadd.f32 %v5262, %v5124
  %v5264 = vadd.f32 %v5263, %v5126
  %v5265 = vadd.f32 %v5264, %v5129
  %v5266 = vadd.f32 %v5265, %v5131
  %v5267 = vadd.f32 %v5266, %v5134
  %v5268 = vadd.f32 %v5267, %v5136
  %v5269 = vadd.f32 %v5268, %v5139
  %v5270 = vadd.f32 %v5269, %v5141
  %v5271 = vadd.f32 %v5270, %v5144
  %v5272 = vadd.f32 %v5271, %v5146
  %v5273 = vadd.f32 %v5272, %v5149
  %v5274 = vadd.f32 %v5273, %v5151
  %v5275 = vadd.f32 %v5274, %v5154
  %v5276 = vadd.f32 %v5275, %v5156
  %v5277 = vadd.f32 %v5276, %v5159
  %v5278 = vadd.f32 %v5277, %v5161
  %v5279 = vadd.f32 %v5278, %v5164
  %v5280 = vadd.f32 %v5279, %v5166
  %v5281 = vadd.f32 %v5280, %v5169
  %v5282 = vadd.f32 %v5281, %v5171
  %v5283 = vadd.f32 %v5282, %v5174
  %v5284 = vadd.f32 %v5283, %v5176
  %v5285 = vadd.f32 %v5284, %v5179
  %v5286 = vadd.f32 %v5285, %v5181
  %v5287 = vadd.f32 %v5286, %v5184
  %v5288 = vadd.f32 %v5287, %v5186
  %v5289 = vadd.f32 %v5288, %v5189
  %v5290 = vadd.f32 %v5289, %v5191
  %v5291 = vadd.f32 %v5290, %v5194
  %v5292 = vadd.f32 %v5291, %v5196
  %v5293 = vadd.f32 %v5292, %v5199
  %v5294 = vadd.f32 %v5293, %v5201
  %v5295 = vadd.f32 %v5294, %v5204
  %v5296 = vadd.f32 %v5295, %v5206
  %v5297 = vadd.f32 %v5296, %v5209
  %v5298 = vadd.f32 %v5297, %v5211
  %v5299 = vadd.f32 %v5298, %v5214
  %v5300 = vadd.f32 %v5299, %v5216
  %v5301 = vadd.f32 %v5300, %v5219
  %v5302 = vadd.f32 %v5301, %v5221
  %v5303 = vadd.f32 %v5302, %v5224
  %v5304 = vadd.f32 %v5303, %v5226
  %v5305 = vadd.f32 %v5304, %v5229
  %v5306 = vadd.f32 %v5305, %v5231
  %v5307 = vadd.f32 %v5306, %v5234
  %v5308 = vadd.f32 %v5307, %v5236
  %v5309 = vadd.f32 %v5308, %v5239
  %v5310 = vadd.f32 %v5309, %v5241
  %v5311 = vadd.f32 %v5310, %v5244
  %v5312 = vadd.f32 %v5311, %v5246
  %v5313 = vrot.slane %v5312, 4
  %v5314 = vadd.f32 %v5312, %v5313
  %v5315 = vrot.slane %v5314, 2
  %v5316 = vadd.f32 %v5314, %v5315
  %v5317 = vrot.slane %v5316, 1
  %v5318 = vadd.f32 %v5316, %v5317
  %v5319 = vmul.f32 %v5318, 0.001953125
  %v5320 = vsub.f32 %v5089, %v5319
  %v5321 = vsub.f32 %v5091, %v5319
  %v5322 = vsub.f32 %v5094, %v5319
  %v5323 = vsub.f32 %v5096, %v5319
  %v5324 = vsub.f32 %v5099, %v5319
  %v5325 = vsub.f32 %v5101, %v5319
  %v5326 = vsub.f32 %v5104, %v5319
  %v5327 = vsub.f32 %v5106, %v5319
  %v5328 = vsub.f32 %v5109, %v5319
  %v5329 = vsub.f32 %v5111, %v5319
  %v5330 = vsub.f32 %v5114, %v5319
  %v5331 = vsub.f32 %v5116, %v5319
  %v5332 = vsub.f32 %v5119, %v5319
  %v5333 = vsub.f32 %v5121, %v5319
  %v5334 = vsub.f32 %v5124, %v5319
  %v5335 = vsub.f32 %v5126, %v5319
  %v5336 = vsub.f32 %v5129, %v5319
  %v5337 = vsub.f32 %v5131, %v5319
  %v5338 = vsub.f32 %v5134, %v5319
  %v5339 = vsub.f32 %v5136, %v5319
  %v5340 = vsub.f32 %v5139, %v5319
  %v5341 = vsub.f32 %v5141, %v5319
  %v5342 = vsub.f32 %v5144, %v5319
  %v5343 = vsub.f32 %v5146, %v5319
  %v5344 = vsub.f32 %v5149, %v5319
  %v5345 = vsub.f32 %v5151, %v5319
  %v5346 = vsub.f32 %v5154, %v5319
  %v5347 = vsub.f32 %v5156, %v5319
  %v5348 = vsub.f32 %v5159, %v5319
  %v5349 = vsub.f32 %v5161, %v5319
  %v5350 = vsub.f32 %v5164, %v5319
  %v5351 = vsub.f32 %v5166, %v5319
  %v5352 = vsub.f32 %v5169, %v5319
  %v5353 = vsub.f32 %v5171, %v5319
  %v5354 = vsub.f32 %v5174, %v5319
  %v5355 = vsub.f32 %v5176, %v5319
  %v5356 = vsub.f32 %v5179, %v5319
  %v5357 = vsub.f32 %v5181, %v5319
  %v5358 = vsub.f32 %v5184, %v5319
  %v5359 = vsub.f32 %v5186, %v5319
  %v5360 = vsub.f32 %v5189, %v5319
  %v5361 = vsub.f32 %v5191, %v5319
  %v5362 = vsub.f32 %v5194, %v5319
  %v5363 = vsub.f32 %v5196, %v5319
  %v5364 = vsub.f32 %v5199, %v5319
  %v5365 = vsub.f32 %v5201, %v5319
  %v5366 = vsub.f32 %v5204, %v5319
  %v5367 = vsub.f32 %v5206, %v5319
  %v5368 = vsub.f32 %v5209, %v5319
  %v5369 = vsub.f32 %v5211, %v5319
  %v5370 = vsub.f32 %v5214, %v5319
  %v5371 = vsub.f32 %v5216, %v5319
  %v5372 = vsub.f32 %v5219, %v5319
  %v5373 = vsub.f32 %v5221, %v5319
  %v5374 = vsub.f32 %v5224, %v5319
  %v5375 = vsub.f32 %v5226, %v5319
  %v5376 = vsub.f32 %v5229, %v5319
  %v5377 = vsub.f32 %v5231, %v5319
  %v5378 = vsub.f32 %v5234, %v5319
  %v5379 = vsub.f32 %v5236, %v5319
  %v5380 = vsub.f32 %v5239, %v5319
  %v5381 = vsub.f32 %v5241, %v5319
  %v5382 = vsub.f32 %v5244, %v5319
  %v5383 = vsub.f32 %v5246, %v5319
  %v5384 = vmul.f32 %v5320, %v5320
  %v5385 = vmul.f32 %v5321, %v5321
  %v5386 = vmul.f32 %v5322, %v5322
  %v5387 = vmul.f32 %v5323, %v5323
  %v5388 = vmul.f32 %v5324, %v5324
  %v5389 = vmul.f32 %v5325, %v5325
  %v5390 = vmul.f32 %v5326, %v5326
  %v5391 = vmul.f32 %v5327, %v5327
  %v5392 = vmul.f32 %v5328, %v5328
  %v5393 = vmul.f32 %v5329, %v5329
  %v5394 = vmul.f32 %v5330, %v5330
  %v5395 = vmul.f32 %v5331, %v5331
  %v5396 = vmul.f32 %v5332, %v5332
  %v5397 = vmul.f32 %v5333, %v5333
  %v5398 = vmul.f32 %v5334, %v5334
  %v5399 = vmul.f32 %v5335, %v5335
  %v5400 = vmul.f32 %v5336, %v5336
  %v5401 = vmul.f32 %v5337, %v5337
  %v5402 = vmul.f32 %v5338, %v5338
  %v5403 = vmul.f32 %v5339, %v5339
  %v5404 = vmul.f32 %v5340, %v5340
  %v5405 = vmul.f32 %v5341, %v5341
  %v5406 = vmul.f32 %v5342, %v5342
  %v5407 = vmul.f32 %v5343, %v5343
  %v5408 = vmul.f32 %v5344, %v5344
  %v5409 = vmul.f32 %v5345, %v5345
  %v5410 = vmul.f32 %v5346, %v5346
  %v5411 = vmul.f32 %v5347, %v5347
  %v5412 = vmul.f32 %v5348, %v5348
  %v5413 = vmul.f32 %v5349, %v5349
  %v5414 = vmul.f32 %v5350, %v5350
  %v5415 = vmul.f32 %v5351, %v5351
  %v5416 = vmul.f32 %v5352, %v5352
  %v5417 = vmul.f32 %v5353, %v5353
  %v5418 = vmul.f32 %v5354, %v5354
  %v5419 = vmul.f32 %v5355, %v5355
  %v5420 = vmul.f32 %v5356, %v5356
  %v5421 = vmul.f32 %v5357, %v5357
  %v5422 = vmul.f32 %v5358, %v5358
  %v5423 = vmul.f32 %v5359, %v5359
  %v5424 = vmul.f32 %v5360, %v5360
  %v5425 = vmul.f32 %v5361, %v5361
  %v5426 = vmul.f32 %v5362, %v5362
  %v5427 = vmul.f32 %v5363, %v5363
  %v5428 = vmul.f32 %v5364, %v5364
  %v5429 = vmul.f32 %v5365, %v5365
  %v5430 = vmul.f32 %v5366, %v5366
  %v5431 = vmul.f32 %v5367, %v5367
  %v5432 = vmul.f32 %v5368, %v5368
  %v5433 = vmul.f32 %v5369, %v5369
  %v5434 = vmul.f32 %v5370, %v5370
  %v5435 = vmul.f32 %v5371, %v5371
  %v5436 = vmul.f32 %v5372, %v5372
  %v5437 = vmul.f32 %v5373, %v5373
  %v5438 = vmul.f32 %v5374, %v5374
  %v5439 = vmul.f32 %v5375, %v5375
  %v5440 = vmul.f32 %v5376, %v5376
  %v5441 = vmul.f32 %v5377, %v5377
  %v5442 = vmul.f32 %v5378, %v5378
  %v5443 = vmul.f32 %v5379, %v5379
  %v5444 = vmul.f32 %v5380, %v5380
  %v5445 = vmul.f32 %v5381, %v5381
  %v5446 = vmul.f32 %v5382, %v5382
  %v5447 = vmul.f32 %v5383, %v5383
  %v5448 = vadd.f32 %v5384, %v5385
  %v5449 = vadd.f32 %v5448, %v5386
  %v5450 = vadd.f32 %v5449, %v5387
  %v5451 = vadd.f32 %v5450, %v5388
  %v5452 = vadd.f32 %v5451, %v5389
  %v5453 = vadd.f32 %v5452, %v5390
  %v5454 = vadd.f32 %v5453, %v5391
  %v5455 = vadd.f32 %v5454, %v5392
  %v5456 = vadd.f32 %v5455, %v5393
  %v5457 = vadd.f32 %v5456, %v5394
  %v5458 = vadd.f32 %v5457, %v5395
  %v5459 = vadd.f32 %v5458, %v5396
  %v5460 = vadd.f32 %v5459, %v5397
  %v5461 = vadd.f32 %v5460, %v5398
  %v5462 = vadd.f32 %v5461, %v5399
  %v5463 = vadd.f32 %v5462, %v5400
  %v5464 = vadd.f32 %v5463, %v5401
  %v5465 = vadd.f32 %v5464, %v5402
  %v5466 = vadd.f32 %v5465, %v5403
  %v5467 = vadd.f32 %v5466, %v5404
  %v5468 = vadd.f32 %v5467, %v5405
  %v5469 = vadd.f32 %v5468, %v5406
  %v5470 = vadd.f32 %v5469, %v5407
  %v5471 = vadd.f32 %v5470, %v5408
  %v5472 = vadd.f32 %v5471, %v5409
  %v5473 = vadd.f32 %v5472, %v5410
  %v5474 = vadd.f32 %v5473, %v5411
  %v5475 = vadd.f32 %v5474, %v5412
  %v5476 = vadd.f32 %v5475, %v5413
  %v5477 = vadd.f32 %v5476, %v5414
  %v5478 = vadd.f32 %v5477, %v5415
  %v5479 = vadd.f32 %v5478, %v5416
  %v5480 = vadd.f32 %v5479, %v5417
  %v5481 = vadd.f32 %v5480, %v5418
  %v5482 = vadd.f32 %v5481, %v5419
  %v5483 = vadd.f32 %v5482, %v5420
  %v5484 = vadd.f32 %v5483, %v5421
  %v5485 = vadd.f32 %v5484, %v5422
  %v5486 = vadd.f32 %v5485, %v5423
  %v5487 = vadd.f32 %v5486, %v5424
  %v5488 = vadd.f32 %v5487, %v5425
  %v5489 = vadd.f32 %v5488, %v5426
  %v5490 = vadd.f32 %v5489, %v5427
  %v5491 = vadd.f32 %v5490, %v5428
  %v5492 = vadd.f32 %v5491, %v5429
  %v5493 = vadd.f32 %v5492, %v5430
  %v5494 = vadd.f32 %v5493, %v5431
  %v5495 = vadd.f32 %v5494, %v5432
  %v5496 = vadd.f32 %v5495, %v5433
  %v5497 = vadd.f32 %v5496, %v5434
  %v5498 = vadd.f32 %v5497, %v5435
  %v5499 = vadd.f32 %v5498, %v5436
  %v5500 = vadd.f32 %v5499, %v5437
  %v5501 = vadd.f32 %v5500, %v5438
  %v5502 = vadd.f32 %v5501, %v5439
  %v5503 = vadd.f32 %v5502, %v5440
  %v5504 = vadd.f32 %v5503, %v5441
  %v5505 = vadd.f32 %v5504, %v5442
  %v5506 = vadd.f32 %v5505, %v5443
  %v5507 = vadd.f32 %v5506, %v5444
  %v5508 = vadd.f32 %v5507, %v5445
  %v5509 = vadd.f32 %v5508, %v5446
  %v5510 = vadd.f32 %v5509, %v5447
  %v5511 = vrot.slane %v5510, 4
  %v5512 = vadd.f32 %v5510, %v5511
  %v5513 = vrot.slane %v5512, 2
  %v5514 = vadd.f32 %v5512, %v5513
  %v5515 = vrot.slane %v5514, 1
  %v5516 = vadd.f32 %v5514, %v5515
  %v5517 = vmul.f32 %v5516, 0.001953125
  %v5518 = vadd.f32 %v5517, 1e-05
  %v5519 = vrsqrt.pop %v5518
  %v5520 = vmul.f32 %v5519, %v5518
  %v5521 = vmul.f32 %v5520, %v5519
  %v5522 = vmul.f32 0.5, %v5521
  %v5523 = vsub.f32 1.5, %v5522
  %v5524 = vmul.f32 %v5519, %v5523
  %vm5525 = vweird.f32 %v5518
  %vm5526 = vweird.f32 %v5519
  %vm5527 = vmor %vm5525, %vm5526
  %v5528 = vsel %vm5527, %v5519, %v5524
  %v5529 = vmul.f32 %v5320, %v5528
  %v5530 = vmul.f32 %v5321, %v5528
  %v5531 = vmul.f32 %v5322, %v5528
  %v5532 = vmul.f32 %v5323, %v5528
  %v5533 = vmul.f32 %v5324, %v5528
  %v5534 = vmul.f32 %v5325, %v5528
  %v5535 = vmul.f32 %v5326, %v5528
  %v5536 = vmul.f32 %v5327, %v5528
  %v5537 = vmul.f32 %v5328, %v5528
  %v5538 = vmul.f32 %v5329, %v5528
  %v5539 = vmul.f32 %v5330, %v5528
  %v5540 = vmul.f32 %v5331, %v5528
  %v5541 = vmul.f32 %v5332, %v5528
  %v5542 = vmul.f32 %v5333, %v5528
  %v5543 = vmul.f32 %v5334, %v5528
  %v5544 = vmul.f32 %v5335, %v5528
  %v5545 = vmul.f32 %v5336, %v5528
  %v5546 = vmul.f32 %v5337, %v5528
  %v5547 = vmul.f32 %v5338, %v5528
  %v5548 = vmul.f32 %v5339, %v5528
  %v5549 = vmul.f32 %v5340, %v5528
  %v5550 = vmul.f32 %v5341, %v5528
  %v5551 = vmul.f32 %v5342, %v5528
  %v5552 = vmul.f32 %v5343, %v5528
  %v5553 = vmul.f32 %v5344, %v5528
  %v5554 = vmul.f32 %v5345, %v5528
  %v5555 = vmul.f32 %v5346, %v5528
  %v5556 = vmul.f32 %v5347, %v5528
  %v5557 = vmul.f32 %v5348, %v5528
  %v5558 = vmul.f32 %v5349, %v5528
  %v5559 = vmul.f32 %v5350, %v5528
  %v5560 = vmul.f32 %v5351, %v5528
  %v5561 = vmul.f32 %v5352, %v5528
  %v5562 = vmul.f32 %v5353, %v5528
  %v5563 = vmul.f32 %v5354, %v5528
  %v5564 = vmul.f32 %v5355, %v5528
  %v5565 = vmul.f32 %v5356, %v5528
  %v5566 = vmul.f32 %v5357, %v5528
  %v5567 = vmul.f32 %v5358, %v5528
  %v5568 = vmul.f32 %v5359, %v5528
  %v5569 = vmul.f32 %v5360, %v5528
  %v5570 = vmul.f32 %v5361, %v5528
  %v5571 = vmul.f32 %v5362, %v5528
  %v5572 = vmul.f32 %v5363, %v5528
  %v5573 = vmul.f32 %v5364, %v5528
  %v5574 = vmul.f32 %v5365, %v5528
  %v5575 = vmul.f32 %v5366, %v5528
  %v5576 = vmul.f32 %v5367, %v5528
  %v5577 = vmul.f32 %v5368, %v5528
  %v5578 = vmul.f32 %v5369, %v5528
  %v5579 = vmul.f32 %v5370, %v5528
  %v5580 = vmul.f32 %v5371, %v5528
  %v5581 = vmul.f32 %v5372, %v5528
  %v5582 = vmul.f32 %v5373, %v5528
  %v5583 = vmul.f32 %v5374, %v5528
  %v5584 = vmul.f32 %v5375, %v5528
  %v5585 = vmul.f32 %v5376, %v5528
  %v5586 = vmul.f32 %v5377, %v5528
  %v5587 = vmul.f32 %v5378, %v5528
  %v5588 = vmul.f32 %v5379, %v5528
  %v5589 = vmul.f32 %v5380, %v5528
  %v5590 = vmul.f32 %v5381, %v5528
  %v5591 = vmul.f32 %v5382, %v5528
  %v5592 = vmul.f32 %v5383, %v5528
  %v5594 = vperm.slane %v5248, 0
  %v5596 = vmul.f32 %v5529, %v5594
  %v5597 = vmul.f32 %v5530, %v5594
  %v5598 = vmul.f32 %v5531, %v5594
  %v5599 = vmul.f32 %v5532, %v5594
  %v5600 = vmul.f32 %v5533, %v5594
  %v5601 = vmul.f32 %v5534, %v5594
  %v5602 = vmul.f32 %v5535, %v5594
  %v5603 = vmul.f32 %v5536, %v5594
  %v5604 = vmul.f32 %v5537, %v5594
  %v5605 = vmul.f32 %v5538, %v5594
  %v5606 = vmul.f32 %v5539, %v5594
  %v5607 = vmul.f32 %v5540, %v5594
  %v5608 = vmul.f32 %v5541, %v5594
  %v5609 = vmul.f32 %v5542, %v5594
  %v5610 = vmul.f32 %v5543, %v5594
  %v5611 = vmul.f32 %v5544, %v5594
  %v5612 = vmul.f32 %v5545, %v5594
  %v5613 = vmul.f32 %v5546, %v5594
  %v5614 = vmul.f32 %v5547, %v5594
  %v5615 = vmul.f32 %v5548, %v5594
  %v5616 = vmul.f32 %v5549, %v5594
  %v5617 = vmul.f32 %v5550, %v5594
  %v5618 = vmul.f32 %v5551, %v5594
  %v5619 = vmul.f32 %v5552, %v5594
  %v5620 = vmul.f32 %v5553, %v5594
  %v5621 = vmul.f32 %v5554, %v5594
  %v5622 = vmul.f32 %v5555, %v5594
  %v5623 = vmul.f32 %v5556, %v5594
  %v5624 = vmul.f32 %v5557, %v5594
  %v5625 = vmul.f32 %v5558, %v5594
  %v5626 = vmul.f32 %v5559, %v5594
  %v5627 = vmul.f32 %v5560, %v5594
  %v5628 = vmul.f32 %v5561, %v5594
  %v5629 = vmul.f32 %v5562, %v5594
  %v5630 = vmul.f32 %v5563, %v5594
  %v5631 = vmul.f32 %v5564, %v5594
  %v5632 = vmul.f32 %v5565, %v5594
  %v5633 = vmul.f32 %v5566, %v5594
  %v5634 = vmul.f32 %v5567, %v5594
  %v5635 = vmul.f32 %v5568, %v5594
  %v5636 = vmul.f32 %v5569, %v5594
  %v5637 = vmul.f32 %v5570, %v5594
  %v5638 = vmul.f32 %v5571, %v5594
  %v5639 = vmul.f32 %v5572, %v5594
  %v5640 = vmul.f32 %v5573, %v5594
  %v5641 = vmul.f32 %v5574, %v5594
  %v5642 = vmul.f32 %v5575, %v5594
  %v5643 = vmul.f32 %v5576, %v5594
  %v5644 = vmul.f32 %v5577, %v5594
  %v5645 = vmul.f32 %v5578, %v5594
  %v5646 = vmul.f32 %v5579, %v5594
  %v5647 = vmul.f32 %v5580, %v5594
  %v5648 = vmul.f32 %v5581, %v5594
  %v5649 = vmul.f32 %v5582, %v5594
  %v5650 = vmul.f32 %v5583, %v5594
  %v5651 = vmul.f32 %v5584, %v5594
  %v5652 = vmul.f32 %v5585, %v5594
  %v5653 = vmul.f32 %v5586, %v5594
  %v5654 = vmul.f32 %v5587, %v5594
  %v5655 = vmul.f32 %v5588, %v5594
  %v5656 = vmul.f32 %v5589, %v5594
  %v5657 = vmul.f32 %v5590, %v5594
  %v5658 = vmul.f32 %v5591, %v5594
  %v5659 = vmul.f32 %v5592, %v5594
  %v5661 = vperm.slane %v5249, 0
  %v5663 = vadd.f32 %v5596, %v5661
  %v5664 = vadd.f32 %v5597, %v5661
  %v5665 = vadd.f32 %v5598, %v5661
  %v5666 = vadd.f32 %v5599, %v5661
  %v5667 = vadd.f32 %v5600, %v5661
  %v5668 = vadd.f32 %v5601, %v5661
  %v5669 = vadd.f32 %v5602, %v5661
  %v5670 = vadd.f32 %v5603, %v5661
  %v5671 = vadd.f32 %v5604, %v5661
  %v5672 = vadd.f32 %v5605, %v5661
  %v5673 = vadd.f32 %v5606, %v5661
  %v5674 = vadd.f32 %v5607, %v5661
  %v5675 = vadd.f32 %v5608, %v5661
  %v5676 = vadd.f32 %v5609, %v5661
  %v5677 = vadd.f32 %v5610, %v5661
  %v5678 = vadd.f32 %v5611, %v5661
  %v5679 = vadd.f32 %v5612, %v5661
  %v5680 = vadd.f32 %v5613, %v5661
  %v5681 = vadd.f32 %v5614, %v5661
  %v5682 = vadd.f32 %v5615, %v5661
  %v5683 = vadd.f32 %v5616, %v5661
  %v5684 = vadd.f32 %v5617, %v5661
  %v5685 = vadd.f32 %v5618, %v5661
  %v5686 = vadd.f32 %v5619, %v5661
  %v5687 = vadd.f32 %v5620, %v5661
  %v5688 = vadd.f32 %v5621, %v5661
  %v5689 = vadd.f32 %v5622, %v5661
  %v5690 = vadd.f32 %v5623, %v5661
  %v5691 = vadd.f32 %v5624, %v5661
  %v5692 = vadd.f32 %v5625, %v5661
  %v5693 = vadd.f32 %v5626, %v5661
  %v5694 = vadd.f32 %v5627, %v5661
  %v5695 = vadd.f32 %v5628, %v5661
  %v5696 = vadd.f32 %v5629, %v5661
  %v5697 = vadd.f32 %v5630, %v5661
  %v5698 = vadd.f32 %v5631, %v5661
  %v5699 = vadd.f32 %v5632, %v5661
  %v5700 = vadd.f32 %v5633, %v5661
  %v5701 = vadd.f32 %v5634, %v5661
  %v5702 = vadd.f32 %v5635, %v5661
  %v5703 = vadd.f32 %v5636, %v5661
  %v5704 = vadd.f32 %v5637, %v5661
  %v5705 = vadd.f32 %v5638, %v5661
  %v5706 = vadd.f32 %v5639, %v5661
  %v5707 = vadd.f32 %v5640, %v5661
  %v5708 = vadd.f32 %v5641, %v5661
  %v5709 = vadd.f32 %v5642, %v5661
  %v5710 = vadd.f32 %v5643, %v5661
  %v5711 = vadd.f32 %v5644, %v5661
  %v5712 = vadd.f32 %v5645, %v5661
  %v5713 = vadd.f32 %v5646, %v5661
  %v5714 = vadd.f32 %v5647, %v5661
  %v5715 = vadd.f32 %v5648, %v5661
  %v5716 = vadd.f32 %v5649, %v5661
  %v5717 = vadd.f32 %v5650, %v5661
  %v5718 = vadd.f32 %v5651, %v5661
  %v5719 = vadd.f32 %v5652, %v5661
  %v5720 = vadd.f32 %v5653, %v5661
  %v5721 = vadd.f32 %v5654, %v5661
  %v5722 = vadd.f32 %v5655, %v5661
  %v5723 = vadd.f32 %v5656, %v5661
  %v5724 = vadd.f32 %v5657, %v5661
  %v5725 = vadd.f32 %v5658, %v5661
  %v5726 = vadd.f32 %v5659, %v5661
  %v5727 = vld [vmem:[%s0] sm:$0xff]
  %v5728 = vld [vmem:[%s0 + $0x8] sm:$0xff]
  %v5729 = vld [vmem:[%s0 + $0x10] sm:$0xff]
  %v5730 = vld [vmem:[%s0 + $0x18] sm:$0xff]
  %v5731 = vld [vmem:[%s0 + $0x20] sm:$0xff]
  %v5732 = vld [vmem:[%s0 + $0x28] sm:$0xff]
  %v5733 = vld [vmem:[%s0 + $0x30] sm:$0xff]
  %v5734 = vld [vmem:[%s0 + $0x38] sm:$0xff]
  %v5735 = vld [vmem:[%s0 + $0x40] sm:$0xff]
  %v5736 = vld [vmem:[%s0 + $0x48] sm:$0xff]
  %v5737 = vld [vmem:[%s0 + $0x50] sm:$0xff]
  %v5738 = vld [vmem:[%s0 + $0x58] sm:$0xff]
  %v5739 = vld [vmem:[%s0 + $0x60] sm:$0xff]
  %v5740 = vld [vmem:[%s0 + $0x68] sm:$0xff]
  %v5741 = vld [vmem:[%s0 + $0x70] sm:$0xff]
  %v5742 = vld [vmem:[%s0 + $0x78] sm:$0xff]
  %v5743 = vld [vmem:[%s0 + $0x80] sm:$0xff]
  %v5744 = vld [vmem:[%s0 + $0x88] sm:$0xff]
  %v5745 = vld [vmem:[%s0 + $0x90] sm:$0xff]
  %v5746 = vld [vmem:[%s0 + $0x98] sm:$0xff]
  %v5747 = vld [vmem:[%s0 + $0xa0] sm:$0xff]
  %v5748 = vld [vmem:[%s0 + $0xa8] sm:$0xff]
  %v5749 = vld [vmem:[%s0 + $0xb0] sm:$0xff]
  %v5750 = vld [vmem:[%s0 + $0xb8] sm:$0xff]
  %v5751 = vld [vmem:[%s0 + $0xc0] sm:$0xff]
  %v5752 = vld [vmem:[%s0 + $0xc8] sm:$0xff]
  %v5753 = vld [vmem:[%s0 + $0xd0] sm:$0xff]
  %v5754 = vld [vmem:[%s0 + $0xd8] sm:$0xff]
  %v5755 = vld [vmem:[%s0 + $0xe0] sm:$0xff]
  %v5756 = vld [vmem:[%s0 + $0xe8] sm:$0xff]
  %v5757 = vld [vmem:[%s0 + $0xf0] sm:$0xff]
  %v5758 = vld [vmem:[%s0 + $0xf8] sm:$0xff]
  %v5759 = vld [vmem:[%s0 + $0x100] sm:$0xff]
  %v5760 = vld [vmem:[%s0 + $0x108] sm:$0xff]
  %v5761 = vld [vmem:[%s0 + $0x110] sm:$0xff]
  %v5762 = vld [vmem:[%s0 + $0x118] sm:$0xff]
  %v5763 = vld [vmem:[%s0 + $0x120] sm:$0xff]
  %v5764 = vld [vmem:[%s0 + $0x128] sm:$0xff]
  %v5765 = vld [vmem:[%s0 + $0x130] sm:$0xff]
  %v5766 = vld [vmem:[%s0 + $0x138] sm:$0xff]
  %v5767 = vld [vmem:[%s0 + $0x140] sm:$0xff]
  %v5768 = vld [vmem:[%s0 + $0x148] sm:$0xff]
  %v5769 = vld [vmem:[%s0 + $0x150] sm:$0xff]
  %v5770 = vld [vmem:[%s0 + $0x158] sm:$0xff]
  %v5771 = vld [vmem:[%s0 + $0x160] sm:$0xff]
  %v5772 = vld [vmem:[%s0 + $0x168] sm:$0xff]
  %v5773 = vld [vmem:[%s0 + $0x170] sm:$0xff]
  %v5774 = vld [vmem:[%s0 + $0x178] sm:$0xff]
  %v5775 = vld [vmem:[%s0 + $0x180] sm:$0xff]
  %v5776 = vld [vmem:[%s0 + $0x188] sm:$0xff]
  %v5777 = vld [vmem:[%s0 + $0x190] sm:$0xff]
  %v5778 = vld [vmem:[%s0 + $0x198] sm:$0xff]
  %v5779 = vld [vmem:[%s0 + $0x1a0] sm:$0xff]
  %v5780 = vld [vmem:[%s0 + $0x1a8] sm:$0xff]
  %v5781 = vld [vmem:[%s0 + $0x1b0] sm:$0xff]
  %v5782 = vld [vmem:[%s0 + $0x1b8] sm:$0xff]
  %v5783 = vld [vmem:[%s0 + $0x1c0] sm:$0xff]
  %v5784 = vld [vmem:[%s0 + $0x1c8] sm:$0xff]
  %v5785 = vld [vmem:[%s0 + $0x1d0] sm:$0xff]
  %v5786 = vld [vmem:[%s0 + $0x1d8] sm:$0xff]
  %v5787 = vld [vmem:[%s0 + $0x1e0] sm:$0xff]
  %v5788 = vld [vmem:[%s0 + $0x1e8] sm:$0xff]
  %v5789 = vld [vmem:[%s0 + $0x1f0] sm:$0xff]
  %v5790 = vld [vmem:[%s0 + $0x1f8] sm:$0xff]
  %v5791 = vadd.f32 %v5663, %v5727
  %v5792 = vadd.f32 %v5664, %v5728
  %v5793 = vadd.f32 %v5665, %v5729
  %v5794 = vadd.f32 %v5666, %v5730
  %v5795 = vadd.f32 %v5667, %v5731
  %v5796 = vadd.f32 %v5668, %v5732
  %v5797 = vadd.f32 %v5669, %v5733
  %v5798 = vadd.f32 %v5670, %v5734
  %v5799 = vadd.f32 %v5671, %v5735
  %v5800 = vadd.f32 %v5672, %v5736
  %v5801 = vadd.f32 %v5673, %v5737
  %v5802 = vadd.f32 %v5674, %v5738
  %v5803 = vadd.f32 %v5675, %v5739
  %v5804 = vadd.f32 %v5676, %v5740
  %v5805 = vadd.f32 %v5677, %v5741
  %v5806 = vadd.f32 %v5678, %v5742
  %v5807 = vadd.f32 %v5679, %v5743
  %v5808 = vadd.f32 %v5680, %v5744
  %v5809 = vadd.f32 %v5681, %v5745
  %v5810 = vadd.f32 %v5682, %v5746
  %v5811 = vadd.f32 %v5683, %v5747
  %v5812 = vadd.f32 %v5684, %v5748
  %v5813 = vadd.f32 %v5685, %v5749
  %v5814 = vadd.f32 %v5686, %v5750
  %v5815 = vadd.f32 %v5687, %v5751
  %v5816 = vadd.f32 %v5688, %v5752
  %v5817 = vadd.f32 %v5689, %v5753
  %v5818 = vadd.f32 %v5690, %v5754
  %v5819 = vadd.f32 %v5691, %v5755
  %v5820 = vadd.f32 %v5692, %v5756
  %v5821 = vadd.f32 %v5693, %v5757
  %v5822 = vadd.f32 %v5694, %v5758
  %v5823 = vadd.f32 %v5695, %v5759
  %v5824 = vadd.f32 %v5696, %v5760
  %v5825 = vadd.f32 %v5697, %v5761
  %v5826 = vadd.f32 %v5698, %v5762
  %v5827 = vadd.f32 %v5699, %v5763
  %v5828 = vadd.f32 %v5700, %v5764
  %v5829 = vadd.f32 %v5701, %v5765
  %v5830 = vadd.f32 %v5702, %v5766
  %v5831 = vadd.f32 %v5703, %v5767
  %v5832 = vadd.f32 %v5704, %v5768
  %v5833 = vadd.f32 %v5705, %v5769
  %v5834 = vadd.f32 %v5706, %v5770
  %v5835 = vadd.f32 %v5707, %v5771
  %v5836 = vadd.f32 %v5708, %v5772
  %v5837 = vadd.f32 %v5709, %v5773
  %v5838 = vadd.f32 %v5710, %v5774
  %v5839 = vadd.f32 %v5711, %v5775
  %v5840 = vadd.f32 %v5712, %v5776
  %v5841 = vadd.f32 %v5713, %v5777
  %v5842 = vadd.f32 %v5714, %v5778
  %v5843 = vadd.f32 %v5715, %v5779
  %v5844 = vadd.f32 %v5716, %v5780
  %v5845 = vadd.f32 %v5717, %v5781
  %v5846 = vadd.f32 %v5718, %v5782
  %v5847 = vadd.f32 %v5719, %v5783
  %v5848 = vadd.f32 %v5720, %v5784
  %v5849 = vadd.f32 %v5721, %v5785
  %v5850 = vadd.f32 %v5722, %v5786
  %v5851 = vadd.f32 %v5723, %v5787
  %v5852 = vadd.f32 %v5724, %v5788
  %v5853 = vadd.f32 %v5725, %v5789
  %v5854 = vadd.f32 %v5726, %v5790
  %v5855 = vmax.f32 %v5791, 0.0
  %v5856 = vmax.f32 %v5792, 0.0
  %v5857 = vmax.f32 %v5793, 0.0
  %v5858 = vmax.f32 %v5794, 0.0
  %v5859 = vmax.f32 %v5795, 0.0
  %v5860 = vmax.f32 %v5796, 0.0
  %v5861 = vmax.f32 %v5797, 0.0
  %v5862 = vmax.f32 %v5798, 0.0
  %v5863 = vmax.f32 %v5799, 0.0
  %v5864 = vmax.f32 %v5800, 0.0
  %v5865 = vmax.f32 %v5801, 0.0
  %v5866 = vmax.f32 %v5802, 0.0
  %v5867 = vmax.f32 %v5803, 0.0
  %v5868 = vmax.f32 %v5804, 0.0
  %v5869 = vmax.f32 %v5805, 0.0
  %v5870 = vmax.f32 %v5806, 0.0
  %v5871 = vmax.f32 %v5807, 0.0
  %v5872 = vmax.f32 %v5808, 0.0
  %v5873 = vmax.f32 %v5809, 0.0
  %v5874 = vmax.f32 %v5810, 0.0
  %v5875 = vmax.f32 %v5811, 0.0
  %v5876 = vmax.f32 %v5812, 0.0
  %v5877 = vmax.f32 %v5813, 0.0
  %v5878 = vmax.f32 %v5814, 0.0
  %v5879 = vmax.f32 %v5815, 0.0
  %v5880 = vmax.f32 %v5816, 0.0
  %v5881 = vmax.f32 %v5817, 0.0
  %v5882 = vmax.f32 %v5818, 0.0
  %v5883 = vmax.f32 %v5819, 0.0
  %v5884 = vmax.f32 %v5820, 0.0
  %v5885 = vmax.f32 %v5821, 0.0
  %v5886 = vmax.f32 %v5822, 0.0
  %v5887 = vmax.f32 %v5823, 0.0
  %v5888 = vmax.f32 %v5824, 0.0
  %v5889 = vmax.f32 %v5825, 0.0
  %v5890 = vmax.f32 %v5826, 0.0
  %v5891 = vmax.f32 %v5827, 0.0
  %v5892 = vmax.f32 %v5828, 0.0
  %v5893 = vmax.f32 %v5829, 0.0
  %v5894 = vmax.f32 %v5830, 0.0
  %v5895 = vmax.f32 %v5831, 0.0
  %v5896 = vmax.f32 %v5832, 0.0
  %v5897 = vmax.f32 %v5833, 0.0
  %v5898 = vmax.f32 %v5834, 0.0
  %v5899 = vmax.f32 %v5835, 0.0
  %v5900 = vmax.f32 %v5836, 0.0
  %v5901 = vmax.f32 %v5837, 0.0
  %v5902 = vmax.f32 %v5838, 0.0
  %v5903 = vmax.f32 %v5839, 0.0
  %v5904 = vmax.f32 %v5840, 0.0
  %v5905 = vmax.f32 %v5841, 0.0
  %v5906 = vmax.f32 %v5842, 0.0
  %v5907 = vmax.f32 %v5843, 0.0
  %v5908 = vmax.f32 %v5844, 0.0
  %v5909 = vmax.f32 %v5845, 0.0
  %v5910 = vmax.f32 %v5846, 0.0
  %v5911 = vmax.f32 %v5847, 0.0
  %v5912 = vmax.f32 %v5848, 0.0
  %v5913 = vmax.f32 %v5849, 0.0
  %v5914 = vmax.f32 %v5850, 0.0
  %v5915 = vmax.f32 %v5851, 0.0
  %v5916 = vmax.f32 %v5852, 0.0
  %v5917 = vmax.f32 %v5853, 0.0
  %v5918 = vmax.f32 %v5854, 0.0
  %5919 = vst [vmem:[%s10] sm:$0xff] %v5855
  %5920 = vst [vmem:[%s10 + $0x8] sm:$0xff] %v5856
  %5921 = vst [vmem:[%s10 + $0x10] sm:$0xff] %v5857
  %5922 = vst [vmem:[%s10 + $0x18] sm:$0xff] %v5858
  %5923 = vst [vmem:[%s10 + $0x20] sm:$0xff] %v5859
  %5924 = vst [vmem:[%s10 + $0x28] sm:$0xff] %v5860
  %5925 = vst [vmem:[%s10 + $0x30] sm:$0xff] %v5861
  %5926 = vst [vmem:[%s10 + $0x38] sm:$0xff] %v5862
  %5927 = vst [vmem:[%s10 + $0x40] sm:$0xff] %v5863
  %5928 = vst [vmem:[%s10 + $0x48] sm:$0xff] %v5864
  %5929 = vst [vmem:[%s10 + $0x50] sm:$0xff] %v5865
  %5930 = vst [vmem:[%s10 + $0x58] sm:$0xff] %v5866
  %5931 = vst [vmem:[%s10 + $0x60] sm:$0xff] %v5867
  %5932 = vst [vmem:[%s10 + $0x68] sm:$0xff] %v5868
  %5933 = vst [vmem:[%s10 + $0x70] sm:$0xff] %v5869
  %5934 = vst [vmem:[%s10 + $0x78] sm:$0xff] %v5870
  %5935 = vst [vmem:[%s10 + $0x80] sm:$0xff] %v5871
  %5936 = vst [vmem:[%s10 + $0x88] sm:$0xff] %v5872
  %5937 = vst [vmem:[%s10 + $0x90] sm:$0xff] %v5873
  %5938 = vst [vmem:[%s10 + $0x98] sm:$0xff] %v5874
  %5939 = vst [vmem:[%s10 + $0xa0] sm:$0xff] %v5875
  %5940 = vst [vmem:[%s10 + $0xa8] sm:$0xff] %v5876
  %5941 = vst [vmem:[%s10 + $0xb0] sm:$0xff] %v5877
  %5942 = vst [vmem:[%s10 + $0xb8] sm:$0xff] %v5878
  %5943 = vst [vmem:[%s10 + $0xc0] sm:$0xff] %v5879
  %5944 = vst [vmem:[%s10 + $0xc8] sm:$0xff] %v5880
  %5945 = vst [vmem:[%s10 + $0xd0] sm:$0xff] %v5881
  %5946 = vst [vmem:[%s10 + $0xd8] sm:$0xff] %v5882
  %5947 = vst [vmem:[%s10 + $0xe0] sm:$0xff] %v5883
  %5948 = vst [vmem:[%s10 + $0xe8] sm:$0xff] %v5884
  %5949 = vst [vmem:[%s10 + $0xf0] sm:$0xff] %v5885
  %5950 = vst [vmem:[%s10 + $0xf8] sm:$0xff] %v5886
  %5951 = vst [vmem:[%s10 + $0x100] sm:$0xff] %v5887
  %5952 = vst [vmem:[%s10 + $0x108] sm:$0xff] %v5888
  %5953 = vst [vmem:[%s10 + $0x110] sm:$0xff] %v5889
  %5954 = vst [vmem:[%s10 + $0x118] sm:$0xff] %v5890
  %5955 = vst [vmem:[%s10 + $0x120] sm:$0xff] %v5891
  %5956 = vst [vmem:[%s10 + $0x128] sm:$0xff] %v5892
  %5957 = vst [vmem:[%s10 + $0x130] sm:$0xff] %v5893
  %5958 = vst [vmem:[%s10 + $0x138] sm:$0xff] %v5894
  %5959 = vst [vmem:[%s10 + $0x140] sm:$0xff] %v5895
  %5960 = vst [vmem:[%s10 + $0x148] sm:$0xff] %v5896
  %5961 = vst [vmem:[%s10 + $0x150] sm:$0xff] %v5897
  %5962 = vst [vmem:[%s10 + $0x158] sm:$0xff] %v5898
  %5963 = vst [vmem:[%s10 + $0x160] sm:$0xff] %v5899
  %5964 = vst [vmem:[%s10 + $0x168] sm:$0xff] %v5900
  %5965 = vst [vmem:[%s10 + $0x170] sm:$0xff] %v5901
  %5966 = vst [vmem:[%s10 + $0x178] sm:$0xff] %v5902
  %5967 = vst [vmem:[%s10 + $0x180] sm:$0xff] %v5903
  %5968 = vst [vmem:[%s10 + $0x188] sm:$0xff] %v5904
  %5969 = vst [vmem:[%s10 + $0x190] sm:$0xff] %v5905
  %5970 = vst [vmem:[%s10 + $0x198] sm:$0xff] %v5906
  %5971 = vst [vmem:[%s10 + $0x1a0] sm:$0xff] %v5907
  %5972 = vst [vmem:[%s10 + $0x1a8] sm:$0xff] %v5908
  %5973 = vst [vmem:[%s10 + $0x1b0] sm:$0xff] %v5909
  %5974 = vst [vmem:[%s10 + $0x1b8] sm:$0xff] %v5910
  %5975 = vst [vmem:[%s10 + $0x1c0] sm:$0xff] %v5911
  %5976 = vst [vmem:[%s10 + $0x1c8] sm:$0xff] %v5912
  %5977 = vst [vmem:[%s10 + $0x1d0] sm:$0xff] %v5913
  %5978 = vst [vmem:[%s10 + $0x1d8] sm:$0xff] %v5914
  %5979 = vst [vmem:[%s10 + $0x1e0] sm:$0xff] %v5915
  %5980 = vst [vmem:[%s10 + $0x1e8] sm:$0xff] %v5916
  %5981 = vst [vmem:[%s10 + $0x1f0] sm:$0xff] %v5917
  %5982 = vst [vmem:[%s10 + $0x1f8] sm:$0xff] %v5918
  // Predicated region
  $region42: #{_lambda_.1} parent=0 // pred_check
    _
  $region43: #{_lambda_.1} parent=0 // pred_check_branch
    %5984 = sbr.rel (0) target = $region45
  $region44: #{_lambda_.1} parent=0 // pred_region
    _
  $region45: #{_lambda_.1} parent=0 // pred_fallthru
    _
  // Predicated region
  $region46: #{_lambda_.1} parent=0 // pred_check
    _
  $region47: #{_lambda_.1} parent=0 // pred_check_branch
    %5986 = sbr.rel (0) target = $region49
  $region48: #{_lambda_.1} parent=0 // pred_region
    _
  $region49: #{_lambda_.1} parent=0 // pred_fallthru
    _

</llo_original>
